<compile_context>
chip_gen: v6e
topology: v6e:2x2x1
jax: 0.10.0
libtpu: 0.0.40
codegen_flags: <defaults>
</compile_context>

<pallas_src>
import functools

import jax
import jax.numpy as jnp
import numpy as np
from jax import lax
from jax.experimental import pallas as pl
from jax.experimental.pallas import tpu as pltpu

LANE = 128


def _round_up(x, m):
    return (x + m - 1) // m * m


def fold_bn(gamma, beta, mean, var, eps=1e-5):
    # TODO(synk): BatchNorm folded with running stats (inference semantics);
    #             training-mode batch statistics are not modeled.
    scale = gamma / jnp.sqrt(var + eps)
    bias = beta - mean * scale
    return scale, bias


# ------------------------------ fused kernel -------------------------------- #

def _make_fused_kernel(stride, Ho, Wo, Cp, Fp, identity):
    """conv1+bn1+relu -> conv2+bn2 -> (+shortcut) -> relu, fully fused in VMEM."""
    s = stride
    M = Ho * Wo

    def body(ph_ref, w1_ref, s1_ref, b1_ref, w2_ref, s2_ref, b2_ref,
             wsc_ref, ssc_ref, bsc_ref, o_ref, hpad_ref):
        # ---- conv1 (3x3, stride s, pad 1): 9 shifted matmuls, f32 accumulation ----
        acc1 = jnp.zeros((M, Fp), jnp.float32)
        for kh in range(3):
            for kw in range(3):
                p = (kh % s) * s + (kw % s)          # which input phase
                dh, dw = kh // s, kw // s            # shift inside the phase
                xs = ph_ref[p, dh:dh + Ho, dw:dw + Wo, :].reshape(M, Cp)
                acc1 = acc1 + jnp.dot(xs, w1_ref[kh * 3 + kw],
                                      preferred_element_type=jnp.float32)
        h = jnp.maximum(acc1 * s1_ref[...] + b1_ref[...], 0.0)

        # conv1 output stays on-chip: stash it (bf16) into a zero-padded VMEM scratch.
        hpad_ref[...] = jnp.zeros_like(hpad_ref)
        hpad_ref[1:Ho + 1, 1:Wo + 1, :] = (
            h.reshape(Ho, Wo, Fp).astype(hpad_ref.dtype))

        # ---- conv2 (3x3, stride 1, pad 1): 9 shifted matmuls ----
        acc2 = jnp.zeros((M, Fp), jnp.float32)
        for kh in range(3):
            for kw in range(3):
                hs = hpad_ref[kh:kh + Ho, kw:kw + Wo, :].reshape(M, Fp)
                acc2 = acc2 + jnp.dot(hs, w2_ref[kh * 3 + kw],
                                      preferred_element_type=jnp.float32)
        main = acc2 * s2_ref[...] + b2_ref[...]

        # ---- shortcut: read the strided image centre from the resident phases ----
        a = 1 % s
        d = 1 // s
        xc = ph_ref[a * s + a, d:d + Ho, d:d + Wo, :].reshape(M, Cp)
        if identity:
            short = xc.astype(jnp.float32)                       # no matmul, no affine
        else:
            short = jnp.dot(xc, wsc_ref[...], preferred_element_type=jnp.float32)
            short = short * ssc_ref[...] + bsc_ref[...]

        out = jnp.maximum(main + short, 0.0)
        o_ref[0] = out.reshape(Ho, Wo, Fp).astype(o_ref.dtype)

    if identity:
        def kernel(ph_ref, w1_ref, s1_ref, b1_ref, w2_ref, s2_ref, b2_ref,
                   o_ref, hpad_ref):
            body(ph_ref, w1_ref, s1_ref, b1_ref, w2_ref, s2_ref, b2_ref,
                 None, None, None, o_ref, hpad_ref)
    else:
        def kernel(ph_ref, w1_ref, s1_ref, b1_ref, w2_ref, s2_ref, b2_ref,
                   wsc_ref, ssc_ref, bsc_ref, o_ref, hpad_ref):
            body(ph_ref, w1_ref, s1_ref, b1_ref, w2_ref, s2_ref, b2_ref,
                 wsc_ref, ssc_ref, bsc_ref, o_ref, hpad_ref)
    return kernel


# -------------------------------- JAX glue ----------------------------------- #

def _make_phases(x, stride, Ho, Wo, Cp):
    """s*s strided 'phase' views of the zero-padded input, channel-padded, bf16.

    Total bytes ~= input bytes (unlike the 9x blow-up of im2col).  Phase (a, b)
    holds xp[a::s, b::s]; a stride-s conv tap (kh, kw) is a contiguous slice of
    phase (kh%s, kw%s) shifted by (kh//s, kw//s)."""
    N, H, W, Cin = x.shape
    s = stride
    d_max = 2 // s
    Hph, Wph = Ho + d_max, Wo + d_max
    xp = jnp.pad(x, ((0, 0), (1, 1), (1, 1), (0, Cp - Cin))).astype(jnp.bfloat16)
    phases = []
    for a in range(s):
        for b in range(s):
            ph = xp[:, a::s, b::s, :][:, :Hph, :Wph, :]
            pad_h, pad_w = Hph - ph.shape[1], Wph - ph.shape[2]
            if pad_h or pad_w:
                ph = jnp.pad(ph, ((0, 0), (0, pad_h), (0, pad_w), (0, 0)))
            phases.append(ph)
    return jnp.stack(phases, axis=1).reshape(N * s * s, Hph, Wph, Cp), Hph, Wph


@functools.partial(jax.jit, static_argnames=("stride",))
def basic_block(x, w1, s1, b1, w2, s2, b2, wsc, ssc, bsc, stride=1):
    """Fused ResNet BasicBlock forward.  x: (N,H,W,Cin) f32 -> (N,Ho,Wo,Cout) f32."""
    N, H, W, Cin = x.shape
    Cout = w1.shape[-1]
    s = stride
    Ho = (H - 1) // s + 1
    Wo = (W - 1) // s + 1
    Cp = _round_up(Cin, LANE)          # lane-dense in-channels
    Fp = _round_up(Cout, LANE)         # lane-dense out-channels (unmasked stores)
    identity = (s == 1 and Cin == Cout)

    phases, Hph, Wph = _make_phases(x, s, Ho, Wo, Cp)

    def pad_w3(w, ci, co, cip, cop):
        return jnp.pad(w, ((0, 0), (0, 0), (0, cip - ci), (0, cop - co))
                       ).reshape(9, cip, cop).astype(jnp.bfloat16)

    def pad_vec(v):
        return jnp.pad(v, (0, Fp - Cout)).reshape(1, Fp).astype(jnp.float32)

    w1p = pad_w3(w1, Cin, Cout, Cp, Fp)
    w2p = pad_w3(w2, Cout, Cout, Fp, Fp)
    args = [phases, w1p, pad_vec(s1), pad_vec(b1), w2p, pad_vec(s2), pad_vec(b2)]

    vec_spec = pl.BlockSpec((1, Fp), lambda n: (0, 0))
    in_specs = [
        pl.BlockSpec((s * s, Hph, Wph, Cp), lambda n: (n, 0, 0, 0)),
        pl.BlockSpec((9, Cp, Fp), lambda n: (0, 0, 0)),
        vec_spec, vec_spec,
        pl.BlockSpec((9, Fp, Fp), lambda n: (0, 0, 0)),
        vec_spec, vec_spec,
    ]
    if not identity:
        wscp = jnp.pad(wsc, ((0, Cp - Cin), (0, Fp - Cout))).astype(jnp.bfloat16)
        args += [wscp, pad_vec(ssc), pad_vec(bsc)]
        in_specs += [pl.BlockSpec((Cp, Fp), lambda n: (0, 0)), vec_spec, vec_spec]

    kernel = _make_fused_kernel(s, Ho, Wo, Cp, Fp, identity)

    out = pl.pallas_call(
        kernel,
        out_shape=jax.ShapeDtypeStruct((N, Ho, Wo, Fp), jnp.float32),
        grid_spec=pltpu.PrefetchScalarGridSpec(
            num_scalar_prefetch=0,
            grid=(N,),
            in_specs=in_specs,
            out_specs=pl.BlockSpec((1, Ho, Wo, Fp), lambda n: (n, 0, 0, 0)),
            scratch_shapes=[pltpu.VMEM((Ho + 2, Wo + 2, Fp), jnp.bfloat16)],
        ),
        compiler_params=pltpu.CompilerParams(
            dimension_semantics=("parallel",),
            vmem_limit_bytes=32 * 1024 * 1024,
        ),
    )(*args)
    return out[:, :, :, :Cout]


def reference(x, w1, s1, b1, w2, s2, b2, wsc, ssc, bsc, stride):
    """Pure-JAX reference (lax.conv) using identical bf16-quantized operands."""
    f32, bf16 = jnp.float32, jnp.bfloat16
    q = lambda t: t.astype(bf16).astype(f32)
    dn = ('NHWC', 'HWIO', 'NHWC')
    hp = lax.Precision.HIGHEST
    h = lax.conv_general_dilated(q(x), q(w1), (stride, stride), [(1, 1), (1, 1)],
                                 dimension_numbers=dn, precision=hp)
    h = q(jnp.maximum(h * s1 + b1, 0.0))        # kernel keeps h as bf16 in VMEM
    m = lax.conv_general_dilated(h, q(w2), (1, 1), [(1, 1), (1, 1)],
                                 dimension_numbers=dn, precision=hp)
    m = m * s2 + b2
    Cin, Cout = x.shape[-1], w1.shape[-1]
    if stride == 1 and Cin == Cout:
        sc = q(x)
    else:
        sc = lax.conv_general_dilated(q(x), q(wsc).reshape(1, 1, Cin, Cout),
                                      (stride, stride), [(0, 0), (0, 0)],
                                      dimension_numbers=dn, precision=hp)
        sc = sc * ssc + bsc
    return jnp.maximum(m + sc, 0.0)


# ---------------------------------- main -------------------------------------- #

if __name__ == "__main__":
    key = jax.random.PRNGKey(0)

    def bn_params(k, C):
        k1, k2, k3, k4 = jax.random.split(k, 4)
        gamma = jax.random.uniform(k1, (C,), jnp.float32, 0.5, 1.5)
        beta = jax.random.normal(k2, (C,), jnp.float32) * 0.1
        mean = jax.random.normal(k3, (C,), jnp.float32) * 0.1
        var = jax.random.uniform(k4, (C,), jnp.float32, 0.5, 1.5)
        return fold_bn(gamma, beta, mean, var)

    def run_case(k, N, H, W, Cin, Cout, stride):
        ks = jax.random.split(k, 8)
        x = jax.random.normal(ks[0], (N, H, W, Cin), jnp.float32)
        w1 = jax.random.normal(ks[1], (3, 3, Cin, Cout), jnp.float32) * 0.1
        w2 = jax.random.normal(ks[2], (3, 3, Cout, Cout), jnp.float32) * 0.1
        s1, b1 = bn_params(ks[4], Cout)
        s2, b2 = bn_params(ks[5], Cout)
        if stride == 1 and Cin == Cout:
            wsc = ssc = bsc = None
        else:
            wsc = jax.random.normal(ks[3], (Cin, Cout), jnp.float32) * 0.1
            ssc, bsc = bn_params(ks[6], Cout)

        out = basic_block(x, w1, s1, b1, w2, s2, b2, wsc, ssc, bsc, stride=stride)
        out = jax.block_until_ready(out)
        ref = jax.block_until_ready(
            reference(x, w1, s1, b1, w2, s2, b2, wsc, ssc, bsc, stride))
        Hout = (H - 1) // stride + 1
        assert out.shape == (N, Hout, Hout, Cout), out.shape
        np.testing.assert_allclose(np.asarray(out), np.asarray(ref),
                                   rtol=5e-4, atol=5e-4)

    k1, k2 = jax.random.split(key)
    # projection shortcut: stride 2, 4 -> 8 channels
    run_case(k1, N=2, H=16, W=16, Cin=4, Cout=8, stride=2)
    # identity shortcut: stride 1, 8 -> 8 channels (specialized kernel variant)
    run_case(k2, N=2, H=16, W=16, Cin=8, Cout=8, stride=1)

    print("KERNEL_OK")
</pallas_src>

<mosaic_0001>
module attributes {stable_mosaic.version = 11 : i64} {
  func.func @kernel(%arg0: i32, %arg1: memref<4x9x9x128xbf16, #tpu.memory_space<vmem>>, %arg2: memref<9x128x128xbf16, #tpu.memory_space<vmem>>, %arg3: memref<1x128xf32, #tpu.memory_space<vmem>>, %arg4: memref<1x128xf32, #tpu.memory_space<vmem>>, %arg5: memref<9x128x128xbf16, #tpu.memory_space<vmem>>, %arg6: memref<1x128xf32, #tpu.memory_space<vmem>>, %arg7: memref<1x128xf32, #tpu.memory_space<vmem>>, %arg8: memref<128x128xbf16, #tpu.memory_space<vmem>>, %arg9: memref<1x128xf32, #tpu.memory_space<vmem>>, %arg10: memref<1x128xf32, #tpu.memory_space<vmem>>, %arg11: memref<1x8x8x128xf32, #tpu.memory_space<vmem>>, %arg12: memref<10x10x128xbf16, #tpu.memory_space<vmem>>) attributes {dimension_semantics = [#tpu.dimension_semantics<parallel>], iteration_bounds = array<i64: 2>, scalar_prefetch = 0 : i64, scratch_operands = 1 : i64, tpu.core_type = #tpu.core_type<tc>, window_params = [{transform_indices = @transform_0, window_bounds = array<i64: 4, 9, 9, 128>}, {pipeline_mode = #tpu.pipeline_mode<synchronous>, transform_indices = @transform_1, window_bounds = array<i64: 9, 128, 128>}, {pipeline_mode = #tpu.pipeline_mode<synchronous>, transform_indices = @transform_2, window_bounds = array<i64: 1, 128>}, {pipeline_mode = #tpu.pipeline_mode<synchronous>, transform_indices = @transform_3, window_bounds = array<i64: 1, 128>}, {pipeline_mode = #tpu.pipeline_mode<synchronous>, transform_indices = @transform_4, window_bounds = array<i64: 9, 128, 128>}, {pipeline_mode = #tpu.pipeline_mode<synchronous>, transform_indices = @transform_5, window_bounds = array<i64: 1, 128>}, {pipeline_mode = #tpu.pipeline_mode<synchronous>, transform_indices = @transform_6, window_bounds = array<i64: 1, 128>}, {pipeline_mode = #tpu.pipeline_mode<synchronous>, transform_indices = @transform_7, window_bounds = array<i64: 128, 128>}, {pipeline_mode = #tpu.pipeline_mode<synchronous>, transform_indices = @transform_8, window_bounds = array<i64: 1, 128>}, {pipeline_mode = #tpu.pipeline_mode<synchronous>, transform_indices = @transform_9, window_bounds = array<i64: 1, 128>}, {transform_indices = @transform_10, window_bounds = array<i64: 1, 8, 8, 128>}]} {
    %cst = arith.constant 0.000000e+00 : f32
    %0 = vector.broadcast %cst : f32 to vector<64x128xf32>
    %c0 = arith.constant 0 : index
    %c0_0 = arith.constant 0 : index
    %c0_1 = arith.constant 0 : index
    %c0_2 = arith.constant 0 : index
    %1 = vector.load %arg1[%c0, %c0_0, %c0_1, %c0_2] : memref<4x9x9x128xbf16, #tpu.memory_space<vmem>>, vector<1x8x8x128xbf16>
    %2 = vector.shape_cast %1 : vector<1x8x8x128xbf16> to vector<8x8x128xbf16>
    %3 = vector.shape_cast %2 : vector<8x8x128xbf16> to vector<64x128xbf16>
    %c0_3 = arith.constant 0 : index
    %c0_4 = arith.constant 0 : index
    %c0_5 = arith.constant 0 : index
    %4 = vector.load %arg2[%c0_3, %c0_4, %c0_5] : memref<9x128x128xbf16, #tpu.memory_space<vmem>>, vector<1x128x128xbf16>
    %5 = vector.shape_cast %4 : vector<1x128x128xbf16> to vector<128x128xbf16>
    %cst_6 = arith.constant dense<0.000000e+00> : vector<64x128xf32>
    %6 = tpu.matmul %3, %5, %cst_6 {dimension_numbers = #tpu.dot_dimension_numbers<[1], [0], [0], [1], [0, 0, 1, 1], [], []>} : vector<64x128xbf16>, vector<128x128xbf16>, vector<64x128xf32> -> vector<64x128xf32>
    %7 = arith.addf %0, %6 : vector<64x128xf32>
    %c1 = arith.constant 1 : index
    %c0_7 = arith.constant 0 : index
    %c0_8 = arith.constant 0 : index
    %c0_9 = arith.constant 0 : index
    %8 = vector.load %arg1[%c1, %c0_7, %c0_8, %c0_9] : memref<4x9x9x128xbf16, #tpu.memory_space<vmem>>, vector<1x8x8x128xbf16>
    %9 = vector.shape_cast %8 : vector<1x8x8x128xbf16> to vector<8x8x128xbf16>
    %10 = vector.shape_cast %9 : vector<8x8x128xbf16> to vector<64x128xbf16>
    %c1_10 = arith.constant 1 : index
    %c0_11 = arith.constant 0 : index
    %c0_12 = arith.constant 0 : index
    %11 = vector.load %arg2[%c1_10, %c0_11, %c0_12] : memref<9x128x128xbf16, #tpu.memory_space<vmem>>, vector<1x128x128xbf16>
    %12 = vector.shape_cast %11 : vector<1x128x128xbf16> to vector<128x128xbf16>
    %cst_13 = arith.constant dense<0.000000e+00> : vector<64x128xf32>
    %13 = tpu.matmul %10, %12, %cst_13 {dimension_numbers = #tpu.dot_dimension_numbers<[1], [0], [0], [1], [0, 0, 1, 1], [], []>} : vector<64x128xbf16>, vector<128x128xbf16>, vector<64x128xf32> -> vector<64x128xf32>
    %14 = arith.addf %7, %13 : vector<64x128xf32>
    %c0_14 = arith.constant 0 : index
    %c0_15 = arith.constant 0 : index
    %c1_16 = arith.constant 1 : index
    %c0_17 = arith.constant 0 : index
    %15 = vector.load %arg1[%c0_14, %c0_15, %c1_16, %c0_17] : memref<4x9x9x128xbf16, #tpu.memory_space<vmem>>, vector<1x8x8x128xbf16>
    %16 = vector.shape_cast %15 : vector<1x8x8x128xbf16> to vector<8x8x128xbf16>
    %17 = vector.shape_cast %16 : vector<8x8x128xbf16> to vector<64x128xbf16>
    %c2 = arith.constant 2 : index
    %c0_18 = arith.constant 0 : index
    %c0_19 = arith.constant 0 : index
    %18 = vector.load %arg2[%c2, %c0_18, %c0_19] : memref<9x128x128xbf16, #tpu.memory_space<vmem>>, vector<1x128x128xbf16>
    %19 = vector.shape_cast %18 : vector<1x128x128xbf16> to vector<128x128xbf16>
    %cst_20 = arith.constant dense<0.000000e+00> : vector<64x128xf32>
    %20 = tpu.matmul %17, %19, %cst_20 {dimension_numbers = #tpu.dot_dimension_numbers<[1], [0], [0], [1], [0, 0, 1, 1], [], []>} : vector<64x128xbf16>, vector<128x128xbf16>, vector<64x128xf32> -> vector<64x128xf32>
    %21 = arith.addf %14, %20 : vector<64x128xf32>
    %c2_21 = arith.constant 2 : index
    %c0_22 = arith.constant 0 : index
    %c0_23 = arith.constant 0 : index
    %c0_24 = arith.constant 0 : index
    %22 = vector.load %arg1[%c2_21, %c0_22, %c0_23, %c0_24] : memref<4x9x9x128xbf16, #tpu.memory_space<vmem>>, vector<1x8x8x128xbf16>
    %23 = vector.shape_cast %22 : vector<1x8x8x128xbf16> to vector<8x8x128xbf16>
    %24 = vector.shape_cast %23 : vector<8x8x128xbf16> to vector<64x128xbf16>
    %c3 = arith.constant 3 : index
    %c0_25 = arith.constant 0 : index
    %c0_26 = arith.constant 0 : index
    %25 = vector.load %arg2[%c3, %c0_25, %c0_26] : memref<9x128x128xbf16, #tpu.memory_space<vmem>>, vector<1x128x128xbf16>
    %26 = vector.shape_cast %25 : vector<1x128x128xbf16> to vector<128x128xbf16>
    %cst_27 = arith.constant dense<0.000000e+00> : vector<64x128xf32>
    %27 = tpu.matmul %24, %26, %cst_27 {dimension_numbers = #tpu.dot_dimension_numbers<[1], [0], [0], [1], [0, 0, 1, 1], [], []>} : vector<64x128xbf16>, vector<128x128xbf16>, vector<64x128xf32> -> vector<64x128xf32>
    %28 = arith.addf %21, %27 : vector<64x128xf32>
    %c3_28 = arith.constant 3 : index
    %c0_29 = arith.constant 0 : index
    %c0_30 = arith.constant 0 : index
    %c0_31 = arith.constant 0 : index
    %29 = vector.load %arg1[%c3_28, %c0_29, %c0_30, %c0_31] : memref<4x9x9x128xbf16, #tpu.memory_space<vmem>>, vector<1x8x8x128xbf16>
    %30 = vector.shape_cast %29 : vector<1x8x8x128xbf16> to vector<8x8x128xbf16>
    %31 = vector.shape_cast %30 : vector<8x8x128xbf16> to vector<64x128xbf16>
    %c4 = arith.constant 4 : index
    %c0_32 = arith.constant 0 : index
    %c0_33 = arith.constant 0 : index
    %32 = vector.load %arg2[%c4, %c0_32, %c0_33] : memref<9x128x128xbf16, #tpu.memory_space<vmem>>, vector<1x128x128xbf16>
    %33 = vector.shape_cast %32 : vector<1x128x128xbf16> to vector<128x128xbf16>
    %cst_34 = arith.constant dense<0.000000e+00> : vector<64x128xf32>
    %34 = tpu.matmul %31, %33, %cst_34 {dimension_numbers = #tpu.dot_dimension_numbers<[1], [0], [0], [1], [0, 0, 1, 1], [], []>} : vector<64x128xbf16>, vector<128x128xbf16>, vector<64x128xf32> -> vector<64x128xf32>
    %35 = arith.addf %28, %34 : vector<64x128xf32>
    %c2_35 = arith.constant 2 : index
    %c0_36 = arith.constant 0 : index
    %c1_37 = arith.constant 1 : index
    %c0_38 = arith.constant 0 : index
    %36 = vector.load %arg1[%c2_35, %c0_36, %c1_37, %c0_38] : memref<4x9x9x128xbf16, #tpu.memory_space<vmem>>, vector<1x8x8x128xbf16>
    %37 = vector.shape_cast %36 : vector<1x8x8x128xbf16> to vector<8x8x128xbf16>
    %38 = vector.shape_cast %37 : vector<8x8x128xbf16> to vector<64x128xbf16>
    %c5 = arith.constant 5 : index
    %c0_39 = arith.constant 0 : index
    %c0_40 = arith.constant 0 : index
    %39 = vector.load %arg2[%c5, %c0_39, %c0_40] : memref<9x128x128xbf16, #tpu.memory_space<vmem>>, vector<1x128x128xbf16>
    %40 = vector.shape_cast %39 : vector<1x128x128xbf16> to vector<128x128xbf16>
    %cst_41 = arith.constant dense<0.000000e+00> : vector<64x128xf32>
    %41 = tpu.matmul %38, %40, %cst_41 {dimension_numbers = #tpu.dot_dimension_numbers<[1], [0], [0], [1], [0, 0, 1, 1], [], []>} : vector<64x128xbf16>, vector<128x128xbf16>, vector<64x128xf32> -> vector<64x128xf32>
    %42 = arith.addf %35, %41 : vector<64x128xf32>
    %c0_42 = arith.constant 0 : index
    %c1_43 = arith.constant 1 : index
    %c0_44 = arith.constant 0 : index
    %c0_45 = arith.constant 0 : index
    %43 = vector.load %arg1[%c0_42, %c1_43, %c0_44, %c0_45] : memref<4x9x9x128xbf16, #tpu.memory_space<vmem>>, vector<1x8x8x128xbf16>
    %44 = vector.shape_cast %43 : vector<1x8x8x128xbf16> to vector<8x8x128xbf16>
    %45 = vector.shape_cast %44 : vector<8x8x128xbf16> to vector<64x128xbf16>
    %c6 = arith.constant 6 : index
    %c0_46 = arith.constant 0 : index
    %c0_47 = arith.constant 0 : index
    %46 = vector.load %arg2[%c6, %c0_46, %c0_47] : memref<9x128x128xbf16, #tpu.memory_space<vmem>>, vector<1x128x128xbf16>
    %47 = vector.shape_cast %46 : vector<1x128x128xbf16> to vector<128x128xbf16>
    %cst_48 = arith.constant dense<0.000000e+00> : vector<64x128xf32>
    %48 = tpu.matmul %45, %47, %cst_48 {dimension_numbers = #tpu.dot_dimension_numbers<[1], [0], [0], [1], [0, 0, 1, 1], [], []>} : vector<64x128xbf16>, vector<128x128xbf16>, vector<64x128xf32> -> vector<64x128xf32>
    %49 = arith.addf %42, %48 : vector<64x128xf32>
    %c1_49 = arith.constant 1 : index
    %c1_50 = arith.constant 1 : index
    %c0_51 = arith.constant 0 : index
    %c0_52 = arith.constant 0 : index
    %50 = vector.load %arg1[%c1_49, %c1_50, %c0_51, %c0_52] : memref<4x9x9x128xbf16, #tpu.memory_space<vmem>>, vector<1x8x8x128xbf16>
    %51 = vector.shape_cast %50 : vector<1x8x8x128xbf16> to vector<8x8x128xbf16>
    %52 = vector.shape_cast %51 : vector<8x8x128xbf16> to vector<64x128xbf16>
    %c7 = arith.constant 7 : index
    %c0_53 = arith.constant 0 : index
    %c0_54 = arith.constant 0 : index
    %53 = vector.load %arg2[%c7, %c0_53, %c0_54] : memref<9x128x128xbf16, #tpu.memory_space<vmem>>, vector<1x128x128xbf16>
    %54 = vector.shape_cast %53 : vector<1x128x128xbf16> to vector<128x128xbf16>
    %cst_55 = arith.constant dense<0.000000e+00> : vector<64x128xf32>
    %55 = tpu.matmul %52, %54, %cst_55 {dimension_numbers = #tpu.dot_dimension_numbers<[1], [0], [0], [1], [0, 0, 1, 1], [], []>} : vector<64x128xbf16>, vector<128x128xbf16>, vector<64x128xf32> -> vector<64x128xf32>
    %56 = arith.addf %49, %55 : vector<64x128xf32>
    %c0_56 = arith.constant 0 : index
    %c1_57 = arith.constant 1 : index
    %c1_58 = arith.constant 1 : index
    %c0_59 = arith.constant 0 : index
    %57 = vector.load %arg1[%c0_56, %c1_57, %c1_58, %c0_59] : memref<4x9x9x128xbf16, #tpu.memory_space<vmem>>, vector<1x8x8x128xbf16>
    %58 = vector.shape_cast %57 : vector<1x8x8x128xbf16> to vector<8x8x128xbf16>
    %59 = vector.shape_cast %58 : vector<8x8x128xbf16> to vector<64x128xbf16>
    %c8 = arith.constant 8 : index
    %c0_60 = arith.constant 0 : index
    %c0_61 = arith.constant 0 : index
    %60 = vector.load %arg2[%c8, %c0_60, %c0_61] : memref<9x128x128xbf16, #tpu.memory_space<vmem>>, vector<1x128x128xbf16>
    %61 = vector.shape_cast %60 : vector<1x128x128xbf16> to vector<128x128xbf16>
    %cst_62 = arith.constant dense<0.000000e+00> : vector<64x128xf32>
    %62 = tpu.matmul %59, %61, %cst_62 {dimension_numbers = #tpu.dot_dimension_numbers<[1], [0], [0], [1], [0, 0, 1, 1], [], []>} : vector<64x128xbf16>, vector<128x128xbf16>, vector<64x128xf32> -> vector<64x128xf32>
    %63 = arith.addf %56, %62 : vector<64x128xf32>
    %c0_63 = arith.constant 0 : index
    %c0_64 = arith.constant 0 : index
    %64 = vector.load %arg3[%c0_63, %c0_64] : memref<1x128xf32, #tpu.memory_space<vmem>>, vector<1x128xf32>
    %65 = vector.broadcast %64 : vector<1x128xf32> to vector<64x128xf32>
    %66 = arith.mulf %63, %65 : vector<64x128xf32>
    %c0_65 = arith.constant 0 : index
    %c0_66 = arith.constant 0 : index
    %67 = vector.load %arg4[%c0_65, %c0_66] : memref<1x128xf32, #tpu.memory_space<vmem>>, vector<1x128xf32>
    %68 = vector.broadcast %67 : vector<1x128xf32> to vector<64x128xf32>
    %69 = arith.addf %66, %68 : vector<64x128xf32>
    %cst_67 = arith.constant 0.000000e+00 : f32
    %70 = vector.broadcast %cst_67 : f32 to vector<64x128xf32>
    %71 = arith.maximumf %69, %70 : vector<64x128xf32>
    %cst_68 = arith.constant 0.000000e+00 : bf16
    %72 = vector.broadcast %cst_68 : bf16 to vector<10x10x128xbf16>
    %c0_69 = arith.constant 0 : index
    %c0_70 = arith.constant 0 : index
    %c0_71 = arith.constant 0 : index
    %73 = vector.load %arg12[%c0_69, %c0_70, %c0_71] : memref<10x10x128xbf16, #tpu.memory_space<vmem>>, vector<10x10x128xbf16>
    tpu.vector_store %arg12[%c0_69, %c0_70, %c0_71], %72 {strides = array<i32>} : memref<10x10x128xbf16, #tpu.memory_space<vmem>>, vector<10x10x128xbf16>,
    %74 = vector.shape_cast %71 : vector<64x128xf32> to vector<8x8x128xf32>
    %75 = arith.truncf %74 : vector<8x8x128xf32> to vector<8x8x128xbf16>
    %c1_72 = arith.constant 1 : index
    %c1_73 = arith.constant 1 : index
    %c0_74 = arith.constant 0 : index
    %76 = vector.load %arg12[%c1_72, %c1_73, %c0_74] : memref<10x10x128xbf16, #tpu.memory_space<vmem>>, vector<8x8x128xbf16>
    tpu.vector_store %arg12[%c1_72, %c1_73, %c0_74], %75 {strides = array<i32>} : memref<10x10x128xbf16, #tpu.memory_space<vmem>>, vector<8x8x128xbf16>,
    %cst_75 = arith.constant 0.000000e+00 : f32
    %77 = vector.broadcast %cst_75 : f32 to vector<64x128xf32>
    %c0_76 = arith.constant 0 : index
    %c0_77 = arith.constant 0 : index
    %c0_78 = arith.constant 0 : index
    %78 = vector.load %arg12[%c0_76, %c0_77, %c0_78] : memref<10x10x128xbf16, #tpu.memory_space<vmem>>, vector<8x8x128xbf16>
    %79 = vector.shape_cast %78 : vector<8x8x128xbf16> to vector<64x128xbf16>
    %c0_79 = arith.constant 0 : index
    %c0_80 = arith.constant 0 : index
    %c0_81 = arith.constant 0 : index
    %80 = vector.load %arg5[%c0_79, %c0_80, %c0_81] : memref<9x128x128xbf16, #tpu.memory_space<vmem>>, vector<1x128x128xbf16>
    %81 = vector.shape_cast %80 : vector<1x128x128xbf16> to vector<128x128xbf16>
    %cst_82 = arith.constant dense<0.000000e+00> : vector<64x128xf32>
    %82 = tpu.matmul %79, %81, %cst_82 {dimension_numbers = #tpu.dot_dimension_numbers<[1], [0], [0], [1], [0, 0, 1, 1], [], []>} : vector<64x128xbf16>, vector<128x128xbf16>, vector<64x128xf32> -> vector<64x128xf32>
    %83 = arith.addf %77, %82 : vector<64x128xf32>
    %c0_83 = arith.constant 0 : index
    %c1_84 = arith.constant 1 : index
    %c0_85 = arith.constant 0 : index
    %84 = vector.load %arg12[%c0_83, %c1_84, %c0_85] : memref<10x10x128xbf16, #tpu.memory_space<vmem>>, vector<8x8x128xbf16>
    %85 = vector.shape_cast %84 : vector<8x8x128xbf16> to vector<64x128xbf16>
    %c1_86 = arith.constant 1 : index
    %c0_87 = arith.constant 0 : index
    %c0_88 = arith.constant 0 : index
    %86 = vector.load %arg5[%c1_86, %c0_87, %c0_88] : memref<9x128x128xbf16, #tpu.memory_space<vmem>>, vector<1x128x128xbf16>
    %87 = vector.shape_cast %86 : vector<1x128x128xbf16> to vector<128x128xbf16>
    %cst_89 = arith.constant dense<0.000000e+00> : vector<64x128xf32>
    %88 = tpu.matmul %85, %87, %cst_89 {dimension_numbers = #tpu.dot_dimension_numbers<[1], [0], [0], [1], [0, 0, 1, 1], [], []>} : vector<64x128xbf16>, vector<128x128xbf16>, vector<64x128xf32> -> vector<64x128xf32>
    %89 = arith.addf %83, %88 : vector<64x128xf32>
    %c0_90 = arith.constant 0 : index
    %c2_91 = arith.constant 2 : index
    %c0_92 = arith.constant 0 : index
    %90 = vector.load %arg12[%c0_90, %c2_91, %c0_92] : memref<10x10x128xbf16, #tpu.memory_space<vmem>>, vector<8x8x128xbf16>
    %91 = vector.shape_cast %90 : vector<8x8x128xbf16> to vector<64x128xbf16>
    %c2_93 = arith.constant 2 : index
    %c0_94 = arith.constant 0 : index
    %c0_95 = arith.constant 0 : index
    %92 = vector.load %arg5[%c2_93, %c0_94, %c0_95] : memref<9x128x128xbf16, #tpu.memory_space<vmem>>, vector<1x128x128xbf16>
    %93 = vector.shape_cast %92 : vector<1x128x128xbf16> to vector<128x128xbf16>
    %cst_96 = arith.constant dense<0.000000e+00> : vector<64x128xf32>
    %94 = tpu.matmul %91, %93, %cst_96 {dimension_numbers = #tpu.dot_dimension_numbers<[1], [0], [0], [1], [0, 0, 1, 1], [], []>} : vector<64x128xbf16>, vector<128x128xbf16>, vector<64x128xf32> -> vector<64x128xf32>
    %95 = arith.addf %89, %94 : vector<64x128xf32>
    %c1_97 = arith.constant 1 : index
    %c0_98 = arith.constant 0 : index
    %c0_99 = arith.constant 0 : index
    %96 = vector.load %arg12[%c1_97, %c0_98, %c0_99] : memref<10x10x128xbf16, #tpu.memory_space<vmem>>, vector<8x8x128xbf16>
    %97 = vector.shape_cast %96 : vector<8x8x128xbf16> to vector<64x128xbf16>
    %c3_100 = arith.constant 3 : index
    %c0_101 = arith.constant 0 : index
    %c0_102 = arith.constant 0 : index
    %98 = vector.load %arg5[%c3_100, %c0_101, %c0_102] : memref<9x128x128xbf16, #tpu.memory_space<vmem>>, vector<1x128x128xbf16>
    %99 = vector.shape_cast %98 : vector<1x128x128xbf16> to vector<128x128xbf16>
    %cst_103 = arith.constant dense<0.000000e+00> : vector<64x128xf32>
    %100 = tpu.matmul %97, %99, %cst_103 {dimension_numbers = #tpu.dot_dimension_numbers<[1], [0], [0], [1], [0, 0, 1, 1], [], []>} : vector<64x128xbf16>, vector<128x128xbf16>, vector<64x128xf32> -> vector<64x128xf32>
    %101 = arith.addf %95, %100 : vector<64x128xf32>
    %c1_104 = arith.constant 1 : index
    %c1_105 = arith.constant 1 : index
    %c0_106 = arith.constant 0 : index
    %102 = vector.load %arg12[%c1_104, %c1_105, %c0_106] : memref<10x10x128xbf16, #tpu.memory_space<vmem>>, vector<8x8x128xbf16>
    %103 = vector.shape_cast %102 : vector<8x8x128xbf16> to vector<64x128xbf16>
    %c4_107 = arith.constant 4 : index
    %c0_108 = arith.constant 0 : index
    %c0_109 = arith.constant 0 : index
    %104 = vector.load %arg5[%c4_107, %c0_108, %c0_109] : memref<9x128x128xbf16, #tpu.memory_space<vmem>>, vector<1x128x128xbf16>
    %105 = vector.shape_cast %104 : vector<1x128x128xbf16> to vector<128x128xbf16>
    %cst_110 = arith.constant dense<0.000000e+00> : vector<64x128xf32>
    %106 = tpu.matmul %103, %105, %cst_110 {dimension_numbers = #tpu.dot_dimension_numbers<[1], [0], [0], [1], [0, 0, 1, 1], [], []>} : vector<64x128xbf16>, vector<128x128xbf16>, vector<64x128xf32> -> vector<64x128xf32>
    %107 = arith.addf %101, %106 : vector<64x128xf32>
    %c1_111 = arith.constant 1 : index
    %c2_112 = arith.constant 2 : index
    %c0_113 = arith.constant 0 : index
    %108 = vector.load %arg12[%c1_111, %c2_112, %c0_113] : memref<10x10x128xbf16, #tpu.memory_space<vmem>>, vector<8x8x128xbf16>
    %109 = vector.shape_cast %108 : vector<8x8x128xbf16> to vector<64x128xbf16>
    %c5_114 = arith.constant 5 : index
    %c0_115 = arith.constant 0 : index
    %c0_116 = arith.constant 0 : index
    %110 = vector.load %arg5[%c5_114, %c0_115, %c0_116] : memref<9x128x128xbf16, #tpu.memory_space<vmem>>, vector<1x128x128xbf16>
    %111 = vector.shape_cast %110 : vector<1x128x128xbf16> to vector<128x128xbf16>
    %cst_117 = arith.constant dense<0.000000e+00> : vector<64x128xf32>
    %112 = tpu.matmul %109, %111, %cst_117 {dimension_numbers = #tpu.dot_dimension_numbers<[1], [0], [0], [1], [0, 0, 1, 1], [], []>} : vector<64x128xbf16>, vector<128x128xbf16>, vector<64x128xf32> -> vector<64x128xf32>
    %113 = arith.addf %107, %112 : vector<64x128xf32>
    %c2_118 = arith.constant 2 : index
    %c0_119 = arith.constant 0 : index
    %c0_120 = arith.constant 0 : index
    %114 = vector.load %arg12[%c2_118, %c0_119, %c0_120] : memref<10x10x128xbf16, #tpu.memory_space<vmem>>, vector<8x8x128xbf16>
    %115 = vector.shape_cast %114 : vector<8x8x128xbf16> to vector<64x128xbf16>
    %c6_121 = arith.constant 6 : index
    %c0_122 = arith.constant 0 : index
    %c0_123 = arith.constant 0 : index
    %116 = vector.load %arg5[%c6_121, %c0_122, %c0_123] : memref<9x128x128xbf16, #tpu.memory_space<vmem>>, vector<1x128x128xbf16>
    %117 = vector.shape_cast %116 : vector<1x128x128xbf16> to vector<128x128xbf16>
    %cst_124 = arith.constant dense<0.000000e+00> : vector<64x128xf32>
    %118 = tpu.matmul %115, %117, %cst_124 {dimension_numbers = #tpu.dot_dimension_numbers<[1], [0], [0], [1], [0, 0, 1, 1], [], []>} : vector<64x128xbf16>, vector<128x128xbf16>, vector<64x128xf32> -> vector<64x128xf32>
    %119 = arith.addf %113, %118 : vector<64x128xf32>
    %c2_125 = arith.constant 2 : index
    %c1_126 = arith.constant 1 : index
    %c0_127 = arith.constant 0 : index
    %120 = vector.load %arg12[%c2_125, %c1_126, %c0_127] : memref<10x10x128xbf16, #tpu.memory_space<vmem>>, vector<8x8x128xbf16>
    %121 = vector.shape_cast %120 : vector<8x8x128xbf16> to vector<64x128xbf16>
    %c7_128 = arith.constant 7 : index
    %c0_129 = arith.constant 0 : index
    %c0_130 = arith.constant 0 : index
    %122 = vector.load %arg5[%c7_128, %c0_129, %c0_130] : memref<9x128x128xbf16, #tpu.memory_space<vmem>>, vector<1x128x128xbf16>
    %123 = vector.shape_cast %122 : vector<1x128x128xbf16> to vector<128x128xbf16>
    %cst_131 = arith.constant dense<0.000000e+00> : vector<64x128xf32>
    %124 = tpu.matmul %121, %123, %cst_131 {dimension_numbers = #tpu.dot_dimension_numbers<[1], [0], [0], [1], [0, 0, 1, 1], [], []>} : vector<64x128xbf16>, vector<128x128xbf16>, vector<64x128xf32> -> vector<64x128xf32>
    %125 = arith.addf %119, %124 : vector<64x128xf32>
    %c2_132 = arith.constant 2 : index
    %c2_133 = arith.constant 2 : index
    %c0_134 = arith.constant 0 : index
    %126 = vector.load %arg12[%c2_132, %c2_133, %c0_134] : memref<10x10x128xbf16, #tpu.memory_space<vmem>>, vector<8x8x128xbf16>
    %127 = vector.shape_cast %126 : vector<8x8x128xbf16> to vector<64x128xbf16>
    %c8_135 = arith.constant 8 : index
    %c0_136 = arith.constant 0 : index
    %c0_137 = arith.constant 0 : index
    %128 = vector.load %arg5[%c8_135, %c0_136, %c0_137] : memref<9x128x128xbf16, #tpu.memory_space<vmem>>, vector<1x128x128xbf16>
    %129 = vector.shape_cast %128 : vector<1x128x128xbf16> to vector<128x128xbf16>
    %cst_138 = arith.constant dense<0.000000e+00> : vector<64x128xf32>
    %130 = tpu.matmul %127, %129, %cst_138 {dimension_numbers = #tpu.dot_dimension_numbers<[1], [0], [0], [1], [0, 0, 1, 1], [], []>} : vector<64x128xbf16>, vector<128x128xbf16>, vector<64x128xf32> -> vector<64x128xf32>
    %131 = arith.addf %125, %130 : vector<64x128xf32>
    %c0_139 = arith.constant 0 : index
    %c0_140 = arith.constant 0 : index
    %132 = vector.load %arg6[%c0_139, %c0_140] : memref<1x128xf32, #tpu.memory_space<vmem>>, vector<1x128xf32>
    %133 = vector.broadcast %132 : vector<1x128xf32> to vector<64x128xf32>
    %134 = arith.mulf %131, %133 : vector<64x128xf32>
    %c0_141 = arith.constant 0 : index
    %c0_142 = arith.constant 0 : index
    %135 = vector.load %arg7[%c0_141, %c0_142] : memref<1x128xf32, #tpu.memory_space<vmem>>, vector<1x128xf32>
    %136 = vector.broadcast %135 : vector<1x128xf32> to vector<64x128xf32>
    %137 = arith.addf %134, %136 : vector<64x128xf32>
    %c3_143 = arith.constant 3 : index
    %c0_144 = arith.constant 0 : index
    %c0_145 = arith.constant 0 : index
    %c0_146 = arith.constant 0 : index
    %138 = vector.load %arg1[%c3_143, %c0_144, %c0_145, %c0_146] : memref<4x9x9x128xbf16, #tpu.memory_space<vmem>>, vector<1x8x8x128xbf16>
    %139 = vector.shape_cast %138 : vector<1x8x8x128xbf16> to vector<8x8x128xbf16>
    %140 = vector.shape_cast %139 : vector<8x8x128xbf16> to vector<64x128xbf16>
    %c0_147 = arith.constant 0 : index
    %c0_148 = arith.constant 0 : index
    %141 = vector.load %arg8[%c0_147, %c0_148] : memref<128x128xbf16, #tpu.memory_space<vmem>>, vector<128x128xbf16>
    %cst_149 = arith.constant dense<0.000000e+00> : vector<64x128xf32>
    %142 = tpu.matmul %140, %141, %cst_149 {dimension_numbers = #tpu.dot_dimension_numbers<[1], [0], [0], [1], [0, 0, 1, 1], [], []>} : vector<64x128xbf16>, vector<128x128xbf16>, vector<64x128xf32> -> vector<64x128xf32>
    %c0_150 = arith.constant 0 : index
    %c0_151 = arith.constant 0 : index
    %143 = vector.load %arg9[%c0_150, %c0_151] : memref<1x128xf32, #tpu.memory_space<vmem>>, vector<1x128xf32>
    %144 = vector.broadcast %143 : vector<1x128xf32> to vector<64x128xf32>
    %145 = arith.mulf %142, %144 : vector<64x128xf32>
    %c0_152 = arith.constant 0 : index
    %c0_153 = arith.constant 0 : index
    %146 = vector.load %arg10[%c0_152, %c0_153] : memref<1x128xf32, #tpu.memory_space<vmem>>, vector<1x128xf32>
    %147 = vector.broadcast %146 : vector<1x128xf32> to vector<64x128xf32>
    %148 = arith.addf %145, %147 : vector<64x128xf32>
    %149 = arith.addf %137, %148 : vector<64x128xf32>
    %cst_154 = arith.constant 0.000000e+00 : f32
    %150 = vector.broadcast %cst_154 : f32 to vector<64x128xf32>
    %151 = arith.maximumf %149, %150 : vector<64x128xf32>
    %152 = vector.shape_cast %151 : vector<64x128xf32> to vector<8x8x128xf32>
    %c0_155 = arith.constant 0 : index
    %c0_156 = arith.constant 0 : index
    %c0_157 = arith.constant 0 : index
    %c0_158 = arith.constant 0 : index
    %153 = vector.load %arg11[%c0_155, %c0_156, %c0_157, %c0_158] : memref<1x8x8x128xf32, #tpu.memory_space<vmem>>, vector<1x8x8x128xf32>
    %154 = vector.shape_cast %153 : vector<1x8x8x128xf32> to vector<8x8x128xf32>
    %155 = vector.shape_cast %152 : vector<8x8x128xf32> to vector<1x8x8x128xf32>
    tpu.vector_store %arg11[%c0_155, %c0_156, %c0_157, %c0_158], %155 {strides = array<i32>} : memref<1x8x8x128xf32, #tpu.memory_space<vmem>>, vector<1x8x8x128xf32>,
    return
  }
  func.func @transform_0(%arg0: i32) -> (i32, i32, i32, i32) {
    %c0_i32 = arith.constant 0 : i32
    %c0_i32_0 = arith.constant 0 : i32
    %c0_i32_1 = arith.constant 0 : i32
    %c0_i32_2 = arith.constant 0 : i32
    return %arg0, %c0_i32, %c0_i32_0, %c0_i32_1 : i32, i32, i32, i32
  }
  func.func @transform_1(%arg0: i32) -> (i32, i32, i32) {
    %c0_i32 = arith.constant 0 : i32
    %c0_i32_0 = arith.constant 0 : i32
    %c0_i32_1 = arith.constant 0 : i32
    %c0_i32_2 = arith.constant 0 : i32
    return %c0_i32, %c0_i32_0, %c0_i32_1 : i32, i32, i32
  }
  func.func @transform_2(%arg0: i32) -> (i32, i32) {
    %c0_i32 = arith.constant 0 : i32
    %c0_i32_0 = arith.constant 0 : i32
    %c0_i32_1 = arith.constant 0 : i32
    return %c0_i32, %c0_i32_0 : i32, i32
  }
  func.func @transform_3(%arg0: i32) -> (i32, i32) {
    %c0_i32 = arith.constant 0 : i32
    %c0_i32_0 = arith.constant 0 : i32
    %c0_i32_1 = arith.constant 0 : i32
    return %c0_i32, %c0_i32_0 : i32, i32
  }
  func.func @transform_4(%arg0: i32) -> (i32, i32, i32) {
    %c0_i32 = arith.constant 0 : i32
    %c0_i32_0 = arith.constant 0 : i32
    %c0_i32_1 = arith.constant 0 : i32
    %c0_i32_2 = arith.constant 0 : i32
    return %c0_i32, %c0_i32_0, %c0_i32_1 : i32, i32, i32
  }
  func.func @transform_5(%arg0: i32) -> (i32, i32) {
    %c0_i32 = arith.constant 0 : i32
    %c0_i32_0 = arith.constant 0 : i32
    %c0_i32_1 = arith.constant 0 : i32
    return %c0_i32, %c0_i32_0 : i32, i32
  }
  func.func @transform_6(%arg0: i32) -> (i32, i32) {
    %c0_i32 = arith.constant 0 : i32
    %c0_i32_0 = arith.constant 0 : i32
    %c0_i32_1 = arith.constant 0 : i32
    return %c0_i32, %c0_i32_0 : i32, i32
  }
  func.func @transform_7(%arg0: i32) -> (i32, i32) {
    %c0_i32 = arith.constant 0 : i32
    %c0_i32_0 = arith.constant 0 : i32
    %c0_i32_1 = arith.constant 0 : i32
    return %c0_i32, %c0_i32_0 : i32, i32
  }
  func.func @transform_8(%arg0: i32) -> (i32, i32) {
    %c0_i32 = arith.constant 0 : i32
    %c0_i32_0 = arith.constant 0 : i32
    %c0_i32_1 = arith.constant 0 : i32
    return %c0_i32, %c0_i32_0 : i32, i32
  }
  func.func @transform_9(%arg0: i32) -> (i32, i32) {
    %c0_i32 = arith.constant 0 : i32
    %c0_i32_0 = arith.constant 0 : i32
    %c0_i32_1 = arith.constant 0 : i32
    return %c0_i32, %c0_i32_0 : i32, i32
  }
  func.func @transform_10(%arg0: i32) -> (i32, i32, i32, i32) {
    %c0_i32 = arith.constant 0 : i32
    %c0_i32_0 = arith.constant 0 : i32
    %c0_i32_1 = arith.constant 0 : i32
    %c0_i32_2 = arith.constant 0 : i32
    return %arg0, %c0_i32, %c0_i32_0, %c0_i32_1 : i32, i32, i32, i32
  }
}

</mosaic_0001>

<llo_original>
// kernel: basic_block.1
$region0: #{basic_block.1}
  #allocation0 [shape = 'u32[]', space=smem, size = 0x4, offset = 0x4, fixed_abs, tag = 'smem constant byte address 0x4 - core index']
  #allocation1 [shape = 'u32[144,128]{1,0:T(1,128)}', space=vmem, size = 0x12000, scoped, tag = 'internal scratch']
  #allocation2 [shape = 'bf16[10,10,128]{2,1,0:T(8,128)(2,1)}', space=vmem, size = 0xa000, scoped, tag = 'scratch operand']
  %s0 = inlined_call_operand.vmem [shape: bf16[8,9,9,128], index: 0, kind: input, shape index: {}]
  %s1 = inlined_call_operand.vmem [shape: bf16[9,128,128], index: 1, kind: input, shape index: {}]
  %s2 = inlined_call_operand.vmem [shape: f32[1,128], index: 2, kind: input, shape index: {}]
  %s3 = inlined_call_operand.vmem [shape: f32[1,128], index: 3, kind: input, shape index: {}]
  %s4 = inlined_call_operand.vmem [shape: bf16[9,128,128], index: 4, kind: input, shape index: {}]
  %s5 = inlined_call_operand.vmem [shape: f32[1,128], index: 5, kind: input, shape index: {}]
  %s6 = inlined_call_operand.vmem [shape: f32[1,128], index: 6, kind: input, shape index: {}]
  %s7 = inlined_call_operand.vmem [shape: bf16[128,128], index: 7, kind: input, shape index: {}]
  %s8 = inlined_call_operand.vmem [shape: f32[1,128], index: 8, kind: input, shape index: {}]
  %s9 = inlined_call_operand.vmem [shape: f32[1,128], index: 9, kind: input, shape index: {}]
  %s10 = inlined_call_operand.hbm [shape: f32[2,8,8,128], index: 10, kind: output, shape index: {}]
  %s11 = sld [smem:[#allocation0]]
  $region73: #{basic_block.1} parent=0
    _
  %s13 = ssub.s32 1, %s11
  %s14 = scalar_select 0, %s13, %s11
  $region1: #{basic_block.1} parent=0
    #allocation3 [shape = 'u8[65536]{0}', space=vmem, size = 0x10000, scoped, tag = 'output window, operand 0']
    #allocation4 [shape = 's32[2]{0}', space=sflag, size = 0x8, scoped, tag = 'scoped memory for basic_block.1']
    %15 = vsyncpa [#allocation4], 0
    %s16 = scalar_lea.sflag [#allocation4], 1
    %17 = vsyncpa %s16, 0
    loop: start=0, step=1, limit=4
    $region2: #{basic_block.1} parent=1 // loop_pre_header
      _
    $region3: #{basic_block.1} parent=1 // loop_header
      %s19 = sphi 0, %s23
      %p20 = scmp.ge.s32.totalorder %s19, 4
      %s29 = sphi 0, %s31
      %s32 = sphi 0, %s29
      %s33 = sphi 0, %s32
      %s49 = sphi 0, %s33
      %s53 = sphi 0, %s53
      %s55 = sphi 0, %s53
      %s56 = sphi 0, %s55
      %s70 = sphi 0, %s56
      %s74 = sphi 0, %s74
      %s76 = sphi 0, %s74
      %s77 = sphi 0, %s76
      %s91 = sphi 0, %s77
      %s95 = sphi 0, %s95
      %s97 = sphi 0, %s95
      %s98 = sphi 0, %s97
      %s112 = sphi 0, %s98
      %s116 = sphi 0, %s116
      %s118 = sphi 0, %s116
      %s119 = sphi 0, %s118
      %s133 = sphi 0, %s119
      %s137 = sphi 0, %s137
      %s139 = sphi 0, %s137
      %s140 = sphi 0, %s139
      %s154 = sphi 0, %s140
      %s158 = sphi 0, %s158
      %s160 = sphi 0, %s158
      %s161 = sphi 0, %s160
      %s175 = sphi 0, %s161
      %s179 = sphi 0, %s179
      %s181 = sphi 0, %s179
      %s182 = sphi 0, %s181
      %s196 = sphi 0, %s182
      %s200 = sphi 0, %s200
      %s202 = sphi 0, %s200
      %s203 = sphi 0, %s202
      %s217 = sphi 0, %s203
      %s221 = sphi 0, %s221
      %s223 = sphi 0, %s221
      %s224 = sphi 0, %s223
      %s238 = sphi 0, %s224
      %s244 = sphi 0, %s246
      %s247 = sphi 0, %s244
      %s248 = sphi 0, %s247
      %s264 = sphi 0, %s248
    $region4: #{basic_block.1} parent=1 // loop_header_branch
      %22 = sbr.rel (%p20) target = $region8
    $region5: #{basic_block.1} parent=1 // loop_body
      %s24 = ssub.s32 %s19, 1
      %s25 = ssub.s32 %s19, 2
      %s26 = sadd.s32 %s19, 1
      %s27 = ssub.s32 %s19, %s26
      %p28 = scmp.eq.s32.totalorder %s27, 0
      %s30 = sadd.s32 %s29, 1
      %s31 = scalar_select %p28, %s29, %s30
      %p34 = pneg %p28
      %p35 = scmp.eq.s32.totalorder %s19, 1
      %p36 = por %p34, %p35
      %p37 = scmp.ne.s32.totalorder %s29, %s32
      %p38 = scmp.eq.s32.totalorder %s19, 0
      %p39 = por %p37, %p38
      %p40 = scmp.ne.s32.totalorder %s29, %s32
      %p41 = scmp.eq.s32.totalorder %s24, 1
      %p42 = por %p40, %p41
      %p43 = scmp.ne.s32.totalorder %s32, %s33
      %p44 = scmp.eq.s32.totalorder %s24, 0
      %p45 = por %p43, %p44
      %p46 = scmp.ne.s32.totalorder %s32, %s33
      %p47 = scmp.eq.s32.totalorder %s25, 1
      %p48 = por %p46, %p47
      %p50 = scmp.ne.s32.totalorder %s33, %s49
      %p51 = scmp.eq.s32.totalorder %s25, 0
      %p52 = por %p50, %p51
      %s54 = sadd.s32 %s53, 1
      %p57 = scmp.eq.s32.totalorder %s19, 1
      %p58 = scmp.ne.s32.totalorder %s53, %s55
      %p59 = scmp.eq.s32.totalorder %s19, 0
      %p60 = por %p58, %p59
      %p61 = scmp.ne.s32.totalorder %s53, %s55
      %p62 = scmp.eq.s32.totalorder %s24, 1
      %p63 = por %p61, %p62
      %p64 = scmp.ne.s32.totalorder %s55, %s56
      %p65 = scmp.eq.s32.totalorder %s24, 0
      %p66 = por %p64, %p65
      %p67 = scmp.ne.s32.totalorder %s55, %s56
      %p68 = scmp.eq.s32.totalorder %s25, 1
      %p69 = por %p67, %p68
      %p71 = scmp.ne.s32.totalorder %s56, %s70
      %p72 = scmp.eq.s32.totalorder %s25, 0
      %p73 = por %p71, %p72
      %s75 = sadd.s32 %s74, 1
      %p78 = scmp.eq.s32.totalorder %s19, 1
      %p79 = scmp.ne.s32.totalorder %s74, %s76
      %p80 = scmp.eq.s32.totalorder %s19, 0
      %p81 = por %p79, %p80
      %p82 = scmp.ne.s32.totalorder %s74, %s76
      %p83 = scmp.eq.s32.totalorder %s24, 1
      %p84 = por %p82, %p83
      %p85 = scmp.ne.s32.totalorder %s76, %s77
      %p86 = scmp.eq.s32.totalorder %s24, 0
      %p87 = por %p85, %p86
      %p88 = scmp.ne.s32.totalorder %s76, %s77
      %p89 = scmp.eq.s32.totalorder %s25, 1
      %p90 = por %p88, %p89
      %p92 = scmp.ne.s32.totalorder %s77, %s91
      %p93 = scmp.eq.s32.totalorder %s25, 0
      %p94 = por %p92, %p93
      %s96 = sadd.s32 %s95, 1
      %p99 = scmp.eq.s32.totalorder %s19, 1
      %p100 = scmp.ne.s32.totalorder %s95, %s97
      %p101 = scmp.eq.s32.totalorder %s19, 0
      %p102 = por %p100, %p101
      %p103 = scmp.ne.s32.totalorder %s95, %s97
      %p104 = scmp.eq.s32.totalorder %s24, 1
      %p105 = por %p103, %p104
      %p106 = scmp.ne.s32.totalorder %s97, %s98
      %p107 = scmp.eq.s32.totalorder %s24, 0
      %p108 = por %p106, %p107
      %p109 = scmp.ne.s32.totalorder %s97, %s98
      %p110 = scmp.eq.s32.totalorder %s25, 1
      %p111 = por %p109, %p110
      %p113 = scmp.ne.s32.totalorder %s98, %s112
      %p114 = scmp.eq.s32.totalorder %s25, 0
      %p115 = por %p113, %p114
      %s117 = sadd.s32 %s116, 1
      %p120 = scmp.eq.s32.totalorder %s19, 1
      %p121 = scmp.ne.s32.totalorder %s116, %s118
      %p122 = scmp.eq.s32.totalorder %s19, 0
      %p123 = por %p121, %p122
      %p124 = scmp.ne.s32.totalorder %s116, %s118
      %p125 = scmp.eq.s32.totalorder %s24, 1
      %p126 = por %p124, %p125
      %p127 = scmp.ne.s32.totalorder %s118, %s119
      %p128 = scmp.eq.s32.totalorder %s24, 0
      %p129 = por %p127, %p128
      %p130 = scmp.ne.s32.totalorder %s118, %s119
      %p131 = scmp.eq.s32.totalorder %s25, 1
      %p132 = por %p130, %p131
      %p134 = scmp.ne.s32.totalorder %s119, %s133
      %p135 = scmp.eq.s32.totalorder %s25, 0
      %p136 = por %p134, %p135
      %s138 = sadd.s32 %s137, 1
      %p141 = scmp.eq.s32.totalorder %s19, 1
      %p142 = scmp.ne.s32.totalorder %s137, %s139
      %p143 = scmp.eq.s32.totalorder %s19, 0
      %p144 = por %p142, %p143
      %p145 = scmp.ne.s32.totalorder %s137, %s139
      %p146 = scmp.eq.s32.totalorder %s24, 1
      %p147 = por %p145, %p146
      %p148 = scmp.ne.s32.totalorder %s139, %s140
      %p149 = scmp.eq.s32.totalorder %s24, 0
      %p150 = por %p148, %p149
      %p151 = scmp.ne.s32.totalorder %s139, %s140
      %p152 = scmp.eq.s32.totalorder %s25, 1
      %p153 = por %p151, %p152
      %p155 = scmp.ne.s32.totalorder %s140, %s154
      %p156 = scmp.eq.s32.totalorder %s25, 0
      %p157 = por %p155, %p156
      %s159 = sadd.s32 %s158, 1
      %p162 = scmp.eq.s32.totalorder %s19, 1
      %p163 = scmp.ne.s32.totalorder %s158, %s160
      %p164 = scmp.eq.s32.totalorder %s19, 0
      %p165 = por %p163, %p164
      %p166 = scmp.ne.s32.totalorder %s158, %s160
      %p167 = scmp.eq.s32.totalorder %s24, 1
      %p168 = por %p166, %p167
      %p169 = scmp.ne.s32.totalorder %s160, %s161
      %p170 = scmp.eq.s32.totalorder %s24, 0
      %p171 = por %p169, %p170
      %p172 = scmp.ne.s32.totalorder %s160, %s161
      %p173 = scmp.eq.s32.totalorder %s25, 1
      %p174 = por %p172, %p173
      %p176 = scmp.ne.s32.totalorder %s161, %s175
      %p177 = scmp.eq.s32.totalorder %s25, 0
      %p178 = por %p176, %p177
      %s180 = sadd.s32 %s179, 1
      %p183 = scmp.eq.s32.totalorder %s19, 1
      %p184 = scmp.ne.s32.totalorder %s179, %s181
      %p185 = scmp.eq.s32.totalorder %s19, 0
      %p186 = por %p184, %p185
      %p187 = scmp.ne.s32.totalorder %s179, %s181
      %p188 = scmp.eq.s32.totalorder %s24, 1
      %p189 = por %p187, %p188
      %p190 = scmp.ne.s32.totalorder %s181, %s182
      %p191 = scmp.eq.s32.totalorder %s24, 0
      %p192 = por %p190, %p191
      %p193 = scmp.ne.s32.totalorder %s181, %s182
      %p194 = scmp.eq.s32.totalorder %s25, 1
      %p195 = por %p193, %p194
      %p197 = scmp.ne.s32.totalorder %s182, %s196
      %p198 = scmp.eq.s32.totalorder %s25, 0
      %p199 = por %p197, %p198
      %s201 = sadd.s32 %s200, 1
      %p204 = scmp.eq.s32.totalorder %s19, 1
      %p205 = scmp.ne.s32.totalorder %s200, %s202
      %p206 = scmp.eq.s32.totalorder %s19, 0
      %p207 = por %p205, %p206
      %p208 = scmp.ne.s32.totalorder %s200, %s202
      %p209 = scmp.eq.s32.totalorder %s24, 1
      %p210 = por %p208, %p209
      %p211 = scmp.ne.s32.totalorder %s202, %s203
      %p212 = scmp.eq.s32.totalorder %s24, 0
      %p213 = por %p211, %p212
      %p214 = scmp.ne.s32.totalorder %s202, %s203
      %p215 = scmp.eq.s32.totalorder %s25, 1
      %p216 = por %p214, %p215
      %p218 = scmp.ne.s32.totalorder %s203, %s217
      %p219 = scmp.eq.s32.totalorder %s25, 0
      %p220 = por %p218, %p219
      %s222 = sadd.s32 %s221, 1
      %p225 = scmp.eq.s32.totalorder %s19, 1
      %p226 = scmp.ne.s32.totalorder %s221, %s223
      %p227 = scmp.eq.s32.totalorder %s19, 0
      %p228 = por %p226, %p227
      %p229 = scmp.ne.s32.totalorder %s221, %s223
      %p230 = scmp.eq.s32.totalorder %s24, 1
      %p231 = por %p229, %p230
      %p232 = scmp.ne.s32.totalorder %s223, %s224
      %p233 = scmp.eq.s32.totalorder %s24, 0
      %p234 = por %p232, %p233
      %p235 = scmp.ne.s32.totalorder %s223, %s224
      %p236 = scmp.eq.s32.totalorder %s25, 1
      %p237 = por %p235, %p236
      %p239 = scmp.ne.s32.totalorder %s224, %s238
      %p240 = scmp.eq.s32.totalorder %s25, 0
      %p241 = por %p239, %p240
      %s242 = ssub.s32 %s19, %s26
      %p243 = scmp.eq.s32.totalorder %s242, 0
      %s245 = sadd.s32 %s244, 1
      %s246 = scalar_select %p243, %s244, %s245
      %p249 = pneg %p243
      %p250 = scmp.eq.s32.totalorder %s19, 1
      %p251 = por %p249, %p250
      %p252 = scmp.ne.s32.totalorder %s244, %s247
      %p253 = scmp.eq.s32.totalorder %s19, 0
      %p254 = por %p252, %p253
      %p255 = scmp.ne.s32.totalorder %s244, %s247
      %p256 = scmp.eq.s32.totalorder %s24, 1
      %p257 = por %p255, %p256
      %p258 = scmp.ne.s32.totalorder %s247, %s248
      %p259 = scmp.eq.s32.totalorder %s24, 0
      %p260 = por %p258, %p259
      %p261 = scmp.ne.s32.totalorder %s247, %s248
      %p262 = scmp.eq.s32.totalorder %s25, 1
      %p263 = por %p261, %p262
      %p265 = scmp.ne.s32.totalorder %s248, %s264
      %p266 = scmp.eq.s32.totalorder %s25, 0
      %p267 = por %p265, %p266
      %p268 = scmp.le.s32.totalorder 1, %s19
      %p269 = scmp.lt.s32.totalorder %s19, 3
      %p270 = pnand %p268, %p269
      %p271 = pneg %p270
      // Predicated region
      $region9: #{basic_block.1} parent=5 // pred_check
        _
      $region10: #{basic_block.1} parent=5 // pred_check_branch
        %273 = sbr.rel (%p270) target = $region12
      $region11: #{basic_block.1} parent=5 // pred_region
        %s274 = ssub.s32 %s19, 1
        // Predicated region
        $region13: #{basic_block.1} parent=11 // pred_check
          %p275 = pneg %p66
        $region14: #{basic_block.1} parent=11 // pred_check_branch
          %277 = sbr.rel (%p275) target = $region16
        $region15: #{basic_block.1} parent=11 // pred_region
          _
        $region16: #{basic_block.1} parent=11 // pred_fallthru
          _
        // Predicated region
        $region17: #{basic_block.1} parent=11 // pred_check
          %p278 = pneg %p87
        $region18: #{basic_block.1} parent=11 // pred_check_branch
          %280 = sbr.rel (%p278) target = $region20
        $region19: #{basic_block.1} parent=11 // pred_region
          _
        $region20: #{basic_block.1} parent=11 // pred_fallthru
          _
        // Predicated region
        $region21: #{basic_block.1} parent=11 // pred_check
          %p281 = pneg %p108
        $region22: #{basic_block.1} parent=11 // pred_check_branch
          %283 = sbr.rel (%p281) target = $region24
        $region23: #{basic_block.1} parent=11 // pred_region
          _
        $region24: #{basic_block.1} parent=11 // pred_fallthru
          _
        // Predicated region
        $region25: #{basic_block.1} parent=11 // pred_check
          %p284 = pneg %p129
        $region26: #{basic_block.1} parent=11 // pred_check_branch
          %286 = sbr.rel (%p284) target = $region28
        $region27: #{basic_block.1} parent=11 // pred_region
          _
        $region28: #{basic_block.1} parent=11 // pred_fallthru
          _
        // Predicated region
        $region29: #{basic_block.1} parent=11 // pred_check
          %p287 = pneg %p150
        $region30: #{basic_block.1} parent=11 // pred_check_branch
          %289 = sbr.rel (%p287) target = $region32
        $region31: #{basic_block.1} parent=11 // pred_region
          _
        $region32: #{basic_block.1} parent=11 // pred_fallthru
          _
        // Predicated region
        $region33: #{basic_block.1} parent=11 // pred_check
          %p290 = pneg %p171
        $region34: #{basic_block.1} parent=11 // pred_check_branch
          %292 = sbr.rel (%p290) target = $region36
        $region35: #{basic_block.1} parent=11 // pred_region
          _
        $region36: #{basic_block.1} parent=11 // pred_fallthru
          _
        // Predicated region
        $region37: #{basic_block.1} parent=11 // pred_check
          %p293 = pneg %p192
        $region38: #{basic_block.1} parent=11 // pred_check_branch
          %295 = sbr.rel (%p293) target = $region40
        $region39: #{basic_block.1} parent=11 // pred_region
          _
        $region40: #{basic_block.1} parent=11 // pred_fallthru
          _
        // Predicated region
        $region41: #{basic_block.1} parent=11 // pred_check
          %p296 = pneg %p213
        $region42: #{basic_block.1} parent=11 // pred_check_branch
          %298 = sbr.rel (%p296) target = $region44
        $region43: #{basic_block.1} parent=11 // pred_region
          _
        $region44: #{basic_block.1} parent=11 // pred_fallthru
          _
        // Predicated region
        $region45: #{basic_block.1} parent=11 // pred_check
          %p299 = pneg %p234
        $region46: #{basic_block.1} parent=11 // pred_check_branch
          %301 = sbr.rel (%p299) target = $region48
        $region47: #{basic_block.1} parent=11 // pred_region
          _
        $region48: #{basic_block.1} parent=11 // pred_fallthru
          _
      $region12: #{basic_block.1} parent=5 // pred_fallthru
        _
      %p302 = scmp.lt.s32.totalorder %s19, 2
      // Predicated region
      $region49: #{basic_block.1} parent=5 // pred_check
        %p303 = pneg %p302
      $region50: #{basic_block.1} parent=5 // pred_check_branch
        %305 = sbr.rel (%p303) target = $region52
      $region51: #{basic_block.1} parent=5 // pred_region
        // Predicated region
        $region53: #{basic_block.1} parent=51 // pred_check
          %p306 = pneg %p39
        $region54: #{basic_block.1} parent=51 // pred_check_branch
          %308 = sbr.rel (%p306) target = $region56
        $region55: #{basic_block.1} parent=51 // pred_region
          %s309 = smul.u32 4, %s19
          %p310 = scmp.lt.s32.totalorder %s309, 7
          %s311 = scalar_select %p310, %s309, 7
          %s312 = smul.addr %s311, 18
          %s313 = smul.addr %s312, 4
          %s314 = scalar_lea.vmem %s0, %s313
          %s315 = smul.u32 4, %s19
        $region56: #{basic_block.1} parent=51 // pred_fallthru
          _
      $region52: #{basic_block.1} parent=5 // pred_fallthru
        _
      %p316 = scmp.le.s32.totalorder 1, %s19
      %p317 = scmp.lt.s32.totalorder %s19, 3
      %p318 = pnand %p316, %p317
      %p319 = pneg %p318
      // Predicated region
      $region57: #{basic_block.1} parent=5 // pred_check
        _
      $region58: #{basic_block.1} parent=5 // pred_check_branch
        %321 = sbr.rel (%p318) target = $region60
      $region59: #{basic_block.1} parent=5 // pred_region
        %s322 = ssub.s32 %s19, 1
        %s323 = smul.u32 4, %s24
        %p324 = scmp.lt.s32.totalorder %s323, 7
        %s325 = scalar_select %p324, %s323, 7
        %s326 = smul.addr %s325, 18
        %s327 = smul.addr %s326, 4
        %s328 = scalar_lea.vmem %s0, %s327
        %p329 = pneg %p45
        %p330 = pneg %p42
        %p331 = pneg %p66
        %p332 = pneg %p63
        %p333 = pneg %p87
        %p334 = pneg %p84
        %p335 = pneg %p108
        %p336 = pneg %p105
        %p337 = pneg %p129
        %p338 = pneg %p126
        %p339 = pneg %p150
        %p340 = pneg %p147
        %p341 = pneg %p171
        %p342 = pneg %p168
        %p343 = pneg %p192
        %p344 = pneg %p189
        %p345 = pneg %p213
        %p346 = pneg %p210
        %p347 = pneg %p234
        %p348 = pneg %p231
        %p349 = pneg %p260
        %p350 = pneg %p257
        %s351 = sand.u32 %s247, 1
        %s352 = scalar_lea.sflag [#allocation4], %s351
        %s353 = sand.u32 %s247, 1
        %s354 = smul.addr %s353, 64
        %s355 = scalar_lea.vmem [#allocation3], %s354
        %s356 = smul.u32 4, %s24
        %p357 = scmp.lt.s32.totalorder %s356, 7
        %s358 = scalar_select %p357, %s356, 7
        %s359 = smul.addr %s358, 18
        %s360 = smul.addr %s359, 4
        %s361 = scalar_lea.vmem %s0, %s360
        %s362 = smul.u32 4, %s24
        %v364 = vld [vmem:[%s361] sm:$0xf]
        %v365 = vld [vmem:[%s361 + $0x8] sm:$0xf]
        %v366 = vld [vmem:[%s361 + $0x10] sm:$0xf]
        %v367 = vld [vmem:[%s361 + $0x18] sm:$0xf]
        %v368 = vld [vmem:[%s361 + $0x20] sm:$0xf]
        %v369 = vld [vmem:[%s361 + $0x28] sm:$0xf]
        %v370 = vld [vmem:[%s361 + $0x30] sm:$0xf]
        %v371 = vld [vmem:[%s361 + $0x38] sm:$0xf]
        %v372 = vld [vmem:[%s1] sm:$0xf]
        %v373 = vld [vmem:[%s1 + $0x4] sm:$0xf]
        %v374 = vld [vmem:[%s1 + $0x8] sm:$0xf]
        %v375 = vld [vmem:[%s1 + $0xc] sm:$0xf]
        %v376 = vld [vmem:[%s1 + $0x10] sm:$0xf]
        %v377 = vld [vmem:[%s1 + $0x14] sm:$0xf]
        %v378 = vld [vmem:[%s1 + $0x18] sm:$0xf]
        %v379 = vld [vmem:[%s1 + $0x1c] sm:$0xf]
        %v380 = vld [vmem:[%s1 + $0x20] sm:$0xf]
        %v381 = vld [vmem:[%s1 + $0x24] sm:$0xf]
        %v382 = vld [vmem:[%s1 + $0x28] sm:$0xf]
        %v383 = vld [vmem:[%s1 + $0x2c] sm:$0xf]
        %v384 = vld [vmem:[%s1 + $0x30] sm:$0xf]
        %v385 = vld [vmem:[%s1 + $0x34] sm:$0xf]
        %v386 = vld [vmem:[%s1 + $0x38] sm:$0xf]
        %v387 = vld [vmem:[%s1 + $0x3c] sm:$0xf]
        %s388 = scalar_lea.vmem %s361, 72
        %v389 = vld [vmem:[%s388] sm:$0xf]
        %v390 = vld [vmem:[%s388 + $0x8] sm:$0xf]
        %v391 = vld [vmem:[%s388 + $0x10] sm:$0xf]
        %v392 = vld [vmem:[%s388 + $0x18] sm:$0xf]
        %v393 = vld [vmem:[%s388 + $0x20] sm:$0xf]
        %v394 = vld [vmem:[%s388 + $0x28] sm:$0xf]
        %v395 = vld [vmem:[%s388 + $0x30] sm:$0xf]
        %v396 = vld [vmem:[%s388 + $0x38] sm:$0xf]
        %s397 = scalar_lea.vmem %s1, 64
        %v398 = vld [vmem:[%s397] sm:$0xf]
        %v399 = vld [vmem:[%s397 + $0x4] sm:$0xf]
        %v400 = vld [vmem:[%s397 + $0x8] sm:$0xf]
        %v401 = vld [vmem:[%s397 + $0xc] sm:$0xf]
        %v402 = vld [vmem:[%s397 + $0x10] sm:$0xf]
        %v403 = vld [vmem:[%s397 + $0x14] sm:$0xf]
        %v404 = vld [vmem:[%s397 + $0x18] sm:$0xf]
        %v405 = vld [vmem:[%s397 + $0x1c] sm:$0xf]
        %v406 = vld [vmem:[%s397 + $0x20] sm:$0xf]
        %v407 = vld [vmem:[%s397 + $0x24] sm:$0xf]
        %v408 = vld [vmem:[%s397 + $0x28] sm:$0xf]
        %v409 = vld [vmem:[%s397 + $0x2c] sm:$0xf]
        %v410 = vld [vmem:[%s397 + $0x30] sm:$0xf]
        %v411 = vld [vmem:[%s397 + $0x34] sm:$0xf]
        %v412 = vld [vmem:[%s397 + $0x38] sm:$0xf]
        %v413 = vld [vmem:[%s397 + $0x3c] sm:$0xf]
        %v422 = vunpack.c.l.b16 %v389
        %v423 = vunpack.c.l.b16 %v390
        %v424 = vunpack.c.l.b16 %v391
        %v425 = vunpack.c.l.b16 %v392
        %v426 = vunpack.c.l.b16 %v393
        %v427 = vunpack.c.l.b16 %v394
        %v428 = vunpack.c.l.b16 %v395
        %v429 = vunpack.c.l.b16 %v396
        %v430 = vpack.c.b16 %v423, %v422
        %v431 = vpack.c.b16 %v425, %v424
        %v432 = vpack.c.b16 %v427, %v426
        %v433 = vpack.c.b16 %v429, %v428
        %v454 = vunpack.c.l.b16 %v398
        %v455 = vunpack.c.l.b16 %v399
        %v456 = vunpack.c.l.b16 %v400
        %v457 = vunpack.c.l.b16 %v401
        %v458 = vunpack.c.l.b16 %v402
        %v459 = vunpack.c.l.b16 %v403
        %v460 = vunpack.c.l.b16 %v404
        %v461 = vunpack.c.l.b16 %v405
        %v462 = vunpack.c.l.b16 %v406
        %v463 = vunpack.c.l.b16 %v407
        %v464 = vunpack.c.l.b16 %v408
        %v465 = vunpack.c.l.b16 %v409
        %v466 = vunpack.c.l.b16 %v410
        %v467 = vunpack.c.l.b16 %v411
        %v468 = vunpack.c.l.b16 %v412
        %v469 = vunpack.c.l.b16 %v413
        %v470 = vpack.c.b16 %v455, %v454
        %v471 = vpack.c.b16 %v457, %v456
        %v472 = vpack.c.b16 %v459, %v458
        %v473 = vpack.c.b16 %v461, %v460
        %v474 = vpack.c.b16 %v463, %v462
        %v475 = vpack.c.b16 %v465, %v464
        %v476 = vpack.c.b16 %v467, %v466
        %v477 = vpack.c.b16 %v469, %v468
        %486 = vmatprep.subr.bf16.mxu0 0
        %487 = vmatpush1.bf16.msra.mxu0 %v477
        %488 = vmatprep.subr.bf16.mxu0 0
        %489 = vmatpush1.bf16.msra.mxu0 %v476
        %490 = vmatprep.subr.bf16.mxu0 0
        %491 = vmatpush1.bf16.msra.mxu0 %v475
        %492 = vmatprep.subr.bf16.mxu0 0
        %493 = vmatpush1.bf16.msra.mxu0 %v474
        %494 = vmatprep.subr.bf16.mxu0 0
        %495 = vmatpush1.bf16.msra.mxu0 %v473
        %496 = vmatprep.subr.bf16.mxu0 0
        %497 = vmatpush1.bf16.msra.mxu0 %v472
        %498 = vmatprep.subr.bf16.mxu0 0
        %499 = vmatpush1.bf16.msra.mxu0 %v471
        %500 = vmatprep.subr.bf16.mxu0 0
        %501 = vmatpush1.bf16.msra.mxu0 %v470
        %502 = vmatprep.subr.bf16.mxu0 0
        %503 = vmatpush2.bf16.msra.mxu0 0
        %504 = vmatprep.subr.bf16.mxu0 0
        %505 = vmatpush2.bf16.msra.mxu0 0
        %506 = vmatprep.subr.bf16.mxu0 0
        %507 = vmatpush2.bf16.msra.mxu0 0
        %508 = vmatprep.subr.bf16.mxu0 0
        %509 = vmatpush2.bf16.msra.mxu0 0
        %510 = vmatprep.subr.bf16.mxu0 0
        %511 = vmatpush2.bf16.msra.mxu0 0
        %512 = vmatprep.subr.bf16.mxu0 0
        %513 = vmatpush2.bf16.msra.mxu0 0
        %514 = vmatprep.subr.bf16.mxu0 0
        %515 = vmatpush2.bf16.msra.mxu0 0
        %516 = vmatprep.subr.bf16.mxu0 0
        %517 = vmatpush2.bf16.msra.mxu0 0
        %518 = vmatprep.mubr.bf16.mxu0 0
        %519 = vmatmul.mubr.bf16.gmra.mxu0 %v430
        %v520 = vpop.f32.mrf.mxu0
        %v521 = vadd.f32 0.0, %v520
        %v522 = vpop.f32.mrf.mxu0
        %v523 = vpop.f32.mrf.mxu0
        %v524 = vadd.f32 0.0, %v523
        %v525 = vpop.f32.mrf.mxu0
        %526 = vmatprep.mubr.bf16.mxu0 0
        %527 = vmatmul.mubr.bf16.gmra.mxu0 %v431
        %v528 = vpop.f32.mrf.mxu0
        %v529 = vadd.f32 0.0, %v528
        %v530 = vpop.f32.mrf.mxu0
        %v531 = vpop.f32.mrf.mxu0
        %v532 = vadd.f32 0.0, %v531
        %v533 = vpop.f32.mrf.mxu0
        %534 = vmatprep.mubr.bf16.mxu0 0
        %535 = vmatmul.mubr.bf16.gmra.mxu0 %v432
        %v536 = vpop.f32.mrf.mxu0
        %v537 = vadd.f32 0.0, %v536
        %v538 = vpop.f32.mrf.mxu0
        %v539 = vpop.f32.mrf.mxu0
        %v540 = vadd.f32 0.0, %v539
        %v541 = vpop.f32.mrf.mxu0
        %542 = vmatprep.mubr.bf16.mxu0 0
        %543 = vmatmul.mubr.bf16.gmra.mxu0 %v433
        %v544 = vpop.f32.mrf.mxu0
        %v545 = vadd.f32 0.0, %v544
        %v546 = vpop.f32.mrf.mxu0
        %v547 = vpop.f32.mrf.mxu0
        %v548 = vadd.f32 0.0, %v547
        %v549 = vpop.f32.mrf.mxu0
        %550 = vdwg.mxu0
        %v559 = vunpack.c.l.b16 %v364
        %v560 = vunpack.c.l.b16 %v365
        %v561 = vunpack.c.l.b16 %v366
        %v562 = vunpack.c.l.b16 %v367
        %v563 = vunpack.c.l.b16 %v368
        %v564 = vunpack.c.l.b16 %v369
        %v565 = vunpack.c.l.b16 %v370
        %v566 = vunpack.c.l.b16 %v371
        %v567 = vpack.c.b16 %v560, %v559
        %v568 = vpack.c.b16 %v562, %v561
        %v569 = vpack.c.b16 %v564, %v563
        %v570 = vpack.c.b16 %v566, %v565
        %v591 = vunpack.c.l.b16 %v372
        %v592 = vunpack.c.l.b16 %v373
        %v593 = vunpack.c.l.b16 %v374
        %v594 = vunpack.c.l.b16 %v375
        %v595 = vunpack.c.l.b16 %v376
        %v596 = vunpack.c.l.b16 %v377
        %v597 = vunpack.c.l.b16 %v378
        %v598 = vunpack.c.l.b16 %v379
        %v599 = vunpack.c.l.b16 %v380
        %v600 = vunpack.c.l.b16 %v381
        %v601 = vunpack.c.l.b16 %v382
        %v602 = vunpack.c.l.b16 %v383
        %v603 = vunpack.c.l.b16 %v384
        %v604 = vunpack.c.l.b16 %v385
        %v605 = vunpack.c.l.b16 %v386
        %v606 = vunpack.c.l.b16 %v387
        %v607 = vpack.c.b16 %v592, %v591
        %v608 = vpack.c.b16 %v594, %v593
        %v609 = vpack.c.b16 %v596, %v595
        %v610 = vpack.c.b16 %v598, %v597
        %v611 = vpack.c.b16 %v600, %v599
        %v612 = vpack.c.b16 %v602, %v601
        %v613 = vpack.c.b16 %v604, %v603
        %v614 = vpack.c.b16 %v606, %v605
        %623 = vmatprep.subr.bf16.mxu0 0
        %624 = vmatpush1.bf16.msra.mxu0 %v614
        %625 = vmatprep.subr.bf16.mxu0 0
        %626 = vmatpush1.bf16.msra.mxu0 %v613
        %627 = vmatprep.subr.bf16.mxu0 0
        %628 = vmatpush1.bf16.msra.mxu0 %v612
        %629 = vmatprep.subr.bf16.mxu0 0
        %630 = vmatpush1.bf16.msra.mxu0 %v611
        %631 = vmatprep.subr.bf16.mxu0 0
        %632 = vmatpush1.bf16.msra.mxu0 %v610
        %633 = vmatprep.subr.bf16.mxu0 0
        %634 = vmatpush1.bf16.msra.mxu0 %v609
        %635 = vmatprep.subr.bf16.mxu0 0
        %636 = vmatpush1.bf16.msra.mxu0 %v608
        %637 = vmatprep.subr.bf16.mxu0 0
        %638 = vmatpush1.bf16.msra.mxu0 %v607
        %639 = vmatprep.subr.bf16.mxu0 0
        %640 = vmatpush2.bf16.msra.mxu0 0
        %641 = vmatprep.subr.bf16.mxu0 0
        %642 = vmatpush2.bf16.msra.mxu0 0
        %643 = vmatprep.subr.bf16.mxu0 0
        %644 = vmatpush2.bf16.msra.mxu0 0
        %645 = vmatprep.subr.bf16.mxu0 0
        %646 = vmatpush2.bf16.msra.mxu0 0
        %647 = vmatprep.subr.bf16.mxu0 0
        %648 = vmatpush2.bf16.msra.mxu0 0
        %649 = vmatprep.subr.bf16.mxu0 0
        %650 = vmatpush2.bf16.msra.mxu0 0
        %651 = vmatprep.subr.bf16.mxu0 0
        %652 = vmatpush2.bf16.msra.mxu0 0
        %653 = vmatprep.subr.bf16.mxu0 0
        %654 = vmatpush2.bf16.msra.mxu0 0
        %655 = vmatprep.mubr.bf16.mxu0 0
        %656 = vmatmul.mubr.bf16.gmra.mxu0 %v567
        %v657 = vpop.f32.mrf.mxu0
        %v658 = vadd.f32 %v521, %v657
        %v659 = vpop.f32.mrf.mxu0
        %v660 = vpop.f32.mrf.mxu0
        %v661 = vadd.f32 %v524, %v660
        %v662 = vpop.f32.mrf.mxu0
        %663 = vmatprep.mubr.bf16.mxu0 0
        %664 = vmatmul.mubr.bf16.gmra.mxu0 %v568
        %v665 = vpop.f32.mrf.mxu0
        %v666 = vadd.f32 %v529, %v665
        %v667 = vpop.f32.mrf.mxu0
        %v668 = vpop.f32.mrf.mxu0
        %v669 = vadd.f32 %v532, %v668
        %v670 = vpop.f32.mrf.mxu0
        %671 = vmatprep.mubr.bf16.mxu0 0
        %672 = vmatmul.mubr.bf16.gmra.mxu0 %v569
        %v673 = vpop.f32.mrf.mxu0
        %v674 = vadd.f32 %v537, %v673
        %v675 = vpop.f32.mrf.mxu0
        %v676 = vpop.f32.mrf.mxu0
        %v677 = vadd.f32 %v540, %v676
        %v678 = vpop.f32.mrf.mxu0
        %679 = vmatprep.mubr.bf16.mxu0 0
        %680 = vmatmul.mubr.bf16.gmra.mxu0 %v570
        %v681 = vpop.f32.mrf.mxu0
        %v682 = vadd.f32 %v545, %v681
        %v683 = vpop.f32.mrf.mxu0
        %v684 = vpop.f32.mrf.mxu0
        %v685 = vadd.f32 %v548, %v684
        %v686 = vpop.f32.mrf.mxu0
        %687 = vdwg.mxu0
        %v688 = vld [vmem:[%s361] sm:$0xf]
        %v689 = vld [vmem:[%s361 + $0x4] sm:$0x1]
        %v690 = vld [vmem:[%s361 + $0x8] sm:$0xf]
        %v691 = vld [vmem:[%s361 + $0xc] sm:$0x1]
        %v692 = vld [vmem:[%s361 + $0x10] sm:$0xf]
        %v693 = vld [vmem:[%s361 + $0x14] sm:$0x1]
        %v694 = vld [vmem:[%s361 + $0x18] sm:$0xf]
        %v695 = vld [vmem:[%s361 + $0x1c] sm:$0x1]
        %v696 = vld [vmem:[%s361 + $0x20] sm:$0xf]
        %v697 = vld [vmem:[%s361 + $0x24] sm:$0x1]
        %v698 = vld [vmem:[%s361 + $0x28] sm:$0xf]
        %v699 = vld [vmem:[%s361 + $0x2c] sm:$0x1]
        %v700 = vld [vmem:[%s361 + $0x30] sm:$0xf]
        %v701 = vld [vmem:[%s361 + $0x34] sm:$0x1]
        %v702 = vld [vmem:[%s361 + $0x38] sm:$0xf]
        %v703 = vld [vmem:[%s361 + $0x3c] sm:$0x1]
        %vm704 = vsmask.f32 3328
        %vm705 = vsmask.f32 7440
        %vm706 = vmor %vm704, %vm705
        %v708 = vshrl.u32 %v688, 16
        %v710 = vrot.slane %v708, 4
        %v711 = vshll.u32 %v688, 16
        %v713 = vrot.slane %v711, 5
        %v714 = vor.u32 %v710, %v713
        %v715 = vrot.slane %v714, 4
        %v717 = vshll.u32 %v689, 16
        %v719 = vrot.slane %v717, 5
        %v720 = vsel %vm706, %v715, %v719
        %v722 = vshrl.u32 %v690, 16
        %v724 = vrot.slane %v722, 4
        %v725 = vshll.u32 %v690, 16
        %v727 = vrot.slane %v725, 5
        %v728 = vor.u32 %v724, %v727
        %v729 = vrot.slane %v728, 4
        %v731 = vshll.u32 %v691, 16
        %v733 = vrot.slane %v731, 5
        %v734 = vsel %vm706, %v729, %v733
        %v736 = vshrl.u32 %v692, 16
        %v738 = vrot.slane %v736, 4
        %v739 = vshll.u32 %v692, 16
        %v741 = vrot.slane %v739, 5
        %v742 = vor.u32 %v738, %v741
        %v743 = vrot.slane %v742, 4
        %v745 = vshll.u32 %v693, 16
        %v747 = vrot.slane %v745, 5
        %v748 = vsel %vm706, %v743, %v747
        %v750 = vshrl.u32 %v694, 16
        %v752 = vrot.slane %v750, 4
        %v753 = vshll.u32 %v694, 16
        %v755 = vrot.slane %v753, 5
        %v756 = vor.u32 %v752, %v755
        %v757 = vrot.slane %v756, 4
        %v759 = vshll.u32 %v695, 16
        %v761 = vrot.slane %v759, 5
        %v762 = vsel %vm706, %v757, %v761
        %v764 = vshrl.u32 %v696, 16
        %v766 = vrot.slane %v764, 4
        %v767 = vshll.u32 %v696, 16
        %v769 = vrot.slane %v767, 5
        %v770 = vor.u32 %v766, %v769
        %v771 = vrot.slane %v770, 4
        %v773 = vshll.u32 %v697, 16
        %v775 = vrot.slane %v773, 5
        %v776 = vsel %vm706, %v771, %v775
        %v778 = vshrl.u32 %v698, 16
        %v780 = vrot.slane %v778, 4
        %v781 = vshll.u32 %v698, 16
        %v783 = vrot.slane %v781, 5
        %v784 = vor.u32 %v780, %v783
        %v785 = vrot.slane %v784, 4
        %v787 = vshll.u32 %v699, 16
        %v789 = vrot.slane %v787, 5
        %v790 = vsel %vm706, %v785, %v789
        %v792 = vshrl.u32 %v700, 16
        %v794 = vrot.slane %v792, 4
        %v795 = vshll.u32 %v700, 16
        %v797 = vrot.slane %v795, 5
        %v798 = vor.u32 %v794, %v797
        %v799 = vrot.slane %v798, 4
        %v801 = vshll.u32 %v701, 16
        %v803 = vrot.slane %v801, 5
        %v804 = vsel %vm706, %v799, %v803
        %v806 = vshrl.u32 %v702, 16
        %v808 = vrot.slane %v806, 4
        %v809 = vshll.u32 %v702, 16
        %v811 = vrot.slane %v809, 5
        %v812 = vor.u32 %v808, %v811
        %v813 = vrot.slane %v812, 4
        %v815 = vshll.u32 %v703, 16
        %v817 = vrot.slane %v815, 5
        %v818 = vsel %vm706, %v813, %v817
        %s819 = scalar_lea.vmem %s1, 128
        %v820 = vld [vmem:[%s819] sm:$0xf]
        %v821 = vld [vmem:[%s819 + $0x4] sm:$0xf]
        %v822 = vld [vmem:[%s819 + $0x8] sm:$0xf]
        %v823 = vld [vmem:[%s819 + $0xc] sm:$0xf]
        %v824 = vld [vmem:[%s819 + $0x10] sm:$0xf]
        %v825 = vld [vmem:[%s819 + $0x14] sm:$0xf]
        %v826 = vld [vmem:[%s819 + $0x18] sm:$0xf]
        %v827 = vld [vmem:[%s819 + $0x1c] sm:$0xf]
        %v828 = vld [vmem:[%s819 + $0x20] sm:$0xf]
        %v829 = vld [vmem:[%s819 + $0x24] sm:$0xf]
        %v830 = vld [vmem:[%s819 + $0x28] sm:$0xf]
        %v831 = vld [vmem:[%s819 + $0x2c] sm:$0xf]
        %v832 = vld [vmem:[%s819 + $0x30] sm:$0xf]
        %v833 = vld [vmem:[%s819 + $0x34] sm:$0xf]
        %v834 = vld [vmem:[%s819 + $0x38] sm:$0xf]
        %v835 = vld [vmem:[%s819 + $0x3c] sm:$0xf]
        %v836 = vunpack.c.l.b16 %v720
        %v837 = vunpack.c.l.b16 %v734
        %v838 = vunpack.c.l.b16 %v748
        %v839 = vunpack.c.l.b16 %v762
        %v840 = vunpack.c.l.b16 %v776
        %v841 = vunpack.c.l.b16 %v790
        %v842 = vunpack.c.l.b16 %v804
        %v843 = vunpack.c.l.b16 %v818
        %v844 = vpack.c.b16 %v837, %v836
        %v845 = vpack.c.b16 %v839, %v838
        %v846 = vpack.c.b16 %v841, %v840
        %v847 = vpack.c.b16 %v843, %v842
        %v868 = vunpack.c.l.b16 %v820
        %v869 = vunpack.c.l.b16 %v821
        %v870 = vunpack.c.l.b16 %v822
        %v871 = vunpack.c.l.b16 %v823
        %v872 = vunpack.c.l.b16 %v824
        %v873 = vunpack.c.l.b16 %v825
        %v874 = vunpack.c.l.b16 %v826
        %v875 = vunpack.c.l.b16 %v827
        %v876 = vunpack.c.l.b16 %v828
        %v877 = vunpack.c.l.b16 %v829
        %v878 = vunpack.c.l.b16 %v830
        %v879 = vunpack.c.l.b16 %v831
        %v880 = vunpack.c.l.b16 %v832
        %v881 = vunpack.c.l.b16 %v833
        %v882 = vunpack.c.l.b16 %v834
        %v883 = vunpack.c.l.b16 %v835
        %v884 = vpack.c.b16 %v869, %v868
        %v885 = vpack.c.b16 %v871, %v870
        %v886 = vpack.c.b16 %v873, %v872
        %v887 = vpack.c.b16 %v875, %v874
        %v888 = vpack.c.b16 %v877, %v876
        %v889 = vpack.c.b16 %v879, %v878
        %v890 = vpack.c.b16 %v881, %v880
        %v891 = vpack.c.b16 %v883, %v882
        %900 = vmatprep.subr.bf16.mxu0 0
        %901 = vmatpush1.bf16.msra.mxu0 %v891
        %902 = vmatprep.subr.bf16.mxu0 0
        %903 = vmatpush1.bf16.msra.mxu0 %v890
        %904 = vmatprep.subr.bf16.mxu0 0
        %905 = vmatpush1.bf16.msra.mxu0 %v889
        %906 = vmatprep.subr.bf16.mxu0 0
        %907 = vmatpush1.bf16.msra.mxu0 %v888
        %908 = vmatprep.subr.bf16.mxu0 0
        %909 = vmatpush1.bf16.msra.mxu0 %v887
        %910 = vmatprep.subr.bf16.mxu0 0
        %911 = vmatpush1.bf16.msra.mxu0 %v886
        %912 = vmatprep.subr.bf16.mxu0 0
        %913 = vmatpush1.bf16.msra.mxu0 %v885
        %914 = vmatprep.subr.bf16.mxu0 0
        %915 = vmatpush1.bf16.msra.mxu0 %v884
        %916 = vmatprep.subr.bf16.mxu0 0
        %917 = vmatpush2.bf16.msra.mxu0 0
        %918 = vmatprep.subr.bf16.mxu0 0
        %919 = vmatpush2.bf16.msra.mxu0 0
        %920 = vmatprep.subr.bf16.mxu0 0
        %921 = vmatpush2.bf16.msra.mxu0 0
        %922 = vmatprep.subr.bf16.mxu0 0
        %923 = vmatpush2.bf16.msra.mxu0 0
        %924 = vmatprep.subr.bf16.mxu0 0
        %925 = vmatpush2.bf16.msra.mxu0 0
        %926 = vmatprep.subr.bf16.mxu0 0
        %927 = vmatpush2.bf16.msra.mxu0 0
        %928 = vmatprep.subr.bf16.mxu0 0
        %929 = vmatpush2.bf16.msra.mxu0 0
        %930 = vmatprep.subr.bf16.mxu0 0
        %931 = vmatpush2.bf16.msra.mxu0 0
        %932 = vmatprep.mubr.bf16.mxu0 0
        %933 = vmatmul.mubr.bf16.gmra.mxu0 %v844
        %v934 = vpop.f32.mrf.mxu0
        %v935 = vadd.f32 0.0, %v934
        %v936 = vpop.f32.mrf.mxu0
        %v937 = vpop.f32.mrf.mxu0
        %v938 = vadd.f32 0.0, %v937
        %v939 = vpop.f32.mrf.mxu0
        %940 = vmatprep.mubr.bf16.mxu0 0
        %941 = vmatmul.mubr.bf16.gmra.mxu0 %v845
        %v942 = vpop.f32.mrf.mxu0
        %v943 = vadd.f32 0.0, %v942
        %v944 = vpop.f32.mrf.mxu0
        %v945 = vpop.f32.mrf.mxu0
        %v946 = vadd.f32 0.0, %v945
        %v947 = vpop.f32.mrf.mxu0
        %948 = vmatprep.mubr.bf16.mxu0 0
        %949 = vmatmul.mubr.bf16.gmra.mxu0 %v846
        %v950 = vpop.f32.mrf.mxu0
        %v951 = vadd.f32 0.0, %v950
        %v952 = vpop.f32.mrf.mxu0
        %v953 = vpop.f32.mrf.mxu0
        %v954 = vadd.f32 0.0, %v953
        %v955 = vpop.f32.mrf.mxu0
        %956 = vmatprep.mubr.bf16.mxu0 0
        %957 = vmatmul.mubr.bf16.gmra.mxu0 %v847
        %v958 = vpop.f32.mrf.mxu0
        %v959 = vadd.f32 0.0, %v958
        %v960 = vpop.f32.mrf.mxu0
        %v961 = vpop.f32.mrf.mxu0
        %v962 = vadd.f32 0.0, %v961
        %v963 = vpop.f32.mrf.mxu0
        %964 = vdwg.mxu0
        %v965 = vadd.f32 %v658, %v935
        %v966 = vadd.f32 %v661, %v938
        %v967 = vadd.f32 %v666, %v943
        %v968 = vadd.f32 %v669, %v946
        %v969 = vadd.f32 %v674, %v951
        %v970 = vadd.f32 %v677, %v954
        %v971 = vadd.f32 %v682, %v959
        %v972 = vadd.f32 %v685, %v962
        %s973 = scalar_lea.vmem %s361, 144
        %v974 = vld [vmem:[%s973] sm:$0xf]
        %v975 = vld [vmem:[%s973 + $0x8] sm:$0xf]
        %v976 = vld [vmem:[%s973 + $0x10] sm:$0xf]
        %v977 = vld [vmem:[%s973 + $0x18] sm:$0xf]
        %v978 = vld [vmem:[%s973 + $0x20] sm:$0xf]
        %v979 = vld [vmem:[%s973 + $0x28] sm:$0xf]
        %v980 = vld [vmem:[%s973 + $0x30] sm:$0xf]
        %v981 = vld [vmem:[%s973 + $0x38] sm:$0xf]
        %s982 = scalar_lea.vmem %s1, 192
        %v983 = vld [vmem:[%s982] sm:$0xf]
        %v984 = vld [vmem:[%s982 + $0x4] sm:$0xf]
        %v985 = vld [vmem:[%s982 + $0x8] sm:$0xf]
        %v986 = vld [vmem:[%s982 + $0xc] sm:$0xf]
        %v987 = vld [vmem:[%s982 + $0x10] sm:$0xf]
        %v988 = vld [vmem:[%s982 + $0x14] sm:$0xf]
        %v989 = vld [vmem:[%s982 + $0x18] sm:$0xf]
        %v990 = vld [vmem:[%s982 + $0x1c] sm:$0xf]
        %v991 = vld [vmem:[%s982 + $0x20] sm:$0xf]
        %v992 = vld [vmem:[%s982 + $0x24] sm:$0xf]
        %v993 = vld [vmem:[%s982 + $0x28] sm:$0xf]
        %v994 = vld [vmem:[%s982 + $0x2c] sm:$0xf]
        %v995 = vld [vmem:[%s982 + $0x30] sm:$0xf]
        %v996 = vld [vmem:[%s982 + $0x34] sm:$0xf]
        %v997 = vld [vmem:[%s982 + $0x38] sm:$0xf]
        %v998 = vld [vmem:[%s982 + $0x3c] sm:$0xf]
        %v1007 = vunpack.c.l.b16 %v974
        %v1008 = vunpack.c.l.b16 %v975
        %v1009 = vunpack.c.l.b16 %v976
        %v1010 = vunpack.c.l.b16 %v977
        %v1011 = vunpack.c.l.b16 %v978
        %v1012 = vunpack.c.l.b16 %v979
        %v1013 = vunpack.c.l.b16 %v980
        %v1014 = vunpack.c.l.b16 %v981
        %v1015 = vpack.c.b16 %v1008, %v1007
        %v1016 = vpack.c.b16 %v1010, %v1009
        %v1017 = vpack.c.b16 %v1012, %v1011
        %v1018 = vpack.c.b16 %v1014, %v1013
        %v1039 = vunpack.c.l.b16 %v983
        %v1040 = vunpack.c.l.b16 %v984
        %v1041 = vunpack.c.l.b16 %v985
        %v1042 = vunpack.c.l.b16 %v986
        %v1043 = vunpack.c.l.b16 %v987
        %v1044 = vunpack.c.l.b16 %v988
        %v1045 = vunpack.c.l.b16 %v989
        %v1046 = vunpack.c.l.b16 %v990
        %v1047 = vunpack.c.l.b16 %v991
        %v1048 = vunpack.c.l.b16 %v992
        %v1049 = vunpack.c.l.b16 %v993
        %v1050 = vunpack.c.l.b16 %v994
        %v1051 = vunpack.c.l.b16 %v995
        %v1052 = vunpack.c.l.b16 %v996
        %v1053 = vunpack.c.l.b16 %v997
        %v1054 = vunpack.c.l.b16 %v998
        %v1055 = vpack.c.b16 %v1040, %v1039
        %v1056 = vpack.c.b16 %v1042, %v1041
        %v1057 = vpack.c.b16 %v1044, %v1043
        %v1058 = vpack.c.b16 %v1046, %v1045
        %v1059 = vpack.c.b16 %v1048, %v1047
        %v1060 = vpack.c.b16 %v1050, %v1049
        %v1061 = vpack.c.b16 %v1052, %v1051
        %v1062 = vpack.c.b16 %v1054, %v1053
        %1071 = vmatprep.subr.bf16.mxu0 0
        %1072 = vmatpush1.bf16.msra.mxu0 %v1062
        %1073 = vmatprep.subr.bf16.mxu0 0
        %1074 = vmatpush1.bf16.msra.mxu0 %v1061
        %1075 = vmatprep.subr.bf16.mxu0 0
        %1076 = vmatpush1.bf16.msra.mxu0 %v1060
        %1077 = vmatprep.subr.bf16.mxu0 0
        %1078 = vmatpush1.bf16.msra.mxu0 %v1059
        %1079 = vmatprep.subr.bf16.mxu0 0
        %1080 = vmatpush1.bf16.msra.mxu0 %v1058
        %1081 = vmatprep.subr.bf16.mxu0 0
        %1082 = vmatpush1.bf16.msra.mxu0 %v1057
        %1083 = vmatprep.subr.bf16.mxu0 0
        %1084 = vmatpush1.bf16.msra.mxu0 %v1056
        %1085 = vmatprep.subr.bf16.mxu0 0
        %1086 = vmatpush1.bf16.msra.mxu0 %v1055
        %1087 = vmatprep.subr.bf16.mxu0 0
        %1088 = vmatpush2.bf16.msra.mxu0 0
        %1089 = vmatprep.subr.bf16.mxu0 0
        %1090 = vmatpush2.bf16.msra.mxu0 0
        %1091 = vmatprep.subr.bf16.mxu0 0
        %1092 = vmatpush2.bf16.msra.mxu0 0
        %1093 = vmatprep.subr.bf16.mxu0 0
        %1094 = vmatpush2.bf16.msra.mxu0 0
        %1095 = vmatprep.subr.bf16.mxu0 0
        %1096 = vmatpush2.bf16.msra.mxu0 0
        %1097 = vmatprep.subr.bf16.mxu0 0
        %1098 = vmatpush2.bf16.msra.mxu0 0
        %1099 = vmatprep.subr.bf16.mxu0 0
        %1100 = vmatpush2.bf16.msra.mxu0 0
        %1101 = vmatprep.subr.bf16.mxu0 0
        %1102 = vmatpush2.bf16.msra.mxu0 0
        %1103 = vmatprep.mubr.bf16.mxu0 0
        %1104 = vmatmul.mubr.bf16.gmra.mxu0 %v1015
        %v1105 = vpop.f32.mrf.mxu0
        %v1106 = vadd.f32 0.0, %v1105
        %v1107 = vpop.f32.mrf.mxu0
        %v1108 = vpop.f32.mrf.mxu0
        %v1109 = vadd.f32 0.0, %v1108
        %v1110 = vpop.f32.mrf.mxu0
        %1111 = vmatprep.mubr.bf16.mxu0 0
        %1112 = vmatmul.mubr.bf16.gmra.mxu0 %v1016
        %v1113 = vpop.f32.mrf.mxu0
        %v1114 = vadd.f32 0.0, %v1113
        %v1115 = vpop.f32.mrf.mxu0
        %v1116 = vpop.f32.mrf.mxu0
        %v1117 = vadd.f32 0.0, %v1116
        %v1118 = vpop.f32.mrf.mxu0
        %1119 = vmatprep.mubr.bf16.mxu0 0
        %1120 = vmatmul.mubr.bf16.gmra.mxu0 %v1017
        %v1121 = vpop.f32.mrf.mxu0
        %v1122 = vadd.f32 0.0, %v1121
        %v1123 = vpop.f32.mrf.mxu0
        %v1124 = vpop.f32.mrf.mxu0
        %v1125 = vadd.f32 0.0, %v1124
        %v1126 = vpop.f32.mrf.mxu0
        %1127 = vmatprep.mubr.bf16.mxu0 0
        %1128 = vmatmul.mubr.bf16.gmra.mxu0 %v1018
        %v1129 = vpop.f32.mrf.mxu0
        %v1130 = vadd.f32 0.0, %v1129
        %v1131 = vpop.f32.mrf.mxu0
        %v1132 = vpop.f32.mrf.mxu0
        %v1133 = vadd.f32 0.0, %v1132
        %v1134 = vpop.f32.mrf.mxu0
        %1135 = vdwg.mxu0
        %v1136 = vadd.f32 %v965, %v1106
        %v1137 = vadd.f32 %v966, %v1109
        %v1138 = vadd.f32 %v967, %v1114
        %v1139 = vadd.f32 %v968, %v1117
        %v1140 = vadd.f32 %v969, %v1122
        %v1141 = vadd.f32 %v970, %v1125
        %v1142 = vadd.f32 %v971, %v1130
        %v1143 = vadd.f32 %v972, %v1133
        %s1144 = scalar_lea.vmem %s361, 216
        %v1145 = vld [vmem:[%s1144] sm:$0xf]
        %v1146 = vld [vmem:[%s1144 + $0x8] sm:$0xf]
        %v1147 = vld [vmem:[%s1144 + $0x10] sm:$0xf]
        %v1148 = vld [vmem:[%s1144 + $0x18] sm:$0xf]
        %v1149 = vld [vmem:[%s1144 + $0x20] sm:$0xf]
        %v1150 = vld [vmem:[%s1144 + $0x28] sm:$0xf]
        %v1151 = vld [vmem:[%s1144 + $0x30] sm:$0xf]
        %v1152 = vld [vmem:[%s1144 + $0x38] sm:$0xf]
        %s1153 = scalar_lea.vmem %s1, 256
        %v1154 = vld [vmem:[%s1153] sm:$0xf]
        %v1155 = vld [vmem:[%s1153 + $0x4] sm:$0xf]
        %v1156 = vld [vmem:[%s1153 + $0x8] sm:$0xf]
        %v1157 = vld [vmem:[%s1153 + $0xc] sm:$0xf]
        %v1158 = vld [vmem:[%s1153 + $0x10] sm:$0xf]
        %v1159 = vld [vmem:[%s1153 + $0x14] sm:$0xf]
        %v1160 = vld [vmem:[%s1153 + $0x18] sm:$0xf]
        %v1161 = vld [vmem:[%s1153 + $0x1c] sm:$0xf]
        %v1162 = vld [vmem:[%s1153 + $0x20] sm:$0xf]
        %v1163 = vld [vmem:[%s1153 + $0x24] sm:$0xf]
        %v1164 = vld [vmem:[%s1153 + $0x28] sm:$0xf]
        %v1165 = vld [vmem:[%s1153 + $0x2c] sm:$0xf]
        %v1166 = vld [vmem:[%s1153 + $0x30] sm:$0xf]
        %v1167 = vld [vmem:[%s1153 + $0x34] sm:$0xf]
        %v1168 = vld [vmem:[%s1153 + $0x38] sm:$0xf]
        %v1169 = vld [vmem:[%s1153 + $0x3c] sm:$0xf]
        %v1178 = vunpack.c.l.b16 %v1145
        %v1179 = vunpack.c.l.b16 %v1146
        %v1180 = vunpack.c.l.b16 %v1147
        %v1181 = vunpack.c.l.b16 %v1148
        %v1182 = vunpack.c.l.b16 %v1149
        %v1183 = vunpack.c.l.b16 %v1150
        %v1184 = vunpack.c.l.b16 %v1151
        %v1185 = vunpack.c.l.b16 %v1152
        %v1186 = vpack.c.b16 %v1179, %v1178
        %v1187 = vpack.c.b16 %v1181, %v1180
        %v1188 = vpack.c.b16 %v1183, %v1182
        %v1189 = vpack.c.b16 %v1185, %v1184
        %v1210 = vunpack.c.l.b16 %v1154
        %v1211 = vunpack.c.l.b16 %v1155
        %v1212 = vunpack.c.l.b16 %v1156
        %v1213 = vunpack.c.l.b16 %v1157
        %v1214 = vunpack.c.l.b16 %v1158
        %v1215 = vunpack.c.l.b16 %v1159
        %v1216 = vunpack.c.l.b16 %v1160
        %v1217 = vunpack.c.l.b16 %v1161
        %v1218 = vunpack.c.l.b16 %v1162
        %v1219 = vunpack.c.l.b16 %v1163
        %v1220 = vunpack.c.l.b16 %v1164
        %v1221 = vunpack.c.l.b16 %v1165
        %v1222 = vunpack.c.l.b16 %v1166
        %v1223 = vunpack.c.l.b16 %v1167
        %v1224 = vunpack.c.l.b16 %v1168
        %v1225 = vunpack.c.l.b16 %v1169
        %v1226 = vpack.c.b16 %v1211, %v1210
        %v1227 = vpack.c.b16 %v1213, %v1212
        %v1228 = vpack.c.b16 %v1215, %v1214
        %v1229 = vpack.c.b16 %v1217, %v1216
        %v1230 = vpack.c.b16 %v1219, %v1218
        %v1231 = vpack.c.b16 %v1221, %v1220
        %v1232 = vpack.c.b16 %v1223, %v1222
        %v1233 = vpack.c.b16 %v1225, %v1224
        %1242 = vmatprep.subr.bf16.mxu0 0
        %1243 = vmatpush1.bf16.msra.mxu0 %v1233
        %1244 = vmatprep.subr.bf16.mxu0 0
        %1245 = vmatpush1.bf16.msra.mxu0 %v1232
        %1246 = vmatprep.subr.bf16.mxu0 0
        %1247 = vmatpush1.bf16.msra.mxu0 %v1231
        %1248 = vmatprep.subr.bf16.mxu0 0
        %1249 = vmatpush1.bf16.msra.mxu0 %v1230
        %1250 = vmatprep.subr.bf16.mxu0 0
        %1251 = vmatpush1.bf16.msra.mxu0 %v1229
        %1252 = vmatprep.subr.bf16.mxu0 0
        %1253 = vmatpush1.bf16.msra.mxu0 %v1228
        %1254 = vmatprep.subr.bf16.mxu0 0
        %1255 = vmatpush1.bf16.msra.mxu0 %v1227
        %1256 = vmatprep.subr.bf16.mxu0 0
        %1257 = vmatpush1.bf16.msra.mxu0 %v1226
        %1258 = vmatprep.subr.bf16.mxu0 0
        %1259 = vmatpush2.bf16.msra.mxu0 0
        %1260 = vmatprep.subr.bf16.mxu0 0
        %1261 = vmatpush2.bf16.msra.mxu0 0
        %1262 = vmatprep.subr.bf16.mxu0 0
        %1263 = vmatpush2.bf16.msra.mxu0 0
        %1264 = vmatprep.subr.bf16.mxu0 0
        %1265 = vmatpush2.bf16.msra.mxu0 0
        %1266 = vmatprep.subr.bf16.mxu0 0
        %1267 = vmatpush2.bf16.msra.mxu0 0
        %1268 = vmatprep.subr.bf16.mxu0 0
        %1269 = vmatpush2.bf16.msra.mxu0 0
        %1270 = vmatprep.subr.bf16.mxu0 0
        %1271 = vmatpush2.bf16.msra.mxu0 0
        %1272 = vmatprep.subr.bf16.mxu0 0
        %1273 = vmatpush2.bf16.msra.mxu0 0
        %1274 = vmatprep.mubr.bf16.mxu0 0
        %1275 = vmatmul.mubr.bf16.gmra.mxu0 %v1186
        %v1276 = vpop.f32.mrf.mxu0
        %v1277 = vadd.f32 0.0, %v1276
        %v1278 = vpop.f32.mrf.mxu0
        %v1279 = vpop.f32.mrf.mxu0
        %v1280 = vadd.f32 0.0, %v1279
        %v1281 = vpop.f32.mrf.mxu0
        %1282 = vmatprep.mubr.bf16.mxu0 0
        %1283 = vmatmul.mubr.bf16.gmra.mxu0 %v1187
        %v1284 = vpop.f32.mrf.mxu0
        %v1285 = vadd.f32 0.0, %v1284
        %v1286 = vpop.f32.mrf.mxu0
        %v1287 = vpop.f32.mrf.mxu0
        %v1288 = vadd.f32 0.0, %v1287
        %v1289 = vpop.f32.mrf.mxu0
        %1290 = vmatprep.mubr.bf16.mxu0 0
        %1291 = vmatmul.mubr.bf16.gmra.mxu0 %v1188
        %v1292 = vpop.f32.mrf.mxu0
        %v1293 = vadd.f32 0.0, %v1292
        %v1294 = vpop.f32.mrf.mxu0
        %v1295 = vpop.f32.mrf.mxu0
        %v1296 = vadd.f32 0.0, %v1295
        %v1297 = vpop.f32.mrf.mxu0
        %1298 = vmatprep.mubr.bf16.mxu0 0
        %1299 = vmatmul.mubr.bf16.gmra.mxu0 %v1189
        %v1300 = vpop.f32.mrf.mxu0
        %v1301 = vadd.f32 0.0, %v1300
        %v1302 = vpop.f32.mrf.mxu0
        %v1303 = vpop.f32.mrf.mxu0
        %v1304 = vadd.f32 0.0, %v1303
        %v1305 = vpop.f32.mrf.mxu0
        %1306 = vdwg.mxu0
        %v1307 = vadd.f32 %v1136, %v1277
        %v1308 = vadd.f32 %v1137, %v1280
        %v1309 = vadd.f32 %v1138, %v1285
        %v1310 = vadd.f32 %v1139, %v1288
        %v1311 = vadd.f32 %v1140, %v1293
        %v1312 = vadd.f32 %v1141, %v1296
        %v1313 = vadd.f32 %v1142, %v1301
        %v1314 = vadd.f32 %v1143, %v1304
        %v1315 = vld [vmem:[%s973] sm:$0xf]
        %v1316 = vld [vmem:[%s973 + $0x4] sm:$0x1]
        %v1317 = vld [vmem:[%s973 + $0x8] sm:$0xf]
        %v1318 = vld [vmem:[%s973 + $0xc] sm:$0x1]
        %v1319 = vld [vmem:[%s973 + $0x10] sm:$0xf]
        %v1320 = vld [vmem:[%s973 + $0x14] sm:$0x1]
        %v1321 = vld [vmem:[%s973 + $0x18] sm:$0xf]
        %v1322 = vld [vmem:[%s973 + $0x1c] sm:$0x1]
        %v1323 = vld [vmem:[%s973 + $0x20] sm:$0xf]
        %v1324 = vld [vmem:[%s973 + $0x24] sm:$0x1]
        %v1325 = vld [vmem:[%s973 + $0x28] sm:$0xf]
        %v1326 = vld [vmem:[%s973 + $0x2c] sm:$0x1]
        %v1327 = vld [vmem:[%s973 + $0x30] sm:$0xf]
        %v1328 = vld [vmem:[%s973 + $0x34] sm:$0x1]
        %v1329 = vld [vmem:[%s973 + $0x38] sm:$0xf]
        %v1330 = vld [vmem:[%s973 + $0x3c] sm:$0x1]
        %v1332 = vshrl.u32 %v1315, 16
        %v1334 = vrot.slane %v1332, 4
        %v1335 = vshll.u32 %v1315, 16
        %v1337 = vrot.slane %v1335, 5
        %v1338 = vor.u32 %v1334, %v1337
        %v1339 = vrot.slane %v1338, 4
        %v1341 = vshll.u32 %v1316, 16
        %v1343 = vrot.slane %v1341, 5
        %v1344 = vsel %vm706, %v1339, %v1343
        %v1346 = vshrl.u32 %v1317, 16
        %v1348 = vrot.slane %v1346, 4
        %v1349 = vshll.u32 %v1317, 16
        %v1351 = vrot.slane %v1349, 5
        %v1352 = vor.u32 %v1348, %v1351
        %v1353 = vrot.slane %v1352, 4
        %v1355 = vshll.u32 %v1318, 16
        %v1357 = vrot.slane %v1355, 5
        %v1358 = vsel %vm706, %v1353, %v1357
        %v1360 = vshrl.u32 %v1319, 16
        %v1362 = vrot.slane %v1360, 4
        %v1363 = vshll.u32 %v1319, 16
        %v1365 = vrot.slane %v1363, 5
        %v1366 = vor.u32 %v1362, %v1365
        %v1367 = vrot.slane %v1366, 4
        %v1369 = vshll.u32 %v1320, 16
        %v1371 = vrot.slane %v1369, 5
        %v1372 = vsel %vm706, %v1367, %v1371
        %v1374 = vshrl.u32 %v1321, 16
        %v1376 = vrot.slane %v1374, 4
        %v1377 = vshll.u32 %v1321, 16
        %v1379 = vrot.slane %v1377, 5
        %v1380 = vor.u32 %v1376, %v1379
        %v1381 = vrot.slane %v1380, 4
        %v1383 = vshll.u32 %v1322, 16
        %v1385 = vrot.slane %v1383, 5
        %v1386 = vsel %vm706, %v1381, %v1385
        %v1388 = vshrl.u32 %v1323, 16
        %v1390 = vrot.slane %v1388, 4
        %v1391 = vshll.u32 %v1323, 16
        %v1393 = vrot.slane %v1391, 5
        %v1394 = vor.u32 %v1390, %v1393
        %v1395 = vrot.slane %v1394, 4
        %v1397 = vshll.u32 %v1324, 16
        %v1399 = vrot.slane %v1397, 5
        %v1400 = vsel %vm706, %v1395, %v1399
        %v1402 = vshrl.u32 %v1325, 16
        %v1404 = vrot.slane %v1402, 4
        %v1405 = vshll.u32 %v1325, 16
        %v1407 = vrot.slane %v1405, 5
        %v1408 = vor.u32 %v1404, %v1407
        %v1409 = vrot.slane %v1408, 4
        %v1411 = vshll.u32 %v1326, 16
        %v1413 = vrot.slane %v1411, 5
        %v1414 = vsel %vm706, %v1409, %v1413
        %v1416 = vshrl.u32 %v1327, 16
        %v1418 = vrot.slane %v1416, 4
        %v1419 = vshll.u32 %v1327, 16
        %v1421 = vrot.slane %v1419, 5
        %v1422 = vor.u32 %v1418, %v1421
        %v1423 = vrot.slane %v1422, 4
        %v1425 = vshll.u32 %v1328, 16
        %v1427 = vrot.slane %v1425, 5
        %v1428 = vsel %vm706, %v1423, %v1427
        %v1430 = vshrl.u32 %v1329, 16
        %v1432 = vrot.slane %v1430, 4
        %v1433 = vshll.u32 %v1329, 16
        %v1435 = vrot.slane %v1433, 5
        %v1436 = vor.u32 %v1432, %v1435
        %v1437 = vrot.slane %v1436, 4
        %v1439 = vshll.u32 %v1330, 16
        %v1441 = vrot.slane %v1439, 5
        %v1442 = vsel %vm706, %v1437, %v1441
        %s1443 = scalar_lea.vmem %s1, 320
        %v1444 = vld [vmem:[%s1443] sm:$0xf]
        %v1445 = vld [vmem:[%s1443 + $0x4] sm:$0xf]
        %v1446 = vld [vmem:[%s1443 + $0x8] sm:$0xf]
        %v1447 = vld [vmem:[%s1443 + $0xc] sm:$0xf]
        %v1448 = vld [vmem:[%s1443 + $0x10] sm:$0xf]
        %v1449 = vld [vmem:[%s1443 + $0x14] sm:$0xf]
        %v1450 = vld [vmem:[%s1443 + $0x18] sm:$0xf]
        %v1451 = vld [vmem:[%s1443 + $0x1c] sm:$0xf]
        %v1452 = vld [vmem:[%s1443 + $0x20] sm:$0xf]
        %v1453 = vld [vmem:[%s1443 + $0x24] sm:$0xf]
        %v1454 = vld [vmem:[%s1443 + $0x28] sm:$0xf]
        %v1455 = vld [vmem:[%s1443 + $0x2c] sm:$0xf]
        %v1456 = vld [vmem:[%s1443 + $0x30] sm:$0xf]
        %v1457 = vld [vmem:[%s1443 + $0x34] sm:$0xf]
        %v1458 = vld [vmem:[%s1443 + $0x38] sm:$0xf]
        %v1459 = vld [vmem:[%s1443 + $0x3c] sm:$0xf]
        %v1460 = vunpack.c.l.b16 %v1344
        %v1461 = vunpack.c.l.b16 %v1358
        %v1462 = vunpack.c.l.b16 %v1372
        %v1463 = vunpack.c.l.b16 %v1386
        %v1464 = vunpack.c.l.b16 %v1400
        %v1465 = vunpack.c.l.b16 %v1414
        %v1466 = vunpack.c.l.b16 %v1428
        %v1467 = vunpack.c.l.b16 %v1442
        %v1468 = vpack.c.b16 %v1461, %v1460
        %v1469 = vpack.c.b16 %v1463, %v1462
        %v1470 = vpack.c.b16 %v1465, %v1464
        %v1471 = vpack.c.b16 %v1467, %v1466
        %v1492 = vunpack.c.l.b16 %v1444
        %v1493 = vunpack.c.l.b16 %v1445
        %v1494 = vunpack.c.l.b16 %v1446
        %v1495 = vunpack.c.l.b16 %v1447
        %v1496 = vunpack.c.l.b16 %v1448
        %v1497 = vunpack.c.l.b16 %v1449
        %v1498 = vunpack.c.l.b16 %v1450
        %v1499 = vunpack.c.l.b16 %v1451
        %v1500 = vunpack.c.l.b16 %v1452
        %v1501 = vunpack.c.l.b16 %v1453
        %v1502 = vunpack.c.l.b16 %v1454
        %v1503 = vunpack.c.l.b16 %v1455
        %v1504 = vunpack.c.l.b16 %v1456
        %v1505 = vunpack.c.l.b16 %v1457
        %v1506 = vunpack.c.l.b16 %v1458
        %v1507 = vunpack.c.l.b16 %v1459
        %v1508 = vpack.c.b16 %v1493, %v1492
        %v1509 = vpack.c.b16 %v1495, %v1494
        %v1510 = vpack.c.b16 %v1497, %v1496
        %v1511 = vpack.c.b16 %v1499, %v1498
        %v1512 = vpack.c.b16 %v1501, %v1500
        %v1513 = vpack.c.b16 %v1503, %v1502
        %v1514 = vpack.c.b16 %v1505, %v1504
        %v1515 = vpack.c.b16 %v1507, %v1506
        %1524 = vmatprep.subr.bf16.mxu0 0
        %1525 = vmatpush1.bf16.msra.mxu0 %v1515
        %1526 = vmatprep.subr.bf16.mxu0 0
        %1527 = vmatpush1.bf16.msra.mxu0 %v1514
        %1528 = vmatprep.subr.bf16.mxu0 0
        %1529 = vmatpush1.bf16.msra.mxu0 %v1513
        %1530 = vmatprep.subr.bf16.mxu0 0
        %1531 = vmatpush1.bf16.msra.mxu0 %v1512
        %1532 = vmatprep.subr.bf16.mxu0 0
        %1533 = vmatpush1.bf16.msra.mxu0 %v1511
        %1534 = vmatprep.subr.bf16.mxu0 0
        %1535 = vmatpush1.bf16.msra.mxu0 %v1510
        %1536 = vmatprep.subr.bf16.mxu0 0
        %1537 = vmatpush1.bf16.msra.mxu0 %v1509
        %1538 = vmatprep.subr.bf16.mxu0 0
        %1539 = vmatpush1.bf16.msra.mxu0 %v1508
        %1540 = vmatprep.subr.bf16.mxu0 0
        %1541 = vmatpush2.bf16.msra.mxu0 0
        %1542 = vmatprep.subr.bf16.mxu0 0
        %1543 = vmatpush2.bf16.msra.mxu0 0
        %1544 = vmatprep.subr.bf16.mxu0 0
        %1545 = vmatpush2.bf16.msra.mxu0 0
        %1546 = vmatprep.subr.bf16.mxu0 0
        %1547 = vmatpush2.bf16.msra.mxu0 0
        %1548 = vmatprep.subr.bf16.mxu0 0
        %1549 = vmatpush2.bf16.msra.mxu0 0
        %1550 = vmatprep.subr.bf16.mxu0 0
        %1551 = vmatpush2.bf16.msra.mxu0 0
        %1552 = vmatprep.subr.bf16.mxu0 0
        %1553 = vmatpush2.bf16.msra.mxu0 0
        %1554 = vmatprep.subr.bf16.mxu0 0
        %1555 = vmatpush2.bf16.msra.mxu0 0
        %1556 = vmatprep.mubr.bf16.mxu0 0
        %1557 = vmatmul.mubr.bf16.gmra.mxu0 %v1468
        %v1558 = vpop.f32.mrf.mxu0
        %v1559 = vadd.f32 0.0, %v1558
        %v1560 = vpop.f32.mrf.mxu0
        %v1561 = vpop.f32.mrf.mxu0
        %v1562 = vadd.f32 0.0, %v1561
        %v1563 = vpop.f32.mrf.mxu0
        %1564 = vmatprep.mubr.bf16.mxu0 0
        %1565 = vmatmul.mubr.bf16.gmra.mxu0 %v1469
        %v1566 = vpop.f32.mrf.mxu0
        %v1567 = vadd.f32 0.0, %v1566
        %v1568 = vpop.f32.mrf.mxu0
        %v1569 = vpop.f32.mrf.mxu0
        %v1570 = vadd.f32 0.0, %v1569
        %v1571 = vpop.f32.mrf.mxu0
        %1572 = vmatprep.mubr.bf16.mxu0 0
        %1573 = vmatmul.mubr.bf16.gmra.mxu0 %v1470
        %v1574 = vpop.f32.mrf.mxu0
        %v1575 = vadd.f32 0.0, %v1574
        %v1576 = vpop.f32.mrf.mxu0
        %v1577 = vpop.f32.mrf.mxu0
        %v1578 = vadd.f32 0.0, %v1577
        %v1579 = vpop.f32.mrf.mxu0
        %1580 = vmatprep.mubr.bf16.mxu0 0
        %1581 = vmatmul.mubr.bf16.gmra.mxu0 %v1471
        %v1582 = vpop.f32.mrf.mxu0
        %v1583 = vadd.f32 0.0, %v1582
        %v1584 = vpop.f32.mrf.mxu0
        %v1585 = vpop.f32.mrf.mxu0
        %v1586 = vadd.f32 0.0, %v1585
        %v1587 = vpop.f32.mrf.mxu0
        %1588 = vdwg.mxu0
        %v1589 = vadd.f32 %v1307, %v1559
        %v1590 = vadd.f32 %v1308, %v1562
        %v1591 = vadd.f32 %v1309, %v1567
        %v1592 = vadd.f32 %v1310, %v1570
        %v1593 = vadd.f32 %v1311, %v1575
        %v1594 = vadd.f32 %v1312, %v1578
        %v1595 = vadd.f32 %v1313, %v1583
        %v1596 = vadd.f32 %v1314, %v1586
        %s1597 = scalar_lea.vmem %s361, 8
        %v1598 = vld [vmem:[%s1597] sm:$0xf]
        %v1599 = vld [vmem:[%s1597 + $0x8] sm:$0xf]
        %v1600 = vld [vmem:[%s1597 + $0x10] sm:$0xf]
        %v1601 = vld [vmem:[%s1597 + $0x18] sm:$0xf]
        %v1602 = vld [vmem:[%s1597 + $0x20] sm:$0xf]
        %v1603 = vld [vmem:[%s1597 + $0x28] sm:$0xf]
        %v1604 = vld [vmem:[%s1597 + $0x30] sm:$0xf]
        %v1605 = vld [vmem:[%s1597 + $0x38] sm:$0xf]
        %s1606 = scalar_lea.vmem %s1, 384
        %v1607 = vld [vmem:[%s1606] sm:$0xf]
        %v1608 = vld [vmem:[%s1606 + $0x4] sm:$0xf]
        %v1609 = vld [vmem:[%s1606 + $0x8] sm:$0xf]
        %v1610 = vld [vmem:[%s1606 + $0xc] sm:$0xf]
        %v1611 = vld [vmem:[%s1606 + $0x10] sm:$0xf]
        %v1612 = vld [vmem:[%s1606 + $0x14] sm:$0xf]
        %v1613 = vld [vmem:[%s1606 + $0x18] sm:$0xf]
        %v1614 = vld [vmem:[%s1606 + $0x1c] sm:$0xf]
        %v1615 = vld [vmem:[%s1606 + $0x20] sm:$0xf]
        %v1616 = vld [vmem:[%s1606 + $0x24] sm:$0xf]
        %v1617 = vld [vmem:[%s1606 + $0x28] sm:$0xf]
        %v1618 = vld [vmem:[%s1606 + $0x2c] sm:$0xf]
        %v1619 = vld [vmem:[%s1606 + $0x30] sm:$0xf]
        %v1620 = vld [vmem:[%s1606 + $0x34] sm:$0xf]
        %v1621 = vld [vmem:[%s1606 + $0x38] sm:$0xf]
        %v1622 = vld [vmem:[%s1606 + $0x3c] sm:$0xf]
        %v1631 = vunpack.c.l.b16 %v1598
        %v1632 = vunpack.c.l.b16 %v1599
        %v1633 = vunpack.c.l.b16 %v1600
        %v1634 = vunpack.c.l.b16 %v1601
        %v1635 = vunpack.c.l.b16 %v1602
        %v1636 = vunpack.c.l.b16 %v1603
        %v1637 = vunpack.c.l.b16 %v1604
        %v1638 = vunpack.c.l.b16 %v1605
        %v1639 = vpack.c.b16 %v1632, %v1631
        %v1640 = vpack.c.b16 %v1634, %v1633
        %v1641 = vpack.c.b16 %v1636, %v1635
        %v1642 = vpack.c.b16 %v1638, %v1637
        %v1663 = vunpack.c.l.b16 %v1607
        %v1664 = vunpack.c.l.b16 %v1608
        %v1665 = vunpack.c.l.b16 %v1609
        %v1666 = vunpack.c.l.b16 %v1610
        %v1667 = vunpack.c.l.b16 %v1611
        %v1668 = vunpack.c.l.b16 %v1612
        %v1669 = vunpack.c.l.b16 %v1613
        %v1670 = vunpack.c.l.b16 %v1614
        %v1671 = vunpack.c.l.b16 %v1615
        %v1672 = vunpack.c.l.b16 %v1616
        %v1673 = vunpack.c.l.b16 %v1617
        %v1674 = vunpack.c.l.b16 %v1618
        %v1675 = vunpack.c.l.b16 %v1619
        %v1676 = vunpack.c.l.b16 %v1620
        %v1677 = vunpack.c.l.b16 %v1621
        %v1678 = vunpack.c.l.b16 %v1622
        %v1679 = vpack.c.b16 %v1664, %v1663
        %v1680 = vpack.c.b16 %v1666, %v1665
        %v1681 = vpack.c.b16 %v1668, %v1667
        %v1682 = vpack.c.b16 %v1670, %v1669
        %v1683 = vpack.c.b16 %v1672, %v1671
        %v1684 = vpack.c.b16 %v1674, %v1673
        %v1685 = vpack.c.b16 %v1676, %v1675
        %v1686 = vpack.c.b16 %v1678, %v1677
        %1695 = vmatprep.subr.bf16.mxu0 0
        %1696 = vmatpush1.bf16.msra.mxu0 %v1686
        %1697 = vmatprep.subr.bf16.mxu0 0
        %1698 = vmatpush1.bf16.msra.mxu0 %v1685
        %1699 = vmatprep.subr.bf16.mxu0 0
        %1700 = vmatpush1.bf16.msra.mxu0 %v1684
        %1701 = vmatprep.subr.bf16.mxu0 0
        %1702 = vmatpush1.bf16.msra.mxu0 %v1683
        %1703 = vmatprep.subr.bf16.mxu0 0
        %1704 = vmatpush1.bf16.msra.mxu0 %v1682
        %1705 = vmatprep.subr.bf16.mxu0 0
        %1706 = vmatpush1.bf16.msra.mxu0 %v1681
        %1707 = vmatprep.subr.bf16.mxu0 0
        %1708 = vmatpush1.bf16.msra.mxu0 %v1680
        %1709 = vmatprep.subr.bf16.mxu0 0
        %1710 = vmatpush1.bf16.msra.mxu0 %v1679
        %1711 = vmatprep.subr.bf16.mxu0 0
        %1712 = vmatpush2.bf16.msra.mxu0 0
        %1713 = vmatprep.subr.bf16.mxu0 0
        %1714 = vmatpush2.bf16.msra.mxu0 0
        %1715 = vmatprep.subr.bf16.mxu0 0
        %1716 = vmatpush2.bf16.msra.mxu0 0
        %1717 = vmatprep.subr.bf16.mxu0 0
        %1718 = vmatpush2.bf16.msra.mxu0 0
        %1719 = vmatprep.subr.bf16.mxu0 0
        %1720 = vmatpush2.bf16.msra.mxu0 0
        %1721 = vmatprep.subr.bf16.mxu0 0
        %1722 = vmatpush2.bf16.msra.mxu0 0
        %1723 = vmatprep.subr.bf16.mxu0 0
        %1724 = vmatpush2.bf16.msra.mxu0 0
        %1725 = vmatprep.subr.bf16.mxu0 0
        %1726 = vmatpush2.bf16.msra.mxu0 0
        %1727 = vmatprep.mubr.bf16.mxu0 0
        %1728 = vmatmul.mubr.bf16.gmra.mxu0 %v1639
        %v1729 = vpop.f32.mrf.mxu0
        %v1730 = vadd.f32 0.0, %v1729
        %v1731 = vpop.f32.mrf.mxu0
        %v1732 = vpop.f32.mrf.mxu0
        %v1733 = vadd.f32 0.0, %v1732
        %v1734 = vpop.f32.mrf.mxu0
        %1735 = vmatprep.mubr.bf16.mxu0 0
        %1736 = vmatmul.mubr.bf16.gmra.mxu0 %v1640
        %v1737 = vpop.f32.mrf.mxu0
        %v1738 = vadd.f32 0.0, %v1737
        %v1739 = vpop.f32.mrf.mxu0
        %v1740 = vpop.f32.mrf.mxu0
        %v1741 = vadd.f32 0.0, %v1740
        %v1742 = vpop.f32.mrf.mxu0
        %1743 = vmatprep.mubr.bf16.mxu0 0
        %1744 = vmatmul.mubr.bf16.gmra.mxu0 %v1641
        %v1745 = vpop.f32.mrf.mxu0
        %v1746 = vadd.f32 0.0, %v1745
        %v1747 = vpop.f32.mrf.mxu0
        %v1748 = vpop.f32.mrf.mxu0
        %v1749 = vadd.f32 0.0, %v1748
        %v1750 = vpop.f32.mrf.mxu0
        %1751 = vmatprep.mubr.bf16.mxu0 0
        %1752 = vmatmul.mubr.bf16.gmra.mxu0 %v1642
        %v1753 = vpop.f32.mrf.mxu0
        %v1754 = vadd.f32 0.0, %v1753
        %v1755 = vpop.f32.mrf.mxu0
        %v1756 = vpop.f32.mrf.mxu0
        %v1757 = vadd.f32 0.0, %v1756
        %v1758 = vpop.f32.mrf.mxu0
        %1759 = vdwg.mxu0
        %v1760 = vadd.f32 %v1589, %v1730
        %v1761 = vadd.f32 %v1590, %v1733
        %v1762 = vadd.f32 %v1591, %v1738
        %v1763 = vadd.f32 %v1592, %v1741
        %v1764 = vadd.f32 %v1593, %v1746
        %v1765 = vadd.f32 %v1594, %v1749
        %v1766 = vadd.f32 %v1595, %v1754
        %v1767 = vadd.f32 %v1596, %v1757
        %s1768 = scalar_lea.vmem %s361, 80
        %v1769 = vld [vmem:[%s1768] sm:$0xf]
        %v1770 = vld [vmem:[%s1768 + $0x8] sm:$0xf]
        %v1771 = vld [vmem:[%s1768 + $0x10] sm:$0xf]
        %v1772 = vld [vmem:[%s1768 + $0x18] sm:$0xf]
        %v1773 = vld [vmem:[%s1768 + $0x20] sm:$0xf]
        %v1774 = vld [vmem:[%s1768 + $0x28] sm:$0xf]
        %v1775 = vld [vmem:[%s1768 + $0x30] sm:$0xf]
        %v1776 = vld [vmem:[%s1768 + $0x38] sm:$0xf]
        %s1777 = scalar_lea.vmem %s1, 448
        %v1778 = vld [vmem:[%s1777] sm:$0xf]
        %v1779 = vld [vmem:[%s1777 + $0x4] sm:$0xf]
        %v1780 = vld [vmem:[%s1777 + $0x8] sm:$0xf]
        %v1781 = vld [vmem:[%s1777 + $0xc] sm:$0xf]
        %v1782 = vld [vmem:[%s1777 + $0x10] sm:$0xf]
        %v1783 = vld [vmem:[%s1777 + $0x14] sm:$0xf]
        %v1784 = vld [vmem:[%s1777 + $0x18] sm:$0xf]
        %v1785 = vld [vmem:[%s1777 + $0x1c] sm:$0xf]
        %v1786 = vld [vmem:[%s1777 + $0x20] sm:$0xf]
        %v1787 = vld [vmem:[%s1777 + $0x24] sm:$0xf]
        %v1788 = vld [vmem:[%s1777 + $0x28] sm:$0xf]
        %v1789 = vld [vmem:[%s1777 + $0x2c] sm:$0xf]
        %v1790 = vld [vmem:[%s1777 + $0x30] sm:$0xf]
        %v1791 = vld [vmem:[%s1777 + $0x34] sm:$0xf]
        %v1792 = vld [vmem:[%s1777 + $0x38] sm:$0xf]
        %v1793 = vld [vmem:[%s1777 + $0x3c] sm:$0xf]
        %v1802 = vunpack.c.l.b16 %v1769
        %v1803 = vunpack.c.l.b16 %v1770
        %v1804 = vunpack.c.l.b16 %v1771
        %v1805 = vunpack.c.l.b16 %v1772
        %v1806 = vunpack.c.l.b16 %v1773
        %v1807 = vunpack.c.l.b16 %v1774
        %v1808 = vunpack.c.l.b16 %v1775
        %v1809 = vunpack.c.l.b16 %v1776
        %v1810 = vpack.c.b16 %v1803, %v1802
        %v1811 = vpack.c.b16 %v1805, %v1804
        %v1812 = vpack.c.b16 %v1807, %v1806
        %v1813 = vpack.c.b16 %v1809, %v1808
        %v1834 = vunpack.c.l.b16 %v1778
        %v1835 = vunpack.c.l.b16 %v1779
        %v1836 = vunpack.c.l.b16 %v1780
        %v1837 = vunpack.c.l.b16 %v1781
        %v1838 = vunpack.c.l.b16 %v1782
        %v1839 = vunpack.c.l.b16 %v1783
        %v1840 = vunpack.c.l.b16 %v1784
        %v1841 = vunpack.c.l.b16 %v1785
        %v1842 = vunpack.c.l.b16 %v1786
        %v1843 = vunpack.c.l.b16 %v1787
        %v1844 = vunpack.c.l.b16 %v1788
        %v1845 = vunpack.c.l.b16 %v1789
        %v1846 = vunpack.c.l.b16 %v1790
        %v1847 = vunpack.c.l.b16 %v1791
        %v1848 = vunpack.c.l.b16 %v1792
        %v1849 = vunpack.c.l.b16 %v1793
        %v1850 = vpack.c.b16 %v1835, %v1834
        %v1851 = vpack.c.b16 %v1837, %v1836
        %v1852 = vpack.c.b16 %v1839, %v1838
        %v1853 = vpack.c.b16 %v1841, %v1840
        %v1854 = vpack.c.b16 %v1843, %v1842
        %v1855 = vpack.c.b16 %v1845, %v1844
        %v1856 = vpack.c.b16 %v1847, %v1846
        %v1857 = vpack.c.b16 %v1849, %v1848
        %1866 = vmatprep.subr.bf16.mxu0 0
        %1867 = vmatpush1.bf16.msra.mxu0 %v1857
        %1868 = vmatprep.subr.bf16.mxu0 0
        %1869 = vmatpush1.bf16.msra.mxu0 %v1856
        %1870 = vmatprep.subr.bf16.mxu0 0
        %1871 = vmatpush1.bf16.msra.mxu0 %v1855
        %1872 = vmatprep.subr.bf16.mxu0 0
        %1873 = vmatpush1.bf16.msra.mxu0 %v1854
        %1874 = vmatprep.subr.bf16.mxu0 0
        %1875 = vmatpush1.bf16.msra.mxu0 %v1853
        %1876 = vmatprep.subr.bf16.mxu0 0
        %1877 = vmatpush1.bf16.msra.mxu0 %v1852
        %1878 = vmatprep.subr.bf16.mxu0 0
        %1879 = vmatpush1.bf16.msra.mxu0 %v1851
        %1880 = vmatprep.subr.bf16.mxu0 0
        %1881 = vmatpush1.bf16.msra.mxu0 %v1850
        %1882 = vmatprep.subr.bf16.mxu0 0
        %1883 = vmatpush2.bf16.msra.mxu0 0
        %1884 = vmatprep.subr.bf16.mxu0 0
        %1885 = vmatpush2.bf16.msra.mxu0 0
        %1886 = vmatprep.subr.bf16.mxu0 0
        %1887 = vmatpush2.bf16.msra.mxu0 0
        %1888 = vmatprep.subr.bf16.mxu0 0
        %1889 = vmatpush2.bf16.msra.mxu0 0
        %1890 = vmatprep.subr.bf16.mxu0 0
        %1891 = vmatpush2.bf16.msra.mxu0 0
        %1892 = vmatprep.subr.bf16.mxu0 0
        %1893 = vmatpush2.bf16.msra.mxu0 0
        %1894 = vmatprep.subr.bf16.mxu0 0
        %1895 = vmatpush2.bf16.msra.mxu0 0
        %1896 = vmatprep.subr.bf16.mxu0 0
        %1897 = vmatpush2.bf16.msra.mxu0 0
        %1898 = vmatprep.mubr.bf16.mxu0 0
        %1899 = vmatmul.mubr.bf16.gmra.mxu0 %v1810
        %v1900 = vpop.f32.mrf.mxu0
        %v1901 = vadd.f32 0.0, %v1900
        %v1902 = vpop.f32.mrf.mxu0
        %v1903 = vpop.f32.mrf.mxu0
        %v1904 = vadd.f32 0.0, %v1903
        %v1905 = vpop.f32.mrf.mxu0
        %1906 = vmatprep.mubr.bf16.mxu0 0
        %1907 = vmatmul.mubr.bf16.gmra.mxu0 %v1811
        %v1908 = vpop.f32.mrf.mxu0
        %v1909 = vadd.f32 0.0, %v1908
        %v1910 = vpop.f32.mrf.mxu0
        %v1911 = vpop.f32.mrf.mxu0
        %v1912 = vadd.f32 0.0, %v1911
        %v1913 = vpop.f32.mrf.mxu0
        %1914 = vmatprep.mubr.bf16.mxu0 0
        %1915 = vmatmul.mubr.bf16.gmra.mxu0 %v1812
        %v1916 = vpop.f32.mrf.mxu0
        %v1917 = vadd.f32 0.0, %v1916
        %v1918 = vpop.f32.mrf.mxu0
        %v1919 = vpop.f32.mrf.mxu0
        %v1920 = vadd.f32 0.0, %v1919
        %v1921 = vpop.f32.mrf.mxu0
        %1922 = vmatprep.mubr.bf16.mxu0 0
        %1923 = vmatmul.mubr.bf16.gmra.mxu0 %v1813
        %v1924 = vpop.f32.mrf.mxu0
        %v1925 = vadd.f32 0.0, %v1924
        %v1926 = vpop.f32.mrf.mxu0
        %v1927 = vpop.f32.mrf.mxu0
        %v1928 = vadd.f32 0.0, %v1927
        %v1929 = vpop.f32.mrf.mxu0
        %1930 = vdwg.mxu0
        %v1931 = vadd.f32 %v1760, %v1901
        %v1932 = vadd.f32 %v1761, %v1904
        %v1933 = vadd.f32 %v1762, %v1909
        %v1934 = vadd.f32 %v1763, %v1912
        %v1935 = vadd.f32 %v1764, %v1917
        %v1936 = vadd.f32 %v1765, %v1920
        %v1937 = vadd.f32 %v1766, %v1925
        %v1938 = vadd.f32 %v1767, %v1928
        %v1939 = vld [vmem:[%s1597] sm:$0xf]
        %v1940 = vld [vmem:[%s1597 + $0x4] sm:$0x1]
        %v1941 = vld [vmem:[%s1597 + $0x8] sm:$0xf]
        %v1942 = vld [vmem:[%s1597 + $0xc] sm:$0x1]
        %v1943 = vld [vmem:[%s1597 + $0x10] sm:$0xf]
        %v1944 = vld [vmem:[%s1597 + $0x14] sm:$0x1]
        %v1945 = vld [vmem:[%s1597 + $0x18] sm:$0xf]
        %v1946 = vld [vmem:[%s1597 + $0x1c] sm:$0x1]
        %v1947 = vld [vmem:[%s1597 + $0x20] sm:$0xf]
        %v1948 = vld [vmem:[%s1597 + $0x24] sm:$0x1]
        %v1949 = vld [vmem:[%s1597 + $0x28] sm:$0xf]
        %v1950 = vld [vmem:[%s1597 + $0x2c] sm:$0x1]
        %v1951 = vld [vmem:[%s1597 + $0x30] sm:$0xf]
        %v1952 = vld [vmem:[%s1597 + $0x34] sm:$0x1]
        %v1953 = vld [vmem:[%s1597 + $0x38] sm:$0xf]
        %v1954 = vld [vmem:[%s1597 + $0x3c] sm:$0x1]
        %v1956 = vshrl.u32 %v1939, 16
        %v1958 = vrot.slane %v1956, 4
        %v1959 = vshll.u32 %v1939, 16
        %v1961 = vrot.slane %v1959, 5
        %v1962 = vor.u32 %v1958, %v1961
        %v1963 = vrot.slane %v1962, 4
        %v1965 = vshll.u32 %v1940, 16
        %v1967 = vrot.slane %v1965, 5
        %v1968 = vsel %vm706, %v1963, %v1967
        %v1970 = vshrl.u32 %v1941, 16
        %v1972 = vrot.slane %v1970, 4
        %v1973 = vshll.u32 %v1941, 16
        %v1975 = vrot.slane %v1973, 5
        %v1976 = vor.u32 %v1972, %v1975
        %v1977 = vrot.slane %v1976, 4
        %v1979 = vshll.u32 %v1942, 16
        %v1981 = vrot.slane %v1979, 5
        %v1982 = vsel %vm706, %v1977, %v1981
        %v1984 = vshrl.u32 %v1943, 16
        %v1986 = vrot.slane %v1984, 4
        %v1987 = vshll.u32 %v1943, 16
        %v1989 = vrot.slane %v1987, 5
        %v1990 = vor.u32 %v1986, %v1989
        %v1991 = vrot.slane %v1990, 4
        %v1993 = vshll.u32 %v1944, 16
        %v1995 = vrot.slane %v1993, 5
        %v1996 = vsel %vm706, %v1991, %v1995
        %v1998 = vshrl.u32 %v1945, 16
        %v2000 = vrot.slane %v1998, 4
        %v2001 = vshll.u32 %v1945, 16
        %v2003 = vrot.slane %v2001, 5
        %v2004 = vor.u32 %v2000, %v2003
        %v2005 = vrot.slane %v2004, 4
        %v2007 = vshll.u32 %v1946, 16
        %v2009 = vrot.slane %v2007, 5
        %v2010 = vsel %vm706, %v2005, %v2009
        %v2012 = vshrl.u32 %v1947, 16
        %v2014 = vrot.slane %v2012, 4
        %v2015 = vshll.u32 %v1947, 16
        %v2017 = vrot.slane %v2015, 5
        %v2018 = vor.u32 %v2014, %v2017
        %v2019 = vrot.slane %v2018, 4
        %v2021 = vshll.u32 %v1948, 16
        %v2023 = vrot.slane %v2021, 5
        %v2024 = vsel %vm706, %v2019, %v2023
        %v2026 = vshrl.u32 %v1949, 16
        %v2028 = vrot.slane %v2026, 4
        %v2029 = vshll.u32 %v1949, 16
        %v2031 = vrot.slane %v2029, 5
        %v2032 = vor.u32 %v2028, %v2031
        %v2033 = vrot.slane %v2032, 4
        %v2035 = vshll.u32 %v1950, 16
        %v2037 = vrot.slane %v2035, 5
        %v2038 = vsel %vm706, %v2033, %v2037
        %v2040 = vshrl.u32 %v1951, 16
        %v2042 = vrot.slane %v2040, 4
        %v2043 = vshll.u32 %v1951, 16
        %v2045 = vrot.slane %v2043, 5
        %v2046 = vor.u32 %v2042, %v2045
        %v2047 = vrot.slane %v2046, 4
        %v2049 = vshll.u32 %v1952, 16
        %v2051 = vrot.slane %v2049, 5
        %v2052 = vsel %vm706, %v2047, %v2051
        %v2054 = vshrl.u32 %v1953, 16
        %v2056 = vrot.slane %v2054, 4
        %v2057 = vshll.u32 %v1953, 16
        %v2059 = vrot.slane %v2057, 5
        %v2060 = vor.u32 %v2056, %v2059
        %v2061 = vrot.slane %v2060, 4
        %v2063 = vshll.u32 %v1954, 16
        %v2065 = vrot.slane %v2063, 5
        %v2066 = vsel %vm706, %v2061, %v2065
        %s2067 = scalar_lea.vmem %s1, 512
        %v2068 = vld [vmem:[%s2067] sm:$0xf]
        %v2069 = vld [vmem:[%s2067 + $0x4] sm:$0xf]
        %v2070 = vld [vmem:[%s2067 + $0x8] sm:$0xf]
        %v2071 = vld [vmem:[%s2067 + $0xc] sm:$0xf]
        %v2072 = vld [vmem:[%s2067 + $0x10] sm:$0xf]
        %v2073 = vld [vmem:[%s2067 + $0x14] sm:$0xf]
        %v2074 = vld [vmem:[%s2067 + $0x18] sm:$0xf]
        %v2075 = vld [vmem:[%s2067 + $0x1c] sm:$0xf]
        %v2076 = vld [vmem:[%s2067 + $0x20] sm:$0xf]
        %v2077 = vld [vmem:[%s2067 + $0x24] sm:$0xf]
        %v2078 = vld [vmem:[%s2067 + $0x28] sm:$0xf]
        %v2079 = vld [vmem:[%s2067 + $0x2c] sm:$0xf]
        %v2080 = vld [vmem:[%s2067 + $0x30] sm:$0xf]
        %v2081 = vld [vmem:[%s2067 + $0x34] sm:$0xf]
        %v2082 = vld [vmem:[%s2067 + $0x38] sm:$0xf]
        %v2083 = vld [vmem:[%s2067 + $0x3c] sm:$0xf]
        %v2084 = vunpack.c.l.b16 %v1968
        %v2085 = vunpack.c.l.b16 %v1982
        %v2086 = vunpack.c.l.b16 %v1996
        %v2087 = vunpack.c.l.b16 %v2010
        %v2088 = vunpack.c.l.b16 %v2024
        %v2089 = vunpack.c.l.b16 %v2038
        %v2090 = vunpack.c.l.b16 %v2052
        %v2091 = vunpack.c.l.b16 %v2066
        %v2092 = vpack.c.b16 %v2085, %v2084
        %v2093 = vpack.c.b16 %v2087, %v2086
        %v2094 = vpack.c.b16 %v2089, %v2088
        %v2095 = vpack.c.b16 %v2091, %v2090
        %v2116 = vunpack.c.l.b16 %v2068
        %v2117 = vunpack.c.l.b16 %v2069
        %v2118 = vunpack.c.l.b16 %v2070
        %v2119 = vunpack.c.l.b16 %v2071
        %v2120 = vunpack.c.l.b16 %v2072
        %v2121 = vunpack.c.l.b16 %v2073
        %v2122 = vunpack.c.l.b16 %v2074
        %v2123 = vunpack.c.l.b16 %v2075
        %v2124 = vunpack.c.l.b16 %v2076
        %v2125 = vunpack.c.l.b16 %v2077
        %v2126 = vunpack.c.l.b16 %v2078
        %v2127 = vunpack.c.l.b16 %v2079
        %v2128 = vunpack.c.l.b16 %v2080
        %v2129 = vunpack.c.l.b16 %v2081
        %v2130 = vunpack.c.l.b16 %v2082
        %v2131 = vunpack.c.l.b16 %v2083
        %v2132 = vpack.c.b16 %v2117, %v2116
        %v2133 = vpack.c.b16 %v2119, %v2118
        %v2134 = vpack.c.b16 %v2121, %v2120
        %v2135 = vpack.c.b16 %v2123, %v2122
        %v2136 = vpack.c.b16 %v2125, %v2124
        %v2137 = vpack.c.b16 %v2127, %v2126
        %v2138 = vpack.c.b16 %v2129, %v2128
        %v2139 = vpack.c.b16 %v2131, %v2130
        %2148 = vmatprep.subr.bf16.mxu0 0
        %2149 = vmatpush1.bf16.msra.mxu0 %v2139
        %2150 = vmatprep.subr.bf16.mxu0 0
        %2151 = vmatpush1.bf16.msra.mxu0 %v2138
        %2152 = vmatprep.subr.bf16.mxu0 0
        %2153 = vmatpush1.bf16.msra.mxu0 %v2137
        %2154 = vmatprep.subr.bf16.mxu0 0
        %2155 = vmatpush1.bf16.msra.mxu0 %v2136
        %2156 = vmatprep.subr.bf16.mxu0 0
        %2157 = vmatpush1.bf16.msra.mxu0 %v2135
        %2158 = vmatprep.subr.bf16.mxu0 0
        %2159 = vmatpush1.bf16.msra.mxu0 %v2134
        %2160 = vmatprep.subr.bf16.mxu0 0
        %2161 = vmatpush1.bf16.msra.mxu0 %v2133
        %2162 = vmatprep.subr.bf16.mxu0 0
        %2163 = vmatpush1.bf16.msra.mxu0 %v2132
        %2164 = vmatprep.subr.bf16.mxu0 0
        %2165 = vmatpush2.bf16.msra.mxu0 0
        %2166 = vmatprep.subr.bf16.mxu0 0
        %2167 = vmatpush2.bf16.msra.mxu0 0
        %2168 = vmatprep.subr.bf16.mxu0 0
        %2169 = vmatpush2.bf16.msra.mxu0 0
        %2170 = vmatprep.subr.bf16.mxu0 0
        %2171 = vmatpush2.bf16.msra.mxu0 0
        %2172 = vmatprep.subr.bf16.mxu0 0
        %2173 = vmatpush2.bf16.msra.mxu0 0
        %2174 = vmatprep.subr.bf16.mxu0 0
        %2175 = vmatpush2.bf16.msra.mxu0 0
        %2176 = vmatprep.subr.bf16.mxu0 0
        %2177 = vmatpush2.bf16.msra.mxu0 0
        %2178 = vmatprep.subr.bf16.mxu0 0
        %2179 = vmatpush2.bf16.msra.mxu0 0
        %2180 = vmatprep.mubr.bf16.mxu0 0
        %2181 = vmatmul.mubr.bf16.gmra.mxu0 %v2092
        %v2182 = vpop.f32.mrf.mxu0
        %v2183 = vadd.f32 0.0, %v2182
        %v2184 = vpop.f32.mrf.mxu0
        %v2185 = vpop.f32.mrf.mxu0
        %v2186 = vadd.f32 0.0, %v2185
        %v2187 = vpop.f32.mrf.mxu0
        %2188 = vmatprep.mubr.bf16.mxu0 0
        %2189 = vmatmul.mubr.bf16.gmra.mxu0 %v2093
        %v2190 = vpop.f32.mrf.mxu0
        %v2191 = vadd.f32 0.0, %v2190
        %v2192 = vpop.f32.mrf.mxu0
        %v2193 = vpop.f32.mrf.mxu0
        %v2194 = vadd.f32 0.0, %v2193
        %v2195 = vpop.f32.mrf.mxu0
        %2196 = vmatprep.mubr.bf16.mxu0 0
        %2197 = vmatmul.mubr.bf16.gmra.mxu0 %v2094
        %v2198 = vpop.f32.mrf.mxu0
        %v2199 = vadd.f32 0.0, %v2198
        %v2200 = vpop.f32.mrf.mxu0
        %v2201 = vpop.f32.mrf.mxu0
        %v2202 = vadd.f32 0.0, %v2201
        %v2203 = vpop.f32.mrf.mxu0
        %2204 = vmatprep.mubr.bf16.mxu0 0
        %2205 = vmatmul.mubr.bf16.gmra.mxu0 %v2095
        %v2206 = vpop.f32.mrf.mxu0
        %v2207 = vadd.f32 0.0, %v2206
        %v2208 = vpop.f32.mrf.mxu0
        %v2209 = vpop.f32.mrf.mxu0
        %v2210 = vadd.f32 0.0, %v2209
        %v2211 = vpop.f32.mrf.mxu0
        %2212 = vdwg.mxu0
        %v2213 = vadd.f32 %v1931, %v2183
        %v2214 = vadd.f32 %v1932, %v2186
        %v2215 = vadd.f32 %v1933, %v2191
        %v2216 = vadd.f32 %v1934, %v2194
        %v2217 = vadd.f32 %v1935, %v2199
        %v2218 = vadd.f32 %v1936, %v2202
        %v2219 = vadd.f32 %v1937, %v2207
        %v2220 = vadd.f32 %v1938, %v2210
        %v2221 = vld [vmem:[%s2] sm:$0x1]
        %v2223 = vlaneseq
        %v2224 = vshrl.u32 %v2223, 7
        %v2225 = vsub.s32 0, %v2224
        %v2226 = vrot.slane %v2221, %v2225
        %v2228 = vmul.f32 %v2213, %v2226
        %v2229 = vmul.f32 %v2214, %v2226
        %v2230 = vmul.f32 %v2215, %v2226
        %v2231 = vmul.f32 %v2216, %v2226
        %v2232 = vmul.f32 %v2217, %v2226
        %v2233 = vmul.f32 %v2218, %v2226
        %v2234 = vmul.f32 %v2219, %v2226
        %v2235 = vmul.f32 %v2220, %v2226
        %v2236 = vld [vmem:[%s3] sm:$0x1]
        %v2238 = vlaneseq
        %v2239 = vshrl.u32 %v2238, 7
        %v2240 = vsub.s32 0, %v2239
        %v2241 = vrot.slane %v2236, %v2240
        %v2243 = vadd.f32 %v2228, %v2241
        %v2244 = vadd.f32 %v2229, %v2241
        %v2245 = vadd.f32 %v2230, %v2241
        %v2246 = vadd.f32 %v2231, %v2241
        %v2247 = vadd.f32 %v2232, %v2241
        %v2248 = vadd.f32 %v2233, %v2241
        %v2249 = vadd.f32 %v2234, %v2241
        %v2250 = vadd.f32 %v2235, %v2241
        %v2251 = vmax.f32 %v2243, 0.0
        %v2252 = vmax.f32 %v2244, 0.0
        %v2253 = vmax.f32 %v2245, 0.0
        %v2254 = vmax.f32 %v2246, 0.0
        %v2255 = vmax.f32 %v2247, 0.0
        %v2256 = vmax.f32 %v2248, 0.0
        %v2257 = vmax.f32 %v2249, 0.0
        %v2258 = vmax.f32 %v2250, 0.0
        %2259 = vst [vmem:[#allocation2] sm:$0xf] 0
        %2260 = vst [vmem:[#allocation2 + $0x4] sm:$0x1] 0
        %2261 = vst [vmem:[#allocation2 + $0x8] sm:$0xf] 0
        %2262 = vst [vmem:[#allocation2 + $0xc] sm:$0x1] 0
        %2263 = vst [vmem:[#allocation2 + $0x10] sm:$0xf] 0
        %2264 = vst [vmem:[#allocation2 + $0x14] sm:$0x1] 0
        %2265 = vst [vmem:[#allocation2 + $0x18] sm:$0xf] 0
        %2266 = vst [vmem:[#allocation2 + $0x1c] sm:$0x1] 0
        %2267 = vst [vmem:[#allocation2 + $0x20] sm:$0xf] 0
        %2268 = vst [vmem:[#allocation2 + $0x24] sm:$0x1] 0
        %2269 = vst [vmem:[#allocation2 + $0x28] sm:$0xf] 0
        %2270 = vst [vmem:[#allocation2 + $0x2c] sm:$0x1] 0
        %2271 = vst [vmem:[#allocation2 + $0x30] sm:$0xf] 0
        %2272 = vst [vmem:[#allocation2 + $0x34] sm:$0x1] 0
        %2273 = vst [vmem:[#allocation2 + $0x38] sm:$0xf] 0
        %2274 = vst [vmem:[#allocation2 + $0x3c] sm:$0x1] 0
        %2275 = vst [vmem:[#allocation2 + $0x40] sm:$0xf] 0
        %2276 = vst [vmem:[#allocation2 + $0x44] sm:$0x1] 0
        %2277 = vst [vmem:[#allocation2 + $0x48] sm:$0xf] 0
        %2278 = vst [vmem:[#allocation2 + $0x4c] sm:$0x1] 0
        %v2279 = vpack.c.bf16 %v2251, %v2251
        %v2280 = vpack.c.bf16 %v2252, %v2252
        %v2281 = vpack.c.bf16 %v2253, %v2253
        %v2282 = vpack.c.bf16 %v2254, %v2254
        %v2283 = vpack.c.bf16 %v2255, %v2255
        %v2284 = vpack.c.bf16 %v2256, %v2256
        %v2285 = vpack.c.bf16 %v2257, %v2257
        %v2286 = vpack.c.bf16 %v2258, %v2258
        %v2295 = vunpack.c.l.b16 %v2279
        %v2296 = vunpack.c.l.b16 %v2280
        %v2297 = vunpack.c.l.b16 %v2281
        %v2298 = vunpack.c.l.b16 %v2282
        %v2299 = vunpack.c.l.b16 %v2283
        %v2300 = vunpack.c.l.b16 %v2284
        %v2301 = vunpack.c.l.b16 %v2285
        %v2302 = vunpack.c.l.b16 %v2286
        %v2303 = vpack.c.b16 %v2295, %v2295
        %v2304 = vpack.c.b16 %v2296, %v2296
        %v2305 = vpack.c.b16 %v2297, %v2297
        %v2306 = vpack.c.b16 %v2298, %v2298
        %v2307 = vpack.c.b16 %v2299, %v2299
        %v2308 = vpack.c.b16 %v2300, %v2300
        %v2309 = vpack.c.b16 %v2301, %v2301
        %v2310 = vpack.c.b16 %v2302, %v2302
        %v2312 = vshrl.u32 %v2303, 16
        %v2314 = vrot.slane %v2312, 7
        %v2315 = vshll.u32 %v2303, 16
        %v2317 = vor.u32 %v2314, %v2315
        %v2318 = vrot.slane %v2314, 4
        %v2320 = vshrl.u32 %v2304, 16
        %v2322 = vrot.slane %v2320, 7
        %v2323 = vshll.u32 %v2304, 16
        %v2325 = vor.u32 %v2322, %v2323
        %v2326 = vrot.slane %v2322, 4
        %v2328 = vshrl.u32 %v2305, 16
        %v2330 = vrot.slane %v2328, 7
        %v2331 = vshll.u32 %v2305, 16
        %v2333 = vor.u32 %v2330, %v2331
        %v2334 = vrot.slane %v2330, 4
        %v2336 = vshrl.u32 %v2306, 16
        %v2338 = vrot.slane %v2336, 7
        %v2339 = vshll.u32 %v2306, 16
        %v2341 = vor.u32 %v2338, %v2339
        %v2342 = vrot.slane %v2338, 4
        %v2344 = vshrl.u32 %v2307, 16
        %v2346 = vrot.slane %v2344, 7
        %v2347 = vshll.u32 %v2307, 16
        %v2349 = vor.u32 %v2346, %v2347
        %v2350 = vrot.slane %v2346, 4
        %v2352 = vshrl.u32 %v2308, 16
        %v2354 = vrot.slane %v2352, 7
        %v2355 = vshll.u32 %v2308, 16
        %v2357 = vor.u32 %v2354, %v2355
        %v2358 = vrot.slane %v2354, 4
        %v2360 = vshrl.u32 %v2309, 16
        %v2362 = vrot.slane %v2360, 7
        %v2363 = vshll.u32 %v2309, 16
        %v2365 = vor.u32 %v2362, %v2363
        %v2366 = vrot.slane %v2362, 4
        %v2368 = vshrl.u32 %v2310, 16
        %v2370 = vrot.slane %v2368, 7
        %v2371 = vshll.u32 %v2310, 16
        %v2373 = vor.u32 %v2370, %v2371
        %v2374 = vrot.slane %v2370, 4
        %s2391 = scalar_lea.vmem [#allocation2], 8
        %vm2392 = vcmask 1043456
        %vm2393 = vsmask.f32 7938
        %vm2394 = vmand %vm2392, %vm2393
        %v2395 = vld [vmem:[%s2391] sm:$0xf]
        %v2396 = vsel %vm2394, %v2317, %v2395
        %2397 = vst [vmem:[%s2391] sm:$0xf] %v2396
        %vm2398 = vcmask 1040384
        %vm2399 = vsmask.f32 256
        %vm2400 = vmand %vm2398, %vm2399
        %v2401 = vld [vmem:[%s2391 + $0x4] sm:$0x1]
        %v2402 = vsel %vm2400, %v2318, %v2401
        %2403 = vst [vmem:[%s2391 + $0x4] sm:$0x1] %v2402
        %v2404 = vld [vmem:[%s2391 + $0x8] sm:$0xf]
        %v2405 = vsel %vm2394, %v2325, %v2404
        %2406 = vst [vmem:[%s2391 + $0x8] sm:$0xf] %v2405
        %v2407 = vld [vmem:[%s2391 + $0xc] sm:$0x1]
        %v2408 = vsel %vm2400, %v2326, %v2407
        %2409 = vst [vmem:[%s2391 + $0xc] sm:$0x1] %v2408
        %v2410 = vld [vmem:[%s2391 + $0x10] sm:$0xf]
        %v2411 = vsel %vm2394, %v2333, %v2410
        %2412 = vst [vmem:[%s2391 + $0x10] sm:$0xf] %v2411
        %v2413 = vld [vmem:[%s2391 + $0x14] sm:$0x1]
        %v2414 = vsel %vm2400, %v2334, %v2413
        %2415 = vst [vmem:[%s2391 + $0x14] sm:$0x1] %v2414
        %v2416 = vld [vmem:[%s2391 + $0x18] sm:$0xf]
        %v2417 = vsel %vm2394, %v2341, %v2416
        %2418 = vst [vmem:[%s2391 + $0x18] sm:$0xf] %v2417
        %v2419 = vld [vmem:[%s2391 + $0x1c] sm:$0x1]
        %v2420 = vsel %vm2400, %v2342, %v2419
        %2421 = vst [vmem:[%s2391 + $0x1c] sm:$0x1] %v2420
        %v2422 = vld [vmem:[%s2391 + $0x20] sm:$0xf]
        %v2423 = vsel %vm2394, %v2349, %v2422
        %2424 = vst [vmem:[%s2391 + $0x20] sm:$0xf] %v2423
        %v2425 = vld [vmem:[%s2391 + $0x24] sm:$0x1]
        %v2426 = vsel %vm2400, %v2350, %v2425
        %2427 = vst [vmem:[%s2391 + $0x24] sm:$0x1] %v2426
        %v2428 = vld [vmem:[%s2391 + $0x28] sm:$0xf]
        %v2429 = vsel %vm2394, %v2357, %v2428
        %2430 = vst [vmem:[%s2391 + $0x28] sm:$0xf] %v2429
        %v2431 = vld [vmem:[%s2391 + $0x2c] sm:$0x1]
        %v2432 = vsel %vm2400, %v2358, %v2431
        %2433 = vst [vmem:[%s2391 + $0x2c] sm:$0x1] %v2432
        %v2434 = vld [vmem:[%s2391 + $0x30] sm:$0xf]
        %v2435 = vsel %vm2394, %v2365, %v2434
        %2436 = vst [vmem:[%s2391 + $0x30] sm:$0xf] %v2435
        %v2437 = vld [vmem:[%s2391 + $0x34] sm:$0x1]
        %v2438 = vsel %vm2400, %v2366, %v2437
        %2439 = vst [vmem:[%s2391 + $0x34] sm:$0x1] %v2438
        %v2440 = vld [vmem:[%s2391 + $0x38] sm:$0xf]
        %v2441 = vsel %vm2394, %v2373, %v2440
        %2442 = vst [vmem:[%s2391 + $0x38] sm:$0xf] %v2441
        %v2443 = vld [vmem:[%s2391 + $0x3c] sm:$0x1]
        %v2444 = vsel %vm2400, %v2374, %v2443
        %2445 = vst [vmem:[%s2391 + $0x3c] sm:$0x1] %v2444
        %v2446 = vld [vmem:[#allocation2] sm:$0xf]
        %v2447 = vld [vmem:[#allocation2 + $0x8] sm:$0xf]
        %v2448 = vld [vmem:[#allocation2 + $0x10] sm:$0xf]
        %v2449 = vld [vmem:[#allocation2 + $0x18] sm:$0xf]
        %v2450 = vld [vmem:[#allocation2 + $0x20] sm:$0xf]
        %v2451 = vld [vmem:[#allocation2 + $0x28] sm:$0xf]
        %v2452 = vld [vmem:[#allocation2 + $0x30] sm:$0xf]
        %v2453 = vld [vmem:[#allocation2 + $0x38] sm:$0xf]
        %v2454 = vld [vmem:[%s4] sm:$0xf]
        %v2455 = vld [vmem:[%s4 + $0x4] sm:$0xf]
        %v2456 = vld [vmem:[%s4 + $0x8] sm:$0xf]
        %v2457 = vld [vmem:[%s4 + $0xc] sm:$0xf]
        %v2458 = vld [vmem:[%s4 + $0x10] sm:$0xf]
        %v2459 = vld [vmem:[%s4 + $0x14] sm:$0xf]
        %v2460 = vld [vmem:[%s4 + $0x18] sm:$0xf]
        %v2461 = vld [vmem:[%s4 + $0x1c] sm:$0xf]
        %v2462 = vld [vmem:[%s4 + $0x20] sm:$0xf]
        %v2463 = vld [vmem:[%s4 + $0x24] sm:$0xf]
        %v2464 = vld [vmem:[%s4 + $0x28] sm:$0xf]
        %v2465 = vld [vmem:[%s4 + $0x2c] sm:$0xf]
        %v2466 = vld [vmem:[%s4 + $0x30] sm:$0xf]
        %v2467 = vld [vmem:[%s4 + $0x34] sm:$0xf]
        %v2468 = vld [vmem:[%s4 + $0x38] sm:$0xf]
        %v2469 = vld [vmem:[%s4 + $0x3c] sm:$0xf]
        %v2470 = vld [vmem:[#allocation2 + $0x4] sm:$0x1]
        %v2471 = vld [vmem:[#allocation2 + $0xc] sm:$0x1]
        %v2472 = vld [vmem:[#allocation2 + $0x14] sm:$0x1]
        %v2473 = vld [vmem:[#allocation2 + $0x1c] sm:$0x1]
        %v2474 = vld [vmem:[#allocation2 + $0x24] sm:$0x1]
        %v2475 = vld [vmem:[#allocation2 + $0x2c] sm:$0x1]
        %v2476 = vld [vmem:[#allocation2 + $0x34] sm:$0x1]
        %v2477 = vld [vmem:[#allocation2 + $0x3c] sm:$0x1]
        %v2479 = vshrl.u32 %v2446, 16
        %v2481 = vrot.slane %v2479, 4
        %v2482 = vshll.u32 %v2446, 16
        %v2484 = vrot.slane %v2482, 5
        %v2485 = vor.u32 %v2481, %v2484
        %v2486 = vrot.slane %v2485, 4
        %v2488 = vshll.u32 %v2470, 16
        %v2490 = vrot.slane %v2488, 5
        %v2491 = vsel %vm706, %v2486, %v2490
        %v2493 = vshrl.u32 %v2447, 16
        %v2495 = vrot.slane %v2493, 4
        %v2496 = vshll.u32 %v2447, 16
        %v2498 = vrot.slane %v2496, 5
        %v2499 = vor.u32 %v2495, %v2498
        %v2500 = vrot.slane %v2499, 4
        %v2502 = vshll.u32 %v2471, 16
        %v2504 = vrot.slane %v2502, 5
        %v2505 = vsel %vm706, %v2500, %v2504
        %v2507 = vshrl.u32 %v2448, 16
        %v2509 = vrot.slane %v2507, 4
        %v2510 = vshll.u32 %v2448, 16
        %v2512 = vrot.slane %v2510, 5
        %v2513 = vor.u32 %v2509, %v2512
        %v2514 = vrot.slane %v2513, 4
        %v2516 = vshll.u32 %v2472, 16
        %v2518 = vrot.slane %v2516, 5
        %v2519 = vsel %vm706, %v2514, %v2518
        %v2521 = vshrl.u32 %v2449, 16
        %v2523 = vrot.slane %v2521, 4
        %v2524 = vshll.u32 %v2449, 16
        %v2526 = vrot.slane %v2524, 5
        %v2527 = vor.u32 %v2523, %v2526
        %v2528 = vrot.slane %v2527, 4
        %v2530 = vshll.u32 %v2473, 16
        %v2532 = vrot.slane %v2530, 5
        %v2533 = vsel %vm706, %v2528, %v2532
        %v2535 = vshrl.u32 %v2450, 16
        %v2537 = vrot.slane %v2535, 4
        %v2538 = vshll.u32 %v2450, 16
        %v2540 = vrot.slane %v2538, 5
        %v2541 = vor.u32 %v2537, %v2540
        %v2542 = vrot.slane %v2541, 4
        %v2544 = vshll.u32 %v2474, 16
        %v2546 = vrot.slane %v2544, 5
        %v2547 = vsel %vm706, %v2542, %v2546
        %v2549 = vshrl.u32 %v2451, 16
        %v2551 = vrot.slane %v2549, 4
        %v2552 = vshll.u32 %v2451, 16
        %v2554 = vrot.slane %v2552, 5
        %v2555 = vor.u32 %v2551, %v2554
        %v2556 = vrot.slane %v2555, 4
        %v2558 = vshll.u32 %v2475, 16
        %v2560 = vrot.slane %v2558, 5
        %v2561 = vsel %vm706, %v2556, %v2560
        %v2563 = vshrl.u32 %v2452, 16
        %v2565 = vrot.slane %v2563, 4
        %v2566 = vshll.u32 %v2452, 16
        %v2568 = vrot.slane %v2566, 5
        %v2569 = vor.u32 %v2565, %v2568
        %v2570 = vrot.slane %v2569, 4
        %v2572 = vshll.u32 %v2476, 16
        %v2574 = vrot.slane %v2572, 5
        %v2575 = vsel %vm706, %v2570, %v2574
        %v2577 = vshrl.u32 %v2453, 16
        %v2579 = vrot.slane %v2577, 4
        %v2580 = vshll.u32 %v2453, 16
        %v2582 = vrot.slane %v2580, 5
        %v2583 = vor.u32 %v2579, %v2582
        %v2584 = vrot.slane %v2583, 4
        %v2586 = vshll.u32 %v2477, 16
        %v2588 = vrot.slane %v2586, 5
        %v2589 = vsel %vm706, %v2584, %v2588
        %s2590 = scalar_lea.vmem %s4, 64
        %v2591 = vld [vmem:[%s2590] sm:$0xf]
        %v2592 = vld [vmem:[%s2590 + $0x4] sm:$0xf]
        %v2593 = vld [vmem:[%s2590 + $0x8] sm:$0xf]
        %v2594 = vld [vmem:[%s2590 + $0xc] sm:$0xf]
        %v2595 = vld [vmem:[%s2590 + $0x10] sm:$0xf]
        %v2596 = vld [vmem:[%s2590 + $0x14] sm:$0xf]
        %v2597 = vld [vmem:[%s2590 + $0x18] sm:$0xf]
        %v2598 = vld [vmem:[%s2590 + $0x1c] sm:$0xf]
        %v2599 = vld [vmem:[%s2590 + $0x20] sm:$0xf]
        %v2600 = vld [vmem:[%s2590 + $0x24] sm:$0xf]
        %v2601 = vld [vmem:[%s2590 + $0x28] sm:$0xf]
        %v2602 = vld [vmem:[%s2590 + $0x2c] sm:$0xf]
        %v2603 = vld [vmem:[%s2590 + $0x30] sm:$0xf]
        %v2604 = vld [vmem:[%s2590 + $0x34] sm:$0xf]
        %v2605 = vld [vmem:[%s2590 + $0x38] sm:$0xf]
        %v2606 = vld [vmem:[%s2590 + $0x3c] sm:$0xf]
        %v2607 = vunpack.c.l.b16 %v2491
        %v2608 = vunpack.c.l.b16 %v2505
        %v2609 = vunpack.c.l.b16 %v2519
        %v2610 = vunpack.c.l.b16 %v2533
        %v2611 = vunpack.c.l.b16 %v2547
        %v2612 = vunpack.c.l.b16 %v2561
        %v2613 = vunpack.c.l.b16 %v2575
        %v2614 = vunpack.c.l.b16 %v2589
        %v2615 = vpack.c.b16 %v2608, %v2607
        %v2616 = vpack.c.b16 %v2610, %v2609
        %v2617 = vpack.c.b16 %v2612, %v2611
        %v2618 = vpack.c.b16 %v2614, %v2613
        %v2639 = vunpack.c.l.b16 %v2591
        %v2640 = vunpack.c.l.b16 %v2592
        %v2641 = vunpack.c.l.b16 %v2593
        %v2642 = vunpack.c.l.b16 %v2594
        %v2643 = vunpack.c.l.b16 %v2595
        %v2644 = vunpack.c.l.b16 %v2596
        %v2645 = vunpack.c.l.b16 %v2597
        %v2646 = vunpack.c.l.b16 %v2598
        %v2647 = vunpack.c.l.b16 %v2599
        %v2648 = vunpack.c.l.b16 %v2600
        %v2649 = vunpack.c.l.b16 %v2601
        %v2650 = vunpack.c.l.b16 %v2602
        %v2651 = vunpack.c.l.b16 %v2603
        %v2652 = vunpack.c.l.b16 %v2604
        %v2653 = vunpack.c.l.b16 %v2605
        %v2654 = vunpack.c.l.b16 %v2606
        %v2655 = vpack.c.b16 %v2640, %v2639
        %v2656 = vpack.c.b16 %v2642, %v2641
        %v2657 = vpack.c.b16 %v2644, %v2643
        %v2658 = vpack.c.b16 %v2646, %v2645
        %v2659 = vpack.c.b16 %v2648, %v2647
        %v2660 = vpack.c.b16 %v2650, %v2649
        %v2661 = vpack.c.b16 %v2652, %v2651
        %v2662 = vpack.c.b16 %v2654, %v2653
        %2671 = vmatprep.subr.bf16.mxu0 0
        %2672 = vmatpush1.bf16.msra.mxu0 %v2662
        %2673 = vmatprep.subr.bf16.mxu0 0
        %2674 = vmatpush1.bf16.msra.mxu0 %v2661
        %2675 = vmatprep.subr.bf16.mxu0 0
        %2676 = vmatpush1.bf16.msra.mxu0 %v2660
        %2677 = vmatprep.subr.bf16.mxu0 0
        %2678 = vmatpush1.bf16.msra.mxu0 %v2659
        %2679 = vmatprep.subr.bf16.mxu0 0
        %2680 = vmatpush1.bf16.msra.mxu0 %v2658
        %2681 = vmatprep.subr.bf16.mxu0 0
        %2682 = vmatpush1.bf16.msra.mxu0 %v2657
        %2683 = vmatprep.subr.bf16.mxu0 0
        %2684 = vmatpush1.bf16.msra.mxu0 %v2656
        %2685 = vmatprep.subr.bf16.mxu0 0
        %2686 = vmatpush1.bf16.msra.mxu0 %v2655
        %2687 = vmatprep.subr.bf16.mxu0 0
        %2688 = vmatpush2.bf16.msra.mxu0 0
        %2689 = vmatprep.subr.bf16.mxu0 0
        %2690 = vmatpush2.bf16.msra.mxu0 0
        %2691 = vmatprep.subr.bf16.mxu0 0
        %2692 = vmatpush2.bf16.msra.mxu0 0
        %2693 = vmatprep.subr.bf16.mxu0 0
        %2694 = vmatpush2.bf16.msra.mxu0 0
        %2695 = vmatprep.subr.bf16.mxu0 0
        %2696 = vmatpush2.bf16.msra.mxu0 0
        %2697 = vmatprep.subr.bf16.mxu0 0
        %2698 = vmatpush2.bf16.msra.mxu0 0
        %2699 = vmatprep.subr.bf16.mxu0 0
        %2700 = vmatpush2.bf16.msra.mxu0 0
        %2701 = vmatprep.subr.bf16.mxu0 0
        %2702 = vmatpush2.bf16.msra.mxu0 0
        %2703 = vmatprep.mubr.bf16.mxu0 0
        %2704 = vmatmul.mubr.bf16.gmra.mxu0 %v2615
        %v2705 = vpop.f32.mrf.mxu0
        %v2706 = vadd.f32 0.0, %v2705
        %v2707 = vpop.f32.mrf.mxu0
        %v2708 = vpop.f32.mrf.mxu0
        %v2709 = vadd.f32 0.0, %v2708
        %v2710 = vpop.f32.mrf.mxu0
        %2711 = vmatprep.mubr.bf16.mxu0 0
        %2712 = vmatmul.mubr.bf16.gmra.mxu0 %v2616
        %v2713 = vpop.f32.mrf.mxu0
        %v2714 = vadd.f32 0.0, %v2713
        %v2715 = vpop.f32.mrf.mxu0
        %v2716 = vpop.f32.mrf.mxu0
        %v2717 = vadd.f32 0.0, %v2716
        %v2718 = vpop.f32.mrf.mxu0
        %2719 = vmatprep.mubr.bf16.mxu0 0
        %2720 = vmatmul.mubr.bf16.gmra.mxu0 %v2617
        %v2721 = vpop.f32.mrf.mxu0
        %v2722 = vadd.f32 0.0, %v2721
        %v2723 = vpop.f32.mrf.mxu0
        %v2724 = vpop.f32.mrf.mxu0
        %v2725 = vadd.f32 0.0, %v2724
        %v2726 = vpop.f32.mrf.mxu0
        %2727 = vmatprep.mubr.bf16.mxu0 0
        %2728 = vmatmul.mubr.bf16.gmra.mxu0 %v2618
        %v2729 = vpop.f32.mrf.mxu0
        %v2730 = vadd.f32 0.0, %v2729
        %v2731 = vpop.f32.mrf.mxu0
        %v2732 = vpop.f32.mrf.mxu0
        %v2733 = vadd.f32 0.0, %v2732
        %v2734 = vpop.f32.mrf.mxu0
        %2735 = vdwg.mxu0
        %v2744 = vunpack.c.l.b16 %v2446
        %v2745 = vunpack.c.l.b16 %v2447
        %v2746 = vunpack.c.l.b16 %v2448
        %v2747 = vunpack.c.l.b16 %v2449
        %v2748 = vunpack.c.l.b16 %v2450
        %v2749 = vunpack.c.l.b16 %v2451
        %v2750 = vunpack.c.l.b16 %v2452
        %v2751 = vunpack.c.l.b16 %v2453
        %v2752 = vpack.c.b16 %v2745, %v2744
        %v2753 = vpack.c.b16 %v2747, %v2746
        %v2754 = vpack.c.b16 %v2749, %v2748
        %v2755 = vpack.c.b16 %v2751, %v2750
        %v2776 = vunpack.c.l.b16 %v2454
        %v2777 = vunpack.c.l.b16 %v2455
        %v2778 = vunpack.c.l.b16 %v2456
        %v2779 = vunpack.c.l.b16 %v2457
        %v2780 = vunpack.c.l.b16 %v2458
        %v2781 = vunpack.c.l.b16 %v2459
        %v2782 = vunpack.c.l.b16 %v2460
        %v2783 = vunpack.c.l.b16 %v2461
        %v2784 = vunpack.c.l.b16 %v2462
        %v2785 = vunpack.c.l.b16 %v2463
        %v2786 = vunpack.c.l.b16 %v2464
        %v2787 = vunpack.c.l.b16 %v2465
        %v2788 = vunpack.c.l.b16 %v2466
        %v2789 = vunpack.c.l.b16 %v2467
        %v2790 = vunpack.c.l.b16 %v2468
        %v2791 = vunpack.c.l.b16 %v2469
        %v2792 = vpack.c.b16 %v2777, %v2776
        %v2793 = vpack.c.b16 %v2779, %v2778
        %v2794 = vpack.c.b16 %v2781, %v2780
        %v2795 = vpack.c.b16 %v2783, %v2782
        %v2796 = vpack.c.b16 %v2785, %v2784
        %v2797 = vpack.c.b16 %v2787, %v2786
        %v2798 = vpack.c.b16 %v2789, %v2788
        %v2799 = vpack.c.b16 %v2791, %v2790
        %2808 = vmatprep.subr.bf16.mxu0 0
        %2809 = vmatpush1.bf16.msra.mxu0 %v2799
        %2810 = vmatprep.subr.bf16.mxu0 0
        %2811 = vmatpush1.bf16.msra.mxu0 %v2798
        %2812 = vmatprep.subr.bf16.mxu0 0
        %2813 = vmatpush1.bf16.msra.mxu0 %v2797
        %2814 = vmatprep.subr.bf16.mxu0 0
        %2815 = vmatpush1.bf16.msra.mxu0 %v2796
        %2816 = vmatprep.subr.bf16.mxu0 0
        %2817 = vmatpush1.bf16.msra.mxu0 %v2795
        %2818 = vmatprep.subr.bf16.mxu0 0
        %2819 = vmatpush1.bf16.msra.mxu0 %v2794
        %2820 = vmatprep.subr.bf16.mxu0 0
        %2821 = vmatpush1.bf16.msra.mxu0 %v2793
        %2822 = vmatprep.subr.bf16.mxu0 0
        %2823 = vmatpush1.bf16.msra.mxu0 %v2792
        %2824 = vmatprep.subr.bf16.mxu0 0
        %2825 = vmatpush2.bf16.msra.mxu0 0
        %2826 = vmatprep.subr.bf16.mxu0 0
        %2827 = vmatpush2.bf16.msra.mxu0 0
        %2828 = vmatprep.subr.bf16.mxu0 0
        %2829 = vmatpush2.bf16.msra.mxu0 0
        %2830 = vmatprep.subr.bf16.mxu0 0
        %2831 = vmatpush2.bf16.msra.mxu0 0
        %2832 = vmatprep.subr.bf16.mxu0 0
        %2833 = vmatpush2.bf16.msra.mxu0 0
        %2834 = vmatprep.subr.bf16.mxu0 0
        %2835 = vmatpush2.bf16.msra.mxu0 0
        %2836 = vmatprep.subr.bf16.mxu0 0
        %2837 = vmatpush2.bf16.msra.mxu0 0
        %2838 = vmatprep.subr.bf16.mxu0 0
        %2839 = vmatpush2.bf16.msra.mxu0 0
        %2840 = vmatprep.mubr.bf16.mxu0 0
        %2841 = vmatmul.mubr.bf16.gmra.mxu0 %v2752
        %v2842 = vpop.f32.mrf.mxu0
        %v2843 = vadd.f32 %v2706, %v2842
        %v2844 = vpop.f32.mrf.mxu0
        %v2845 = vpop.f32.mrf.mxu0
        %v2846 = vadd.f32 %v2709, %v2845
        %v2847 = vpop.f32.mrf.mxu0
        %2848 = vmatprep.mubr.bf16.mxu0 0
        %2849 = vmatmul.mubr.bf16.gmra.mxu0 %v2753
        %v2850 = vpop.f32.mrf.mxu0
        %v2851 = vadd.f32 %v2714, %v2850
        %v2852 = vpop.f32.mrf.mxu0
        %v2853 = vpop.f32.mrf.mxu0
        %v2854 = vadd.f32 %v2717, %v2853
        %v2855 = vpop.f32.mrf.mxu0
        %2856 = vmatprep.mubr.bf16.mxu0 0
        %2857 = vmatmul.mubr.bf16.gmra.mxu0 %v2754
        %v2858 = vpop.f32.mrf.mxu0
        %v2859 = vadd.f32 %v2722, %v2858
        %v2860 = vpop.f32.mrf.mxu0
        %v2861 = vpop.f32.mrf.mxu0
        %v2862 = vadd.f32 %v2725, %v2861
        %v2863 = vpop.f32.mrf.mxu0
        %2864 = vmatprep.mubr.bf16.mxu0 0
        %2865 = vmatmul.mubr.bf16.gmra.mxu0 %v2755
        %v2866 = vpop.f32.mrf.mxu0
        %v2867 = vadd.f32 %v2730, %v2866
        %v2868 = vpop.f32.mrf.mxu0
        %v2869 = vpop.f32.mrf.mxu0
        %v2870 = vadd.f32 %v2733, %v2869
        %v2871 = vpop.f32.mrf.mxu0
        %2872 = vdwg.mxu0
        %v2873 = vld [vmem:[#allocation2] sm:$0xe]
        %v2874 = vld [vmem:[#allocation2 + $0x8] sm:$0xe]
        %v2875 = vld [vmem:[#allocation2 + $0x10] sm:$0xe]
        %v2876 = vld [vmem:[#allocation2 + $0x18] sm:$0xe]
        %v2877 = vld [vmem:[#allocation2 + $0x20] sm:$0xe]
        %v2878 = vld [vmem:[#allocation2 + $0x28] sm:$0xe]
        %v2879 = vld [vmem:[#allocation2 + $0x30] sm:$0xe]
        %v2880 = vld [vmem:[#allocation2 + $0x38] sm:$0xe]
        %vm2897 = vcmask 1042432
        %vm2898 = vcmask 1046532
        %vm2899 = vmor %vm2897, %vm2898
        %v2900 = vrot.slane %v2873, 5
        %v2901 = vrot.slane %v2900, 4
        %v2902 = vrot.slane %v2470, 5
        %v2903 = vsel %vm2899, %v2901, %v2902
        %v2904 = vrot.slane %v2874, 5
        %v2905 = vrot.slane %v2904, 4
        %v2906 = vrot.slane %v2471, 5
        %v2907 = vsel %vm2899, %v2905, %v2906
        %v2908 = vrot.slane %v2875, 5
        %v2909 = vrot.slane %v2908, 4
        %v2910 = vrot.slane %v2472, 5
        %v2911 = vsel %vm2899, %v2909, %v2910
        %v2912 = vrot.slane %v2876, 5
        %v2913 = vrot.slane %v2912, 4
        %v2914 = vrot.slane %v2473, 5
        %v2915 = vsel %vm2899, %v2913, %v2914
        %v2916 = vrot.slane %v2877, 5
        %v2917 = vrot.slane %v2916, 4
        %v2918 = vrot.slane %v2474, 5
        %v2919 = vsel %vm2899, %v2917, %v2918
        %v2920 = vrot.slane %v2878, 5
        %v2921 = vrot.slane %v2920, 4
        %v2922 = vrot.slane %v2475, 5
        %v2923 = vsel %vm2899, %v2921, %v2922
        %v2924 = vrot.slane %v2879, 5
        %v2925 = vrot.slane %v2924, 4
        %v2926 = vrot.slane %v2476, 5
        %v2927 = vsel %vm2899, %v2925, %v2926
        %v2928 = vrot.slane %v2880, 5
        %v2929 = vrot.slane %v2928, 4
        %v2930 = vrot.slane %v2477, 5
        %v2931 = vsel %vm2899, %v2929, %v2930
        %s2932 = scalar_lea.vmem %s4, 128
        %v2933 = vld [vmem:[%s2932] sm:$0xf]
        %v2934 = vld [vmem:[%s2932 + $0x4] sm:$0xf]
        %v2935 = vld [vmem:[%s2932 + $0x8] sm:$0xf]
        %v2936 = vld [vmem:[%s2932 + $0xc] sm:$0xf]
        %v2937 = vld [vmem:[%s2932 + $0x10] sm:$0xf]
        %v2938 = vld [vmem:[%s2932 + $0x14] sm:$0xf]
        %v2939 = vld [vmem:[%s2932 + $0x18] sm:$0xf]
        %v2940 = vld [vmem:[%s2932 + $0x1c] sm:$0xf]
        %v2941 = vld [vmem:[%s2932 + $0x20] sm:$0xf]
        %v2942 = vld [vmem:[%s2932 + $0x24] sm:$0xf]
        %v2943 = vld [vmem:[%s2932 + $0x28] sm:$0xf]
        %v2944 = vld [vmem:[%s2932 + $0x2c] sm:$0xf]
        %v2945 = vld [vmem:[%s2932 + $0x30] sm:$0xf]
        %v2946 = vld [vmem:[%s2932 + $0x34] sm:$0xf]
        %v2947 = vld [vmem:[%s2932 + $0x38] sm:$0xf]
        %v2948 = vld [vmem:[%s2932 + $0x3c] sm:$0xf]
        %v2949 = vunpack.c.l.b16 %v2903
        %v2950 = vunpack.c.l.b16 %v2907
        %v2951 = vunpack.c.l.b16 %v2911
        %v2952 = vunpack.c.l.b16 %v2915
        %v2953 = vunpack.c.l.b16 %v2919
        %v2954 = vunpack.c.l.b16 %v2923
        %v2955 = vunpack.c.l.b16 %v2927
        %v2956 = vunpack.c.l.b16 %v2931
        %v2957 = vpack.c.b16 %v2950, %v2949
        %v2958 = vpack.c.b16 %v2952, %v2951
        %v2959 = vpack.c.b16 %v2954, %v2953
        %v2960 = vpack.c.b16 %v2956, %v2955
        %v2981 = vunpack.c.l.b16 %v2933
        %v2982 = vunpack.c.l.b16 %v2934
        %v2983 = vunpack.c.l.b16 %v2935
        %v2984 = vunpack.c.l.b16 %v2936
        %v2985 = vunpack.c.l.b16 %v2937
        %v2986 = vunpack.c.l.b16 %v2938
        %v2987 = vunpack.c.l.b16 %v2939
        %v2988 = vunpack.c.l.b16 %v2940
        %v2989 = vunpack.c.l.b16 %v2941
        %v2990 = vunpack.c.l.b16 %v2942
        %v2991 = vunpack.c.l.b16 %v2943
        %v2992 = vunpack.c.l.b16 %v2944
        %v2993 = vunpack.c.l.b16 %v2945
        %v2994 = vunpack.c.l.b16 %v2946
        %v2995 = vunpack.c.l.b16 %v2947
        %v2996 = vunpack.c.l.b16 %v2948
        %v2997 = vpack.c.b16 %v2982, %v2981
        %v2998 = vpack.c.b16 %v2984, %v2983
        %v2999 = vpack.c.b16 %v2986, %v2985
        %v3000 = vpack.c.b16 %v2988, %v2987
        %v3001 = vpack.c.b16 %v2990, %v2989
        %v3002 = vpack.c.b16 %v2992, %v2991
        %v3003 = vpack.c.b16 %v2994, %v2993
        %v3004 = vpack.c.b16 %v2996, %v2995
        %3013 = vmatprep.subr.bf16.mxu0 0
        %3014 = vmatpush1.bf16.msra.mxu0 %v3004
        %3015 = vmatprep.subr.bf16.mxu0 0
        %3016 = vmatpush1.bf16.msra.mxu0 %v3003
        %3017 = vmatprep.subr.bf16.mxu0 0
        %3018 = vmatpush1.bf16.msra.mxu0 %v3002
        %3019 = vmatprep.subr.bf16.mxu0 0
        %3020 = vmatpush1.bf16.msra.mxu0 %v3001
        %3021 = vmatprep.subr.bf16.mxu0 0
        %3022 = vmatpush1.bf16.msra.mxu0 %v3000
        %3023 = vmatprep.subr.bf16.mxu0 0
        %3024 = vmatpush1.bf16.msra.mxu0 %v2999
        %3025 = vmatprep.subr.bf16.mxu0 0
        %3026 = vmatpush1.bf16.msra.mxu0 %v2998
        %3027 = vmatprep.subr.bf16.mxu0 0
        %3028 = vmatpush1.bf16.msra.mxu0 %v2997
        %3029 = vmatprep.subr.bf16.mxu0 0
        %3030 = vmatpush2.bf16.msra.mxu0 0
        %3031 = vmatprep.subr.bf16.mxu0 0
        %3032 = vmatpush2.bf16.msra.mxu0 0
        %3033 = vmatprep.subr.bf16.mxu0 0
        %3034 = vmatpush2.bf16.msra.mxu0 0
        %3035 = vmatprep.subr.bf16.mxu0 0
        %3036 = vmatpush2.bf16.msra.mxu0 0
        %3037 = vmatprep.subr.bf16.mxu0 0
        %3038 = vmatpush2.bf16.msra.mxu0 0
        %3039 = vmatprep.subr.bf16.mxu0 0
        %3040 = vmatpush2.bf16.msra.mxu0 0
        %3041 = vmatprep.subr.bf16.mxu0 0
        %3042 = vmatpush2.bf16.msra.mxu0 0
        %3043 = vmatprep.subr.bf16.mxu0 0
        %3044 = vmatpush2.bf16.msra.mxu0 0
        %3045 = vmatprep.mubr.bf16.mxu0 0
        %3046 = vmatmul.mubr.bf16.gmra.mxu0 %v2957
        %v3047 = vpop.f32.mrf.mxu0
        %v3048 = vadd.f32 0.0, %v3047
        %v3049 = vpop.f32.mrf.mxu0
        %v3050 = vpop.f32.mrf.mxu0
        %v3051 = vadd.f32 0.0, %v3050
        %v3052 = vpop.f32.mrf.mxu0
        %3053 = vmatprep.mubr.bf16.mxu0 0
        %3054 = vmatmul.mubr.bf16.gmra.mxu0 %v2958
        %v3055 = vpop.f32.mrf.mxu0
        %v3056 = vadd.f32 0.0, %v3055
        %v3057 = vpop.f32.mrf.mxu0
        %v3058 = vpop.f32.mrf.mxu0
        %v3059 = vadd.f32 0.0, %v3058
        %v3060 = vpop.f32.mrf.mxu0
        %3061 = vmatprep.mubr.bf16.mxu0 0
        %3062 = vmatmul.mubr.bf16.gmra.mxu0 %v2959
        %v3063 = vpop.f32.mrf.mxu0
        %v3064 = vadd.f32 0.0, %v3063
        %v3065 = vpop.f32.mrf.mxu0
        %v3066 = vpop.f32.mrf.mxu0
        %v3067 = vadd.f32 0.0, %v3066
        %v3068 = vpop.f32.mrf.mxu0
        %3069 = vmatprep.mubr.bf16.mxu0 0
        %3070 = vmatmul.mubr.bf16.gmra.mxu0 %v2960
        %v3071 = vpop.f32.mrf.mxu0
        %v3072 = vadd.f32 0.0, %v3071
        %v3073 = vpop.f32.mrf.mxu0
        %v3074 = vpop.f32.mrf.mxu0
        %v3075 = vadd.f32 0.0, %v3074
        %v3076 = vpop.f32.mrf.mxu0
        %3077 = vdwg.mxu0
        %v3078 = vadd.f32 %v2843, %v3048
        %v3079 = vadd.f32 %v2846, %v3051
        %v3080 = vadd.f32 %v2851, %v3056
        %v3081 = vadd.f32 %v2854, %v3059
        %v3082 = vadd.f32 %v2859, %v3064
        %v3083 = vadd.f32 %v2862, %v3067
        %v3084 = vadd.f32 %v2867, %v3072
        %v3085 = vadd.f32 %v2870, %v3075
        %v3086 = vld [vmem:[%s2391] sm:$0xf]
        %v3087 = vld [vmem:[%s2391 + $0x8] sm:$0xf]
        %v3088 = vld [vmem:[%s2391 + $0x10] sm:$0xf]
        %v3089 = vld [vmem:[%s2391 + $0x18] sm:$0xf]
        %v3090 = vld [vmem:[%s2391 + $0x20] sm:$0xf]
        %v3091 = vld [vmem:[%s2391 + $0x28] sm:$0xf]
        %v3092 = vld [vmem:[%s2391 + $0x30] sm:$0xf]
        %v3093 = vld [vmem:[%s2391 + $0x38] sm:$0xf]
        %s3094 = scalar_lea.vmem %s4, 192
        %v3095 = vld [vmem:[%s3094] sm:$0xf]
        %v3096 = vld [vmem:[%s3094 + $0x4] sm:$0xf]
        %v3097 = vld [vmem:[%s3094 + $0x8] sm:$0xf]
        %v3098 = vld [vmem:[%s3094 + $0xc] sm:$0xf]
        %v3099 = vld [vmem:[%s3094 + $0x10] sm:$0xf]
        %v3100 = vld [vmem:[%s3094 + $0x14] sm:$0xf]
        %v3101 = vld [vmem:[%s3094 + $0x18] sm:$0xf]
        %v3102 = vld [vmem:[%s3094 + $0x1c] sm:$0xf]
        %v3103 = vld [vmem:[%s3094 + $0x20] sm:$0xf]
        %v3104 = vld [vmem:[%s3094 + $0x24] sm:$0xf]
        %v3105 = vld [vmem:[%s3094 + $0x28] sm:$0xf]
        %v3106 = vld [vmem:[%s3094 + $0x2c] sm:$0xf]
        %v3107 = vld [vmem:[%s3094 + $0x30] sm:$0xf]
        %v3108 = vld [vmem:[%s3094 + $0x34] sm:$0xf]
        %v3109 = vld [vmem:[%s3094 + $0x38] sm:$0xf]
        %v3110 = vld [vmem:[%s3094 + $0x3c] sm:$0xf]
        %v3119 = vunpack.c.l.b16 %v3086
        %v3120 = vunpack.c.l.b16 %v3087
        %v3121 = vunpack.c.l.b16 %v3088
        %v3122 = vunpack.c.l.b16 %v3089
        %v3123 = vunpack.c.l.b16 %v3090
        %v3124 = vunpack.c.l.b16 %v3091
        %v3125 = vunpack.c.l.b16 %v3092
        %v3126 = vunpack.c.l.b16 %v3093
        %v3127 = vpack.c.b16 %v3120, %v3119
        %v3128 = vpack.c.b16 %v3122, %v3121
        %v3129 = vpack.c.b16 %v3124, %v3123
        %v3130 = vpack.c.b16 %v3126, %v3125
        %v3151 = vunpack.c.l.b16 %v3095
        %v3152 = vunpack.c.l.b16 %v3096
        %v3153 = vunpack.c.l.b16 %v3097
        %v3154 = vunpack.c.l.b16 %v3098
        %v3155 = vunpack.c.l.b16 %v3099
        %v3156 = vunpack.c.l.b16 %v3100
        %v3157 = vunpack.c.l.b16 %v3101
        %v3158 = vunpack.c.l.b16 %v3102
        %v3159 = vunpack.c.l.b16 %v3103
        %v3160 = vunpack.c.l.b16 %v3104
        %v3161 = vunpack.c.l.b16 %v3105
        %v3162 = vunpack.c.l.b16 %v3106
        %v3163 = vunpack.c.l.b16 %v3107
        %v3164 = vunpack.c.l.b16 %v3108
        %v3165 = vunpack.c.l.b16 %v3109
        %v3166 = vunpack.c.l.b16 %v3110
        %v3167 = vpack.c.b16 %v3152, %v3151
        %v3168 = vpack.c.b16 %v3154, %v3153
        %v3169 = vpack.c.b16 %v3156, %v3155
        %v3170 = vpack.c.b16 %v3158, %v3157
        %v3171 = vpack.c.b16 %v3160, %v3159
        %v3172 = vpack.c.b16 %v3162, %v3161
        %v3173 = vpack.c.b16 %v3164, %v3163
        %v3174 = vpack.c.b16 %v3166, %v3165
        %3183 = vmatprep.subr.bf16.mxu0 0
        %3184 = vmatpush1.bf16.msra.mxu0 %v3174
        %3185 = vmatprep.subr.bf16.mxu0 0
        %3186 = vmatpush1.bf16.msra.mxu0 %v3173
        %3187 = vmatprep.subr.bf16.mxu0 0
        %3188 = vmatpush1.bf16.msra.mxu0 %v3172
        %3189 = vmatprep.subr.bf16.mxu0 0
        %3190 = vmatpush1.bf16.msra.mxu0 %v3171
        %3191 = vmatprep.subr.bf16.mxu0 0
        %3192 = vmatpush1.bf16.msra.mxu0 %v3170
        %3193 = vmatprep.subr.bf16.mxu0 0
        %3194 = vmatpush1.bf16.msra.mxu0 %v3169
        %3195 = vmatprep.subr.bf16.mxu0 0
        %3196 = vmatpush1.bf16.msra.mxu0 %v3168
        %3197 = vmatprep.subr.bf16.mxu0 0
        %3198 = vmatpush1.bf16.msra.mxu0 %v3167
        %3199 = vmatprep.subr.bf16.mxu0 0
        %3200 = vmatpush2.bf16.msra.mxu0 0
        %3201 = vmatprep.subr.bf16.mxu0 0
        %3202 = vmatpush2.bf16.msra.mxu0 0
        %3203 = vmatprep.subr.bf16.mxu0 0
        %3204 = vmatpush2.bf16.msra.mxu0 0
        %3205 = vmatprep.subr.bf16.mxu0 0
        %3206 = vmatpush2.bf16.msra.mxu0 0
        %3207 = vmatprep.subr.bf16.mxu0 0
        %3208 = vmatpush2.bf16.msra.mxu0 0
        %3209 = vmatprep.subr.bf16.mxu0 0
        %3210 = vmatpush2.bf16.msra.mxu0 0
        %3211 = vmatprep.subr.bf16.mxu0 0
        %3212 = vmatpush2.bf16.msra.mxu0 0
        %3213 = vmatprep.subr.bf16.mxu0 0
        %3214 = vmatpush2.bf16.msra.mxu0 0
        %3215 = vmatprep.mubr.bf16.mxu0 0
        %3216 = vmatmul.mubr.bf16.gmra.mxu0 %v3127
        %v3217 = vpop.f32.mrf.mxu0
        %v3218 = vadd.f32 0.0, %v3217
        %v3219 = vpop.f32.mrf.mxu0
        %v3220 = vpop.f32.mrf.mxu0
        %v3221 = vadd.f32 0.0, %v3220
        %v3222 = vpop.f32.mrf.mxu0
        %3223 = vmatprep.mubr.bf16.mxu0 0
        %3224 = vmatmul.mubr.bf16.gmra.mxu0 %v3128
        %v3225 = vpop.f32.mrf.mxu0
        %v3226 = vadd.f32 0.0, %v3225
        %v3227 = vpop.f32.mrf.mxu0
        %v3228 = vpop.f32.mrf.mxu0
        %v3229 = vadd.f32 0.0, %v3228
        %v3230 = vpop.f32.mrf.mxu0
        %3231 = vmatprep.mubr.bf16.mxu0 0
        %3232 = vmatmul.mubr.bf16.gmra.mxu0 %v3129
        %v3233 = vpop.f32.mrf.mxu0
        %v3234 = vadd.f32 0.0, %v3233
        %v3235 = vpop.f32.mrf.mxu0
        %v3236 = vpop.f32.mrf.mxu0
        %v3237 = vadd.f32 0.0, %v3236
        %v3238 = vpop.f32.mrf.mxu0
        %3239 = vmatprep.mubr.bf16.mxu0 0
        %3240 = vmatmul.mubr.bf16.gmra.mxu0 %v3130
        %v3241 = vpop.f32.mrf.mxu0
        %v3242 = vadd.f32 0.0, %v3241
        %v3243 = vpop.f32.mrf.mxu0
        %v3244 = vpop.f32.mrf.mxu0
        %v3245 = vadd.f32 0.0, %v3244
        %v3246 = vpop.f32.mrf.mxu0
        %3247 = vdwg.mxu0
        %v3248 = vadd.f32 %v3078, %v3218
        %v3249 = vadd.f32 %v3079, %v3221
        %v3250 = vadd.f32 %v3080, %v3226
        %v3251 = vadd.f32 %v3081, %v3229
        %v3252 = vadd.f32 %v3082, %v3234
        %v3253 = vadd.f32 %v3083, %v3237
        %v3254 = vadd.f32 %v3084, %v3242
        %v3255 = vadd.f32 %v3085, %v3245
        %v3256 = vld [vmem:[%s2391] sm:$0xf]
        %v3257 = vld [vmem:[%s2391 + $0x4] sm:$0x1]
        %v3258 = vld [vmem:[%s2391 + $0x8] sm:$0xf]
        %v3259 = vld [vmem:[%s2391 + $0xc] sm:$0x1]
        %v3260 = vld [vmem:[%s2391 + $0x10] sm:$0xf]
        %v3261 = vld [vmem:[%s2391 + $0x14] sm:$0x1]
        %v3262 = vld [vmem:[%s2391 + $0x18] sm:$0xf]
        %v3263 = vld [vmem:[%s2391 + $0x1c] sm:$0x1]
        %v3264 = vld [vmem:[%s2391 + $0x20] sm:$0xf]
        %v3265 = vld [vmem:[%s2391 + $0x24] sm:$0x1]
        %v3266 = vld [vmem:[%s2391 + $0x28] sm:$0xf]
        %v3267 = vld [vmem:[%s2391 + $0x2c] sm:$0x1]
        %v3268 = vld [vmem:[%s2391 + $0x30] sm:$0xf]
        %v3269 = vld [vmem:[%s2391 + $0x34] sm:$0x1]
        %v3270 = vld [vmem:[%s2391 + $0x38] sm:$0xf]
        %v3271 = vld [vmem:[%s2391 + $0x3c] sm:$0x1]
        %v3273 = vshrl.u32 %v3256, 16
        %v3275 = vrot.slane %v3273, 4
        %v3276 = vshll.u32 %v3256, 16
        %v3278 = vrot.slane %v3276, 5
        %v3279 = vor.u32 %v3275, %v3278
        %v3280 = vrot.slane %v3279, 4
        %v3282 = vshll.u32 %v3257, 16
        %v3284 = vrot.slane %v3282, 5
        %v3285 = vsel %vm706, %v3280, %v3284
        %v3287 = vshrl.u32 %v3258, 16
        %v3289 = vrot.slane %v3287, 4
        %v3290 = vshll.u32 %v3258, 16
        %v3292 = vrot.slane %v3290, 5
        %v3293 = vor.u32 %v3289, %v3292
        %v3294 = vrot.slane %v3293, 4
        %v3296 = vshll.u32 %v3259, 16
        %v3298 = vrot.slane %v3296, 5
        %v3299 = vsel %vm706, %v3294, %v3298
        %v3301 = vshrl.u32 %v3260, 16
        %v3303 = vrot.slane %v3301, 4
        %v3304 = vshll.u32 %v3260, 16
        %v3306 = vrot.slane %v3304, 5
        %v3307 = vor.u32 %v3303, %v3306
        %v3308 = vrot.slane %v3307, 4
        %v3310 = vshll.u32 %v3261, 16
        %v3312 = vrot.slane %v3310, 5
        %v3313 = vsel %vm706, %v3308, %v3312
        %v3315 = vshrl.u32 %v3262, 16
        %v3317 = vrot.slane %v3315, 4
        %v3318 = vshll.u32 %v3262, 16
        %v3320 = vrot.slane %v3318, 5
        %v3321 = vor.u32 %v3317, %v3320
        %v3322 = vrot.slane %v3321, 4
        %v3324 = vshll.u32 %v3263, 16
        %v3326 = vrot.slane %v3324, 5
        %v3327 = vsel %vm706, %v3322, %v3326
        %v3329 = vshrl.u32 %v3264, 16
        %v3331 = vrot.slane %v3329, 4
        %v3332 = vshll.u32 %v3264, 16
        %v3334 = vrot.slane %v3332, 5
        %v3335 = vor.u32 %v3331, %v3334
        %v3336 = vrot.slane %v3335, 4
        %v3338 = vshll.u32 %v3265, 16
        %v3340 = vrot.slane %v3338, 5
        %v3341 = vsel %vm706, %v3336, %v3340
        %v3343 = vshrl.u32 %v3266, 16
        %v3345 = vrot.slane %v3343, 4
        %v3346 = vshll.u32 %v3266, 16
        %v3348 = vrot.slane %v3346, 5
        %v3349 = vor.u32 %v3345, %v3348
        %v3350 = vrot.slane %v3349, 4
        %v3352 = vshll.u32 %v3267, 16
        %v3354 = vrot.slane %v3352, 5
        %v3355 = vsel %vm706, %v3350, %v3354
        %v3357 = vshrl.u32 %v3268, 16
        %v3359 = vrot.slane %v3357, 4
        %v3360 = vshll.u32 %v3268, 16
        %v3362 = vrot.slane %v3360, 5
        %v3363 = vor.u32 %v3359, %v3362
        %v3364 = vrot.slane %v3363, 4
        %v3366 = vshll.u32 %v3269, 16
        %v3368 = vrot.slane %v3366, 5
        %v3369 = vsel %vm706, %v3364, %v3368
        %v3371 = vshrl.u32 %v3270, 16
        %v3373 = vrot.slane %v3371, 4
        %v3374 = vshll.u32 %v3270, 16
        %v3376 = vrot.slane %v3374, 5
        %v3377 = vor.u32 %v3373, %v3376
        %v3378 = vrot.slane %v3377, 4
        %v3380 = vshll.u32 %v3271, 16
        %v3382 = vrot.slane %v3380, 5
        %v3383 = vsel %vm706, %v3378, %v3382
        %s3384 = scalar_lea.vmem %s4, 256
        %v3385 = vld [vmem:[%s3384] sm:$0xf]
        %v3386 = vld [vmem:[%s3384 + $0x4] sm:$0xf]
        %v3387 = vld [vmem:[%s3384 + $0x8] sm:$0xf]
        %v3388 = vld [vmem:[%s3384 + $0xc] sm:$0xf]
        %v3389 = vld [vmem:[%s3384 + $0x10] sm:$0xf]
        %v3390 = vld [vmem:[%s3384 + $0x14] sm:$0xf]
        %v3391 = vld [vmem:[%s3384 + $0x18] sm:$0xf]
        %v3392 = vld [vmem:[%s3384 + $0x1c] sm:$0xf]
        %v3393 = vld [vmem:[%s3384 + $0x20] sm:$0xf]
        %v3394 = vld [vmem:[%s3384 + $0x24] sm:$0xf]
        %v3395 = vld [vmem:[%s3384 + $0x28] sm:$0xf]
        %v3396 = vld [vmem:[%s3384 + $0x2c] sm:$0xf]
        %v3397 = vld [vmem:[%s3384 + $0x30] sm:$0xf]
        %v3398 = vld [vmem:[%s3384 + $0x34] sm:$0xf]
        %v3399 = vld [vmem:[%s3384 + $0x38] sm:$0xf]
        %v3400 = vld [vmem:[%s3384 + $0x3c] sm:$0xf]
        %v3401 = vunpack.c.l.b16 %v3285
        %v3402 = vunpack.c.l.b16 %v3299
        %v3403 = vunpack.c.l.b16 %v3313
        %v3404 = vunpack.c.l.b16 %v3327
        %v3405 = vunpack.c.l.b16 %v3341
        %v3406 = vunpack.c.l.b16 %v3355
        %v3407 = vunpack.c.l.b16 %v3369
        %v3408 = vunpack.c.l.b16 %v3383
        %v3409 = vpack.c.b16 %v3402, %v3401
        %v3410 = vpack.c.b16 %v3404, %v3403
        %v3411 = vpack.c.b16 %v3406, %v3405
        %v3412 = vpack.c.b16 %v3408, %v3407
        %v3433 = vunpack.c.l.b16 %v3385
        %v3434 = vunpack.c.l.b16 %v3386
        %v3435 = vunpack.c.l.b16 %v3387
        %v3436 = vunpack.c.l.b16 %v3388
        %v3437 = vunpack.c.l.b16 %v3389
        %v3438 = vunpack.c.l.b16 %v3390
        %v3439 = vunpack.c.l.b16 %v3391
        %v3440 = vunpack.c.l.b16 %v3392
        %v3441 = vunpack.c.l.b16 %v3393
        %v3442 = vunpack.c.l.b16 %v3394
        %v3443 = vunpack.c.l.b16 %v3395
        %v3444 = vunpack.c.l.b16 %v3396
        %v3445 = vunpack.c.l.b16 %v3397
        %v3446 = vunpack.c.l.b16 %v3398
        %v3447 = vunpack.c.l.b16 %v3399
        %v3448 = vunpack.c.l.b16 %v3400
        %v3449 = vpack.c.b16 %v3434, %v3433
        %v3450 = vpack.c.b16 %v3436, %v3435
        %v3451 = vpack.c.b16 %v3438, %v3437
        %v3452 = vpack.c.b16 %v3440, %v3439
        %v3453 = vpack.c.b16 %v3442, %v3441
        %v3454 = vpack.c.b16 %v3444, %v3443
        %v3455 = vpack.c.b16 %v3446, %v3445
        %v3456 = vpack.c.b16 %v3448, %v3447
        %3465 = vmatprep.subr.bf16.mxu0 0
        %3466 = vmatpush1.bf16.msra.mxu0 %v3456
        %3467 = vmatprep.subr.bf16.mxu0 0
        %3468 = vmatpush1.bf16.msra.mxu0 %v3455
        %3469 = vmatprep.subr.bf16.mxu0 0
        %3470 = vmatpush1.bf16.msra.mxu0 %v3454
        %3471 = vmatprep.subr.bf16.mxu0 0
        %3472 = vmatpush1.bf16.msra.mxu0 %v3453
        %3473 = vmatprep.subr.bf16.mxu0 0
        %3474 = vmatpush1.bf16.msra.mxu0 %v3452
        %3475 = vmatprep.subr.bf16.mxu0 0
        %3476 = vmatpush1.bf16.msra.mxu0 %v3451
        %3477 = vmatprep.subr.bf16.mxu0 0
        %3478 = vmatpush1.bf16.msra.mxu0 %v3450
        %3479 = vmatprep.subr.bf16.mxu0 0
        %3480 = vmatpush1.bf16.msra.mxu0 %v3449
        %3481 = vmatprep.subr.bf16.mxu0 0
        %3482 = vmatpush2.bf16.msra.mxu0 0
        %3483 = vmatprep.subr.bf16.mxu0 0
        %3484 = vmatpush2.bf16.msra.mxu0 0
        %3485 = vmatprep.subr.bf16.mxu0 0
        %3486 = vmatpush2.bf16.msra.mxu0 0
        %3487 = vmatprep.subr.bf16.mxu0 0
        %3488 = vmatpush2.bf16.msra.mxu0 0
        %3489 = vmatprep.subr.bf16.mxu0 0
        %3490 = vmatpush2.bf16.msra.mxu0 0
        %3491 = vmatprep.subr.bf16.mxu0 0
        %3492 = vmatpush2.bf16.msra.mxu0 0
        %3493 = vmatprep.subr.bf16.mxu0 0
        %3494 = vmatpush2.bf16.msra.mxu0 0
        %3495 = vmatprep.subr.bf16.mxu0 0
        %3496 = vmatpush2.bf16.msra.mxu0 0
        %3497 = vmatprep.mubr.bf16.mxu0 0
        %3498 = vmatmul.mubr.bf16.gmra.mxu0 %v3409
        %v3499 = vpop.f32.mrf.mxu0
        %v3500 = vadd.f32 0.0, %v3499
        %v3501 = vpop.f32.mrf.mxu0
        %v3502 = vpop.f32.mrf.mxu0
        %v3503 = vadd.f32 0.0, %v3502
        %v3504 = vpop.f32.mrf.mxu0
        %3505 = vmatprep.mubr.bf16.mxu0 0
        %3506 = vmatmul.mubr.bf16.gmra.mxu0 %v3410
        %v3507 = vpop.f32.mrf.mxu0
        %v3508 = vadd.f32 0.0, %v3507
        %v3509 = vpop.f32.mrf.mxu0
        %v3510 = vpop.f32.mrf.mxu0
        %v3511 = vadd.f32 0.0, %v3510
        %v3512 = vpop.f32.mrf.mxu0
        %3513 = vmatprep.mubr.bf16.mxu0 0
        %3514 = vmatmul.mubr.bf16.gmra.mxu0 %v3411
        %v3515 = vpop.f32.mrf.mxu0
        %v3516 = vadd.f32 0.0, %v3515
        %v3517 = vpop.f32.mrf.mxu0
        %v3518 = vpop.f32.mrf.mxu0
        %v3519 = vadd.f32 0.0, %v3518
        %v3520 = vpop.f32.mrf.mxu0
        %3521 = vmatprep.mubr.bf16.mxu0 0
        %3522 = vmatmul.mubr.bf16.gmra.mxu0 %v3412
        %v3523 = vpop.f32.mrf.mxu0
        %v3524 = vadd.f32 0.0, %v3523
        %v3525 = vpop.f32.mrf.mxu0
        %v3526 = vpop.f32.mrf.mxu0
        %v3527 = vadd.f32 0.0, %v3526
        %v3528 = vpop.f32.mrf.mxu0
        %3529 = vdwg.mxu0
        %v3530 = vadd.f32 %v3248, %v3500
        %v3531 = vadd.f32 %v3249, %v3503
        %v3532 = vadd.f32 %v3250, %v3508
        %v3533 = vadd.f32 %v3251, %v3511
        %v3534 = vadd.f32 %v3252, %v3516
        %v3535 = vadd.f32 %v3253, %v3519
        %v3536 = vadd.f32 %v3254, %v3524
        %v3537 = vadd.f32 %v3255, %v3527
        %v3538 = vld [vmem:[%s2391] sm:$0xe]
        %v3539 = vld [vmem:[%s2391 + $0x8] sm:$0xe]
        %v3540 = vld [vmem:[%s2391 + $0x10] sm:$0xe]
        %v3541 = vld [vmem:[%s2391 + $0x18] sm:$0xe]
        %v3542 = vld [vmem:[%s2391 + $0x20] sm:$0xe]
        %v3543 = vld [vmem:[%s2391 + $0x28] sm:$0xe]
        %v3544 = vld [vmem:[%s2391 + $0x30] sm:$0xe]
        %v3545 = vld [vmem:[%s2391 + $0x38] sm:$0xe]
        %v3562 = vrot.slane %v3538, 5
        %v3563 = vrot.slane %v3562, 4
        %v3564 = vrot.slane %v3257, 5
        %v3565 = vsel %vm2899, %v3563, %v3564
        %v3566 = vrot.slane %v3539, 5
        %v3567 = vrot.slane %v3566, 4
        %v3568 = vrot.slane %v3259, 5
        %v3569 = vsel %vm2899, %v3567, %v3568
        %v3570 = vrot.slane %v3540, 5
        %v3571 = vrot.slane %v3570, 4
        %v3572 = vrot.slane %v3261, 5
        %v3573 = vsel %vm2899, %v3571, %v3572
        %v3574 = vrot.slane %v3541, 5
        %v3575 = vrot.slane %v3574, 4
        %v3576 = vrot.slane %v3263, 5
        %v3577 = vsel %vm2899, %v3575, %v3576
        %v3578 = vrot.slane %v3542, 5
        %v3579 = vrot.slane %v3578, 4
        %v3580 = vrot.slane %v3265, 5
        %v3581 = vsel %vm2899, %v3579, %v3580
        %v3582 = vrot.slane %v3543, 5
        %v3583 = vrot.slane %v3582, 4
        %v3584 = vrot.slane %v3267, 5
        %v3585 = vsel %vm2899, %v3583, %v3584
        %v3586 = vrot.slane %v3544, 5
        %v3587 = vrot.slane %v3586, 4
        %v3588 = vrot.slane %v3269, 5
        %v3589 = vsel %vm2899, %v3587, %v3588
        %v3590 = vrot.slane %v3545, 5
        %v3591 = vrot.slane %v3590, 4
        %v3592 = vrot.slane %v3271, 5
        %v3593 = vsel %vm2899, %v3591, %v3592
        %s3594 = scalar_lea.vmem %s4, 320
        %v3595 = vld [vmem:[%s3594] sm:$0xf]
        %v3596 = vld [vmem:[%s3594 + $0x4] sm:$0xf]
        %v3597 = vld [vmem:[%s3594 + $0x8] sm:$0xf]
        %v3598 = vld [vmem:[%s3594 + $0xc] sm:$0xf]
        %v3599 = vld [vmem:[%s3594 + $0x10] sm:$0xf]
        %v3600 = vld [vmem:[%s3594 + $0x14] sm:$0xf]
        %v3601 = vld [vmem:[%s3594 + $0x18] sm:$0xf]
        %v3602 = vld [vmem:[%s3594 + $0x1c] sm:$0xf]
        %v3603 = vld [vmem:[%s3594 + $0x20] sm:$0xf]
        %v3604 = vld [vmem:[%s3594 + $0x24] sm:$0xf]
        %v3605 = vld [vmem:[%s3594 + $0x28] sm:$0xf]
        %v3606 = vld [vmem:[%s3594 + $0x2c] sm:$0xf]
        %v3607 = vld [vmem:[%s3594 + $0x30] sm:$0xf]
        %v3608 = vld [vmem:[%s3594 + $0x34] sm:$0xf]
        %v3609 = vld [vmem:[%s3594 + $0x38] sm:$0xf]
        %v3610 = vld [vmem:[%s3594 + $0x3c] sm:$0xf]
        %v3611 = vunpack.c.l.b16 %v3565
        %v3612 = vunpack.c.l.b16 %v3569
        %v3613 = vunpack.c.l.b16 %v3573
        %v3614 = vunpack.c.l.b16 %v3577
        %v3615 = vunpack.c.l.b16 %v3581
        %v3616 = vunpack.c.l.b16 %v3585
        %v3617 = vunpack.c.l.b16 %v3589
        %v3618 = vunpack.c.l.b16 %v3593
        %v3619 = vpack.c.b16 %v3612, %v3611
        %v3620 = vpack.c.b16 %v3614, %v3613
        %v3621 = vpack.c.b16 %v3616, %v3615
        %v3622 = vpack.c.b16 %v3618, %v3617
        %v3643 = vunpack.c.l.b16 %v3595
        %v3644 = vunpack.c.l.b16 %v3596
        %v3645 = vunpack.c.l.b16 %v3597
        %v3646 = vunpack.c.l.b16 %v3598
        %v3647 = vunpack.c.l.b16 %v3599
        %v3648 = vunpack.c.l.b16 %v3600
        %v3649 = vunpack.c.l.b16 %v3601
        %v3650 = vunpack.c.l.b16 %v3602
        %v3651 = vunpack.c.l.b16 %v3603
        %v3652 = vunpack.c.l.b16 %v3604
        %v3653 = vunpack.c.l.b16 %v3605
        %v3654 = vunpack.c.l.b16 %v3606
        %v3655 = vunpack.c.l.b16 %v3607
        %v3656 = vunpack.c.l.b16 %v3608
        %v3657 = vunpack.c.l.b16 %v3609
        %v3658 = vunpack.c.l.b16 %v3610
        %v3659 = vpack.c.b16 %v3644, %v3643
        %v3660 = vpack.c.b16 %v3646, %v3645
        %v3661 = vpack.c.b16 %v3648, %v3647
        %v3662 = vpack.c.b16 %v3650, %v3649
        %v3663 = vpack.c.b16 %v3652, %v3651
        %v3664 = vpack.c.b16 %v3654, %v3653
        %v3665 = vpack.c.b16 %v3656, %v3655
        %v3666 = vpack.c.b16 %v3658, %v3657
        %3675 = vmatprep.subr.bf16.mxu0 0
        %3676 = vmatpush1.bf16.msra.mxu0 %v3666
        %3677 = vmatprep.subr.bf16.mxu0 0
        %3678 = vmatpush1.bf16.msra.mxu0 %v3665
        %3679 = vmatprep.subr.bf16.mxu0 0
        %3680 = vmatpush1.bf16.msra.mxu0 %v3664
        %3681 = vmatprep.subr.bf16.mxu0 0
        %3682 = vmatpush1.bf16.msra.mxu0 %v3663
        %3683 = vmatprep.subr.bf16.mxu0 0
        %3684 = vmatpush1.bf16.msra.mxu0 %v3662
        %3685 = vmatprep.subr.bf16.mxu0 0
        %3686 = vmatpush1.bf16.msra.mxu0 %v3661
        %3687 = vmatprep.subr.bf16.mxu0 0
        %3688 = vmatpush1.bf16.msra.mxu0 %v3660
        %3689 = vmatprep.subr.bf16.mxu0 0
        %3690 = vmatpush1.bf16.msra.mxu0 %v3659
        %3691 = vmatprep.subr.bf16.mxu0 0
        %3692 = vmatpush2.bf16.msra.mxu0 0
        %3693 = vmatprep.subr.bf16.mxu0 0
        %3694 = vmatpush2.bf16.msra.mxu0 0
        %3695 = vmatprep.subr.bf16.mxu0 0
        %3696 = vmatpush2.bf16.msra.mxu0 0
        %3697 = vmatprep.subr.bf16.mxu0 0
        %3698 = vmatpush2.bf16.msra.mxu0 0
        %3699 = vmatprep.subr.bf16.mxu0 0
        %3700 = vmatpush2.bf16.msra.mxu0 0
        %3701 = vmatprep.subr.bf16.mxu0 0
        %3702 = vmatpush2.bf16.msra.mxu0 0
        %3703 = vmatprep.subr.bf16.mxu0 0
        %3704 = vmatpush2.bf16.msra.mxu0 0
        %3705 = vmatprep.subr.bf16.mxu0 0
        %3706 = vmatpush2.bf16.msra.mxu0 0
        %3707 = vmatprep.mubr.bf16.mxu0 0
        %3708 = vmatmul.mubr.bf16.gmra.mxu0 %v3619
        %v3709 = vpop.f32.mrf.mxu0
        %v3710 = vadd.f32 0.0, %v3709
        %v3711 = vpop.f32.mrf.mxu0
        %v3712 = vpop.f32.mrf.mxu0
        %v3713 = vadd.f32 0.0, %v3712
        %v3714 = vpop.f32.mrf.mxu0
        %3715 = vmatprep.mubr.bf16.mxu0 0
        %3716 = vmatmul.mubr.bf16.gmra.mxu0 %v3620
        %v3717 = vpop.f32.mrf.mxu0
        %v3718 = vadd.f32 0.0, %v3717
        %v3719 = vpop.f32.mrf.mxu0
        %v3720 = vpop.f32.mrf.mxu0
        %v3721 = vadd.f32 0.0, %v3720
        %v3722 = vpop.f32.mrf.mxu0
        %3723 = vmatprep.mubr.bf16.mxu0 0
        %3724 = vmatmul.mubr.bf16.gmra.mxu0 %v3621
        %v3725 = vpop.f32.mrf.mxu0
        %v3726 = vadd.f32 0.0, %v3725
        %v3727 = vpop.f32.mrf.mxu0
        %v3728 = vpop.f32.mrf.mxu0
        %v3729 = vadd.f32 0.0, %v3728
        %v3730 = vpop.f32.mrf.mxu0
        %3731 = vmatprep.mubr.bf16.mxu0 0
        %3732 = vmatmul.mubr.bf16.gmra.mxu0 %v3622
        %v3733 = vpop.f32.mrf.mxu0
        %v3734 = vadd.f32 0.0, %v3733
        %v3735 = vpop.f32.mrf.mxu0
        %v3736 = vpop.f32.mrf.mxu0
        %v3737 = vadd.f32 0.0, %v3736
        %v3738 = vpop.f32.mrf.mxu0
        %3739 = vdwg.mxu0
        %v3740 = vadd.f32 %v3530, %v3710
        %v3741 = vadd.f32 %v3531, %v3713
        %v3742 = vadd.f32 %v3532, %v3718
        %v3743 = vadd.f32 %v3533, %v3721
        %v3744 = vadd.f32 %v3534, %v3726
        %v3745 = vadd.f32 %v3535, %v3729
        %v3746 = vadd.f32 %v3536, %v3734
        %v3747 = vadd.f32 %v3537, %v3737
        %s3748 = scalar_lea.vmem [#allocation2], 16
        %v3749 = vld [vmem:[%s3748] sm:$0xf]
        %v3750 = vld [vmem:[%s3748 + $0x8] sm:$0xf]
        %v3751 = vld [vmem:[%s3748 + $0x10] sm:$0xf]
        %v3752 = vld [vmem:[%s3748 + $0x18] sm:$0xf]
        %v3753 = vld [vmem:[%s3748 + $0x20] sm:$0xf]
        %v3754 = vld [vmem:[%s3748 + $0x28] sm:$0xf]
        %v3755 = vld [vmem:[%s3748 + $0x30] sm:$0xf]
        %v3756 = vld [vmem:[%s3748 + $0x38] sm:$0xf]
        %s3757 = scalar_lea.vmem %s4, 384
        %v3758 = vld [vmem:[%s3757] sm:$0xf]
        %v3759 = vld [vmem:[%s3757 + $0x4] sm:$0xf]
        %v3760 = vld [vmem:[%s3757 + $0x8] sm:$0xf]
        %v3761 = vld [vmem:[%s3757 + $0xc] sm:$0xf]
        %v3762 = vld [vmem:[%s3757 + $0x10] sm:$0xf]
        %v3763 = vld [vmem:[%s3757 + $0x14] sm:$0xf]
        %v3764 = vld [vmem:[%s3757 + $0x18] sm:$0xf]
        %v3765 = vld [vmem:[%s3757 + $0x1c] sm:$0xf]
        %v3766 = vld [vmem:[%s3757 + $0x20] sm:$0xf]
        %v3767 = vld [vmem:[%s3757 + $0x24] sm:$0xf]
        %v3768 = vld [vmem:[%s3757 + $0x28] sm:$0xf]
        %v3769 = vld [vmem:[%s3757 + $0x2c] sm:$0xf]
        %v3770 = vld [vmem:[%s3757 + $0x30] sm:$0xf]
        %v3771 = vld [vmem:[%s3757 + $0x34] sm:$0xf]
        %v3772 = vld [vmem:[%s3757 + $0x38] sm:$0xf]
        %v3773 = vld [vmem:[%s3757 + $0x3c] sm:$0xf]
        %v3782 = vunpack.c.l.b16 %v3749
        %v3783 = vunpack.c.l.b16 %v3750
        %v3784 = vunpack.c.l.b16 %v3751
        %v3785 = vunpack.c.l.b16 %v3752
        %v3786 = vunpack.c.l.b16 %v3753
        %v3787 = vunpack.c.l.b16 %v3754
        %v3788 = vunpack.c.l.b16 %v3755
        %v3789 = vunpack.c.l.b16 %v3756
        %v3790 = vpack.c.b16 %v3783, %v3782
        %v3791 = vpack.c.b16 %v3785, %v3784
        %v3792 = vpack.c.b16 %v3787, %v3786
        %v3793 = vpack.c.b16 %v3789, %v3788
        %v3814 = vunpack.c.l.b16 %v3758
        %v3815 = vunpack.c.l.b16 %v3759
        %v3816 = vunpack.c.l.b16 %v3760
        %v3817 = vunpack.c.l.b16 %v3761
        %v3818 = vunpack.c.l.b16 %v3762
        %v3819 = vunpack.c.l.b16 %v3763
        %v3820 = vunpack.c.l.b16 %v3764
        %v3821 = vunpack.c.l.b16 %v3765
        %v3822 = vunpack.c.l.b16 %v3766
        %v3823 = vunpack.c.l.b16 %v3767
        %v3824 = vunpack.c.l.b16 %v3768
        %v3825 = vunpack.c.l.b16 %v3769
        %v3826 = vunpack.c.l.b16 %v3770
        %v3827 = vunpack.c.l.b16 %v3771
        %v3828 = vunpack.c.l.b16 %v3772
        %v3829 = vunpack.c.l.b16 %v3773
        %v3830 = vpack.c.b16 %v3815, %v3814
        %v3831 = vpack.c.b16 %v3817, %v3816
        %v3832 = vpack.c.b16 %v3819, %v3818
        %v3833 = vpack.c.b16 %v3821, %v3820
        %v3834 = vpack.c.b16 %v3823, %v3822
        %v3835 = vpack.c.b16 %v3825, %v3824
        %v3836 = vpack.c.b16 %v3827, %v3826
        %v3837 = vpack.c.b16 %v3829, %v3828
        %3846 = vmatprep.subr.bf16.mxu0 0
        %3847 = vmatpush1.bf16.msra.mxu0 %v3837
        %3848 = vmatprep.subr.bf16.mxu0 0
        %3849 = vmatpush1.bf16.msra.mxu0 %v3836
        %3850 = vmatprep.subr.bf16.mxu0 0
        %3851 = vmatpush1.bf16.msra.mxu0 %v3835
        %3852 = vmatprep.subr.bf16.mxu0 0
        %3853 = vmatpush1.bf16.msra.mxu0 %v3834
        %3854 = vmatprep.subr.bf16.mxu0 0
        %3855 = vmatpush1.bf16.msra.mxu0 %v3833
        %3856 = vmatprep.subr.bf16.mxu0 0
        %3857 = vmatpush1.bf16.msra.mxu0 %v3832
        %3858 = vmatprep.subr.bf16.mxu0 0
        %3859 = vmatpush1.bf16.msra.mxu0 %v3831
        %3860 = vmatprep.subr.bf16.mxu0 0
        %3861 = vmatpush1.bf16.msra.mxu0 %v3830
        %3862 = vmatprep.subr.bf16.mxu0 0
        %3863 = vmatpush2.bf16.msra.mxu0 0
        %3864 = vmatprep.subr.bf16.mxu0 0
        %3865 = vmatpush2.bf16.msra.mxu0 0
        %3866 = vmatprep.subr.bf16.mxu0 0
        %3867 = vmatpush2.bf16.msra.mxu0 0
        %3868 = vmatprep.subr.bf16.mxu0 0
        %3869 = vmatpush2.bf16.msra.mxu0 0
        %3870 = vmatprep.subr.bf16.mxu0 0
        %3871 = vmatpush2.bf16.msra.mxu0 0
        %3872 = vmatprep.subr.bf16.mxu0 0
        %3873 = vmatpush2.bf16.msra.mxu0 0
        %3874 = vmatprep.subr.bf16.mxu0 0
        %3875 = vmatpush2.bf16.msra.mxu0 0
        %3876 = vmatprep.subr.bf16.mxu0 0
        %3877 = vmatpush2.bf16.msra.mxu0 0
        %3878 = vmatprep.mubr.bf16.mxu0 0
        %3879 = vmatmul.mubr.bf16.gmra.mxu0 %v3790
        %v3880 = vpop.f32.mrf.mxu0
        %v3881 = vadd.f32 0.0, %v3880
        %v3882 = vpop.f32.mrf.mxu0
        %v3883 = vpop.f32.mrf.mxu0
        %v3884 = vadd.f32 0.0, %v3883
        %v3885 = vpop.f32.mrf.mxu0
        %3886 = vmatprep.mubr.bf16.mxu0 0
        %3887 = vmatmul.mubr.bf16.gmra.mxu0 %v3791
        %v3888 = vpop.f32.mrf.mxu0
        %v3889 = vadd.f32 0.0, %v3888
        %v3890 = vpop.f32.mrf.mxu0
        %v3891 = vpop.f32.mrf.mxu0
        %v3892 = vadd.f32 0.0, %v3891
        %v3893 = vpop.f32.mrf.mxu0
        %3894 = vmatprep.mubr.bf16.mxu0 0
        %3895 = vmatmul.mubr.bf16.gmra.mxu0 %v3792
        %v3896 = vpop.f32.mrf.mxu0
        %v3897 = vadd.f32 0.0, %v3896
        %v3898 = vpop.f32.mrf.mxu0
        %v3899 = vpop.f32.mrf.mxu0
        %v3900 = vadd.f32 0.0, %v3899
        %v3901 = vpop.f32.mrf.mxu0
        %3902 = vmatprep.mubr.bf16.mxu0 0
        %3903 = vmatmul.mubr.bf16.gmra.mxu0 %v3793
        %v3904 = vpop.f32.mrf.mxu0
        %v3905 = vadd.f32 0.0, %v3904
        %v3906 = vpop.f32.mrf.mxu0
        %v3907 = vpop.f32.mrf.mxu0
        %v3908 = vadd.f32 0.0, %v3907
        %v3909 = vpop.f32.mrf.mxu0
        %3910 = vdwg.mxu0
        %v3911 = vadd.f32 %v3740, %v3881
        %v3912 = vadd.f32 %v3741, %v3884
        %v3913 = vadd.f32 %v3742, %v3889
        %v3914 = vadd.f32 %v3743, %v3892
        %v3915 = vadd.f32 %v3744, %v3897
        %v3916 = vadd.f32 %v3745, %v3900
        %v3917 = vadd.f32 %v3746, %v3905
        %v3918 = vadd.f32 %v3747, %v3908
        %v3919 = vld [vmem:[%s3748] sm:$0xf]
        %v3920 = vld [vmem:[%s3748 + $0x4] sm:$0x1]
        %v3921 = vld [vmem:[%s3748 + $0x8] sm:$0xf]
        %v3922 = vld [vmem:[%s3748 + $0xc] sm:$0x1]
        %v3923 = vld [vmem:[%s3748 + $0x10] sm:$0xf]
        %v3924 = vld [vmem:[%s3748 + $0x14] sm:$0x1]
        %v3925 = vld [vmem:[%s3748 + $0x18] sm:$0xf]
        %v3926 = vld [vmem:[%s3748 + $0x1c] sm:$0x1]
        %v3927 = vld [vmem:[%s3748 + $0x20] sm:$0xf]
        %v3928 = vld [vmem:[%s3748 + $0x24] sm:$0x1]
        %v3929 = vld [vmem:[%s3748 + $0x28] sm:$0xf]
        %v3930 = vld [vmem:[%s3748 + $0x2c] sm:$0x1]
        %v3931 = vld [vmem:[%s3748 + $0x30] sm:$0xf]
        %v3932 = vld [vmem:[%s3748 + $0x34] sm:$0x1]
        %v3933 = vld [vmem:[%s3748 + $0x38] sm:$0xf]
        %v3934 = vld [vmem:[%s3748 + $0x3c] sm:$0x1]
        %v3936 = vshrl.u32 %v3919, 16
        %v3938 = vrot.slane %v3936, 4
        %v3939 = vshll.u32 %v3919, 16
        %v3941 = vrot.slane %v3939, 5
        %v3942 = vor.u32 %v3938, %v3941
        %v3943 = vrot.slane %v3942, 4
        %v3945 = vshll.u32 %v3920, 16
        %v3947 = vrot.slane %v3945, 5
        %v3948 = vsel %vm706, %v3943, %v3947
        %v3950 = vshrl.u32 %v3921, 16
        %v3952 = vrot.slane %v3950, 4
        %v3953 = vshll.u32 %v3921, 16
        %v3955 = vrot.slane %v3953, 5
        %v3956 = vor.u32 %v3952, %v3955
        %v3957 = vrot.slane %v3956, 4
        %v3959 = vshll.u32 %v3922, 16
        %v3961 = vrot.slane %v3959, 5
        %v3962 = vsel %vm706, %v3957, %v3961
        %v3964 = vshrl.u32 %v3923, 16
        %v3966 = vrot.slane %v3964, 4
        %v3967 = vshll.u32 %v3923, 16
        %v3969 = vrot.slane %v3967, 5
        %v3970 = vor.u32 %v3966, %v3969
        %v3971 = vrot.slane %v3970, 4
        %v3973 = vshll.u32 %v3924, 16
        %v3975 = vrot.slane %v3973, 5
        %v3976 = vsel %vm706, %v3971, %v3975
        %v3978 = vshrl.u32 %v3925, 16
        %v3980 = vrot.slane %v3978, 4
        %v3981 = vshll.u32 %v3925, 16
        %v3983 = vrot.slane %v3981, 5
        %v3984 = vor.u32 %v3980, %v3983
        %v3985 = vrot.slane %v3984, 4
        %v3987 = vshll.u32 %v3926, 16
        %v3989 = vrot.slane %v3987, 5
        %v3990 = vsel %vm706, %v3985, %v3989
        %v3992 = vshrl.u32 %v3927, 16
        %v3994 = vrot.slane %v3992, 4
        %v3995 = vshll.u32 %v3927, 16
        %v3997 = vrot.slane %v3995, 5
        %v3998 = vor.u32 %v3994, %v3997
        %v3999 = vrot.slane %v3998, 4
        %v4001 = vshll.u32 %v3928, 16
        %v4003 = vrot.slane %v4001, 5
        %v4004 = vsel %vm706, %v3999, %v4003
        %v4006 = vshrl.u32 %v3929, 16
        %v4008 = vrot.slane %v4006, 4
        %v4009 = vshll.u32 %v3929, 16
        %v4011 = vrot.slane %v4009, 5
        %v4012 = vor.u32 %v4008, %v4011
        %v4013 = vrot.slane %v4012, 4
        %v4015 = vshll.u32 %v3930, 16
        %v4017 = vrot.slane %v4015, 5
        %v4018 = vsel %vm706, %v4013, %v4017
        %v4020 = vshrl.u32 %v3931, 16
        %v4022 = vrot.slane %v4020, 4
        %v4023 = vshll.u32 %v3931, 16
        %v4025 = vrot.slane %v4023, 5
        %v4026 = vor.u32 %v4022, %v4025
        %v4027 = vrot.slane %v4026, 4
        %v4029 = vshll.u32 %v3932, 16
        %v4031 = vrot.slane %v4029, 5
        %v4032 = vsel %vm706, %v4027, %v4031
        %v4034 = vshrl.u32 %v3933, 16
        %v4036 = vrot.slane %v4034, 4
        %v4037 = vshll.u32 %v3933, 16
        %v4039 = vrot.slane %v4037, 5
        %v4040 = vor.u32 %v4036, %v4039
        %v4041 = vrot.slane %v4040, 4
        %v4043 = vshll.u32 %v3934, 16
        %v4045 = vrot.slane %v4043, 5
        %v4046 = vsel %vm706, %v4041, %v4045
        %s4047 = scalar_lea.vmem %s4, 448
        %v4048 = vld [vmem:[%s4047] sm:$0xf]
        %v4049 = vld [vmem:[%s4047 + $0x4] sm:$0xf]
        %v4050 = vld [vmem:[%s4047 + $0x8] sm:$0xf]
        %v4051 = vld [vmem:[%s4047 + $0xc] sm:$0xf]
        %v4052 = vld [vmem:[%s4047 + $0x10] sm:$0xf]
        %v4053 = vld [vmem:[%s4047 + $0x14] sm:$0xf]
        %v4054 = vld [vmem:[%s4047 + $0x18] sm:$0xf]
        %v4055 = vld [vmem:[%s4047 + $0x1c] sm:$0xf]
        %v4056 = vld [vmem:[%s4047 + $0x20] sm:$0xf]
        %v4057 = vld [vmem:[%s4047 + $0x24] sm:$0xf]
        %v4058 = vld [vmem:[%s4047 + $0x28] sm:$0xf]
        %v4059 = vld [vmem:[%s4047 + $0x2c] sm:$0xf]
        %v4060 = vld [vmem:[%s4047 + $0x30] sm:$0xf]
        %v4061 = vld [vmem:[%s4047 + $0x34] sm:$0xf]
        %v4062 = vld [vmem:[%s4047 + $0x38] sm:$0xf]
        %v4063 = vld [vmem:[%s4047 + $0x3c] sm:$0xf]
        %v4064 = vunpack.c.l.b16 %v3948
        %v4065 = vunpack.c.l.b16 %v3962
        %v4066 = vunpack.c.l.b16 %v3976
        %v4067 = vunpack.c.l.b16 %v3990
        %v4068 = vunpack.c.l.b16 %v4004
        %v4069 = vunpack.c.l.b16 %v4018
        %v4070 = vunpack.c.l.b16 %v4032
        %v4071 = vunpack.c.l.b16 %v4046
        %v4072 = vpack.c.b16 %v4065, %v4064
        %v4073 = vpack.c.b16 %v4067, %v4066
        %v4074 = vpack.c.b16 %v4069, %v4068
        %v4075 = vpack.c.b16 %v4071, %v4070
        %v4096 = vunpack.c.l.b16 %v4048
        %v4097 = vunpack.c.l.b16 %v4049
        %v4098 = vunpack.c.l.b16 %v4050
        %v4099 = vunpack.c.l.b16 %v4051
        %v4100 = vunpack.c.l.b16 %v4052
        %v4101 = vunpack.c.l.b16 %v4053
        %v4102 = vunpack.c.l.b16 %v4054
        %v4103 = vunpack.c.l.b16 %v4055
        %v4104 = vunpack.c.l.b16 %v4056
        %v4105 = vunpack.c.l.b16 %v4057
        %v4106 = vunpack.c.l.b16 %v4058
        %v4107 = vunpack.c.l.b16 %v4059
        %v4108 = vunpack.c.l.b16 %v4060
        %v4109 = vunpack.c.l.b16 %v4061
        %v4110 = vunpack.c.l.b16 %v4062
        %v4111 = vunpack.c.l.b16 %v4063
        %v4112 = vpack.c.b16 %v4097, %v4096
        %v4113 = vpack.c.b16 %v4099, %v4098
        %v4114 = vpack.c.b16 %v4101, %v4100
        %v4115 = vpack.c.b16 %v4103, %v4102
        %v4116 = vpack.c.b16 %v4105, %v4104
        %v4117 = vpack.c.b16 %v4107, %v4106
        %v4118 = vpack.c.b16 %v4109, %v4108
        %v4119 = vpack.c.b16 %v4111, %v4110
        %4128 = vmatprep.subr.bf16.mxu0 0
        %4129 = vmatpush1.bf16.msra.mxu0 %v4119
        %4130 = vmatprep.subr.bf16.mxu0 0
        %4131 = vmatpush1.bf16.msra.mxu0 %v4118
        %4132 = vmatprep.subr.bf16.mxu0 0
        %4133 = vmatpush1.bf16.msra.mxu0 %v4117
        %4134 = vmatprep.subr.bf16.mxu0 0
        %4135 = vmatpush1.bf16.msra.mxu0 %v4116
        %4136 = vmatprep.subr.bf16.mxu0 0
        %4137 = vmatpush1.bf16.msra.mxu0 %v4115
        %4138 = vmatprep.subr.bf16.mxu0 0
        %4139 = vmatpush1.bf16.msra.mxu0 %v4114
        %4140 = vmatprep.subr.bf16.mxu0 0
        %4141 = vmatpush1.bf16.msra.mxu0 %v4113
        %4142 = vmatprep.subr.bf16.mxu0 0
        %4143 = vmatpush1.bf16.msra.mxu0 %v4112
        %4144 = vmatprep.subr.bf16.mxu0 0
        %4145 = vmatpush2.bf16.msra.mxu0 0
        %4146 = vmatprep.subr.bf16.mxu0 0
        %4147 = vmatpush2.bf16.msra.mxu0 0
        %4148 = vmatprep.subr.bf16.mxu0 0
        %4149 = vmatpush2.bf16.msra.mxu0 0
        %4150 = vmatprep.subr.bf16.mxu0 0
        %4151 = vmatpush2.bf16.msra.mxu0 0
        %4152 = vmatprep.subr.bf16.mxu0 0
        %4153 = vmatpush2.bf16.msra.mxu0 0
        %4154 = vmatprep.subr.bf16.mxu0 0
        %4155 = vmatpush2.bf16.msra.mxu0 0
        %4156 = vmatprep.subr.bf16.mxu0 0
        %4157 = vmatpush2.bf16.msra.mxu0 0
        %4158 = vmatprep.subr.bf16.mxu0 0
        %4159 = vmatpush2.bf16.msra.mxu0 0
        %4160 = vmatprep.mubr.bf16.mxu0 0
        %4161 = vmatmul.mubr.bf16.gmra.mxu0 %v4072
        %v4162 = vpop.f32.mrf.mxu0
        %v4163 = vadd.f32 0.0, %v4162
        %v4164 = vpop.f32.mrf.mxu0
        %v4165 = vpop.f32.mrf.mxu0
        %v4166 = vadd.f32 0.0, %v4165
        %v4167 = vpop.f32.mrf.mxu0
        %4168 = vmatprep.mubr.bf16.mxu0 0
        %4169 = vmatmul.mubr.bf16.gmra.mxu0 %v4073
        %v4170 = vpop.f32.mrf.mxu0
        %v4171 = vadd.f32 0.0, %v4170
        %v4172 = vpop.f32.mrf.mxu0
        %v4173 = vpop.f32.mrf.mxu0
        %v4174 = vadd.f32 0.0, %v4173
        %v4175 = vpop.f32.mrf.mxu0
        %4176 = vmatprep.mubr.bf16.mxu0 0
        %4177 = vmatmul.mubr.bf16.gmra.mxu0 %v4074
        %v4178 = vpop.f32.mrf.mxu0
        %v4179 = vadd.f32 0.0, %v4178
        %v4180 = vpop.f32.mrf.mxu0
        %v4181 = vpop.f32.mrf.mxu0
        %v4182 = vadd.f32 0.0, %v4181
        %v4183 = vpop.f32.mrf.mxu0
        %4184 = vmatprep.mubr.bf16.mxu0 0
        %4185 = vmatmul.mubr.bf16.gmra.mxu0 %v4075
        %v4186 = vpop.f32.mrf.mxu0
        %v4187 = vadd.f32 0.0, %v4186
        %v4188 = vpop.f32.mrf.mxu0
        %v4189 = vpop.f32.mrf.mxu0
        %v4190 = vadd.f32 0.0, %v4189
        %v4191 = vpop.f32.mrf.mxu0
        %4192 = vdwg.mxu0
        %v4193 = vadd.f32 %v3911, %v4163
        %v4194 = vadd.f32 %v3912, %v4166
        %v4195 = vadd.f32 %v3913, %v4171
        %v4196 = vadd.f32 %v3914, %v4174
        %v4197 = vadd.f32 %v3915, %v4179
        %v4198 = vadd.f32 %v3916, %v4182
        %v4199 = vadd.f32 %v3917, %v4187
        %v4200 = vadd.f32 %v3918, %v4190
        %v4201 = vld [vmem:[%s3748] sm:$0xe]
        %v4202 = vld [vmem:[%s3748 + $0x8] sm:$0xe]
        %v4203 = vld [vmem:[%s3748 + $0x10] sm:$0xe]
        %v4204 = vld [vmem:[%s3748 + $0x18] sm:$0xe]
        %v4205 = vld [vmem:[%s3748 + $0x20] sm:$0xe]
        %v4206 = vld [vmem:[%s3748 + $0x28] sm:$0xe]
        %v4207 = vld [vmem:[%s3748 + $0x30] sm:$0xe]
        %v4208 = vld [vmem:[%s3748 + $0x38] sm:$0xe]
        %v4225 = vrot.slane %v4201, 5
        %v4226 = vrot.slane %v4225, 4
        %v4227 = vrot.slane %v3920, 5
        %v4228 = vsel %vm2899, %v4226, %v4227
        %v4229 = vrot.slane %v4202, 5
        %v4230 = vrot.slane %v4229, 4
        %v4231 = vrot.slane %v3922, 5
        %v4232 = vsel %vm2899, %v4230, %v4231
        %v4233 = vrot.slane %v4203, 5
        %v4234 = vrot.slane %v4233, 4
        %v4235 = vrot.slane %v3924, 5
        %v4236 = vsel %vm2899, %v4234, %v4235
        %v4237 = vrot.slane %v4204, 5
        %v4238 = vrot.slane %v4237, 4
        %v4239 = vrot.slane %v3926, 5
        %v4240 = vsel %vm2899, %v4238, %v4239
        %v4241 = vrot.slane %v4205, 5
        %v4242 = vrot.slane %v4241, 4
        %v4243 = vrot.slane %v3928, 5
        %v4244 = vsel %vm2899, %v4242, %v4243
        %v4245 = vrot.slane %v4206, 5
        %v4246 = vrot.slane %v4245, 4
        %v4247 = vrot.slane %v3930, 5
        %v4248 = vsel %vm2899, %v4246, %v4247
        %v4249 = vrot.slane %v4207, 5
        %v4250 = vrot.slane %v4249, 4
        %v4251 = vrot.slane %v3932, 5
        %v4252 = vsel %vm2899, %v4250, %v4251
        %v4253 = vrot.slane %v4208, 5
        %v4254 = vrot.slane %v4253, 4
        %v4255 = vrot.slane %v3934, 5
        %v4256 = vsel %vm2899, %v4254, %v4255
        %s4257 = scalar_lea.vmem %s4, 512
        %v4258 = vld [vmem:[%s4257] sm:$0xf]
        %v4259 = vld [vmem:[%s4257 + $0x4] sm:$0xf]
        %v4260 = vld [vmem:[%s4257 + $0x8] sm:$0xf]
        %v4261 = vld [vmem:[%s4257 + $0xc] sm:$0xf]
        %v4262 = vld [vmem:[%s4257 + $0x10] sm:$0xf]
        %v4263 = vld [vmem:[%s4257 + $0x14] sm:$0xf]
        %v4264 = vld [vmem:[%s4257 + $0x18] sm:$0xf]
        %v4265 = vld [vmem:[%s4257 + $0x1c] sm:$0xf]
        %v4266 = vld [vmem:[%s4257 + $0x20] sm:$0xf]
        %v4267 = vld [vmem:[%s4257 + $0x24] sm:$0xf]
        %v4268 = vld [vmem:[%s4257 + $0x28] sm:$0xf]
        %v4269 = vld [vmem:[%s4257 + $0x2c] sm:$0xf]
        %v4270 = vld [vmem:[%s4257 + $0x30] sm:$0xf]
        %v4271 = vld [vmem:[%s4257 + $0x34] sm:$0xf]
        %v4272 = vld [vmem:[%s4257 + $0x38] sm:$0xf]
        %v4273 = vld [vmem:[%s4257 + $0x3c] sm:$0xf]
        %v4274 = vunpack.c.l.b16 %v4228
        %v4275 = vunpack.c.l.b16 %v4232
        %v4276 = vunpack.c.l.b16 %v4236
        %v4277 = vunpack.c.l.b16 %v4240
        %v4278 = vunpack.c.l.b16 %v4244
        %v4279 = vunpack.c.l.b16 %v4248
        %v4280 = vunpack.c.l.b16 %v4252
        %v4281 = vunpack.c.l.b16 %v4256
        %v4282 = vpack.c.b16 %v4275, %v4274
        %v4283 = vpack.c.b16 %v4277, %v4276
        %v4284 = vpack.c.b16 %v4279, %v4278
        %v4285 = vpack.c.b16 %v4281, %v4280
        %v4306 = vunpack.c.l.b16 %v4258
        %v4307 = vunpack.c.l.b16 %v4259
        %v4308 = vunpack.c.l.b16 %v4260
        %v4309 = vunpack.c.l.b16 %v4261
        %v4310 = vunpack.c.l.b16 %v4262
        %v4311 = vunpack.c.l.b16 %v4263
        %v4312 = vunpack.c.l.b16 %v4264
        %v4313 = vunpack.c.l.b16 %v4265
        %v4314 = vunpack.c.l.b16 %v4266
        %v4315 = vunpack.c.l.b16 %v4267
        %v4316 = vunpack.c.l.b16 %v4268
        %v4317 = vunpack.c.l.b16 %v4269
        %v4318 = vunpack.c.l.b16 %v4270
        %v4319 = vunpack.c.l.b16 %v4271
        %v4320 = vunpack.c.l.b16 %v4272
        %v4321 = vunpack.c.l.b16 %v4273
        %v4322 = vpack.c.b16 %v4307, %v4306
        %v4323 = vpack.c.b16 %v4309, %v4308
        %v4324 = vpack.c.b16 %v4311, %v4310
        %v4325 = vpack.c.b16 %v4313, %v4312
        %v4326 = vpack.c.b16 %v4315, %v4314
        %v4327 = vpack.c.b16 %v4317, %v4316
        %v4328 = vpack.c.b16 %v4319, %v4318
        %v4329 = vpack.c.b16 %v4321, %v4320
        %4338 = vmatprep.subr.bf16.mxu0 0
        %4339 = vmatpush1.bf16.msra.mxu0 %v4329
        %4340 = vmatprep.subr.bf16.mxu0 0
        %4341 = vmatpush1.bf16.msra.mxu0 %v4328
        %4342 = vmatprep.subr.bf16.mxu0 0
        %4343 = vmatpush1.bf16.msra.mxu0 %v4327
        %4344 = vmatprep.subr.bf16.mxu0 0
        %4345 = vmatpush1.bf16.msra.mxu0 %v4326
        %4346 = vmatprep.subr.bf16.mxu0 0
        %4347 = vmatpush1.bf16.msra.mxu0 %v4325
        %4348 = vmatprep.subr.bf16.mxu0 0
        %4349 = vmatpush1.bf16.msra.mxu0 %v4324
        %4350 = vmatprep.subr.bf16.mxu0 0
        %4351 = vmatpush1.bf16.msra.mxu0 %v4323
        %4352 = vmatprep.subr.bf16.mxu0 0
        %4353 = vmatpush1.bf16.msra.mxu0 %v4322
        %4354 = vmatprep.subr.bf16.mxu0 0
        %4355 = vmatpush2.bf16.msra.mxu0 0
        %4356 = vmatprep.subr.bf16.mxu0 0
        %4357 = vmatpush2.bf16.msra.mxu0 0
        %4358 = vmatprep.subr.bf16.mxu0 0
        %4359 = vmatpush2.bf16.msra.mxu0 0
        %4360 = vmatprep.subr.bf16.mxu0 0
        %4361 = vmatpush2.bf16.msra.mxu0 0
        %4362 = vmatprep.subr.bf16.mxu0 0
        %4363 = vmatpush2.bf16.msra.mxu0 0
        %4364 = vmatprep.subr.bf16.mxu0 0
        %4365 = vmatpush2.bf16.msra.mxu0 0
        %4366 = vmatprep.subr.bf16.mxu0 0
        %4367 = vmatpush2.bf16.msra.mxu0 0
        %4368 = vmatprep.subr.bf16.mxu0 0
        %4369 = vmatpush2.bf16.msra.mxu0 0
        %4370 = vmatprep.mubr.bf16.mxu0 0
        %4371 = vmatmul.mubr.bf16.gmra.mxu0 %v4282
        %v4372 = vpop.f32.mrf.mxu0
        %v4373 = vadd.f32 0.0, %v4372
        %v4374 = vpop.f32.mrf.mxu0
        %v4375 = vpop.f32.mrf.mxu0
        %v4376 = vadd.f32 0.0, %v4375
        %v4377 = vpop.f32.mrf.mxu0
        %4378 = vmatprep.mubr.bf16.mxu0 0
        %4379 = vmatmul.mubr.bf16.gmra.mxu0 %v4283
        %v4380 = vpop.f32.mrf.mxu0
        %v4381 = vadd.f32 0.0, %v4380
        %v4382 = vpop.f32.mrf.mxu0
        %v4383 = vpop.f32.mrf.mxu0
        %v4384 = vadd.f32 0.0, %v4383
        %v4385 = vpop.f32.mrf.mxu0
        %4386 = vmatprep.mubr.bf16.mxu0 0
        %4387 = vmatmul.mubr.bf16.gmra.mxu0 %v4284
        %v4388 = vpop.f32.mrf.mxu0
        %v4389 = vadd.f32 0.0, %v4388
        %v4390 = vpop.f32.mrf.mxu0
        %v4391 = vpop.f32.mrf.mxu0
        %v4392 = vadd.f32 0.0, %v4391
        %v4393 = vpop.f32.mrf.mxu0
        %4394 = vmatprep.mubr.bf16.mxu0 0
        %4395 = vmatmul.mubr.bf16.gmra.mxu0 %v4285
        %v4396 = vpop.f32.mrf.mxu0
        %v4397 = vadd.f32 0.0, %v4396
        %v4398 = vpop.f32.mrf.mxu0
        %v4399 = vpop.f32.mrf.mxu0
        %v4400 = vadd.f32 0.0, %v4399
        %v4401 = vpop.f32.mrf.mxu0
        %4402 = vdwg.mxu0
        %v4403 = vadd.f32 %v4193, %v4373
        %v4404 = vadd.f32 %v4194, %v4376
        %v4405 = vadd.f32 %v4195, %v4381
        %v4406 = vadd.f32 %v4196, %v4384
        %v4407 = vadd.f32 %v4197, %v4389
        %v4408 = vadd.f32 %v4198, %v4392
        %v4409 = vadd.f32 %v4199, %v4397
        %v4410 = vadd.f32 %v4200, %v4400
        %v4411 = vld [vmem:[%s5] sm:$0x1]
        %v4413 = vlaneseq
        %v4414 = vshrl.u32 %v4413, 7
        %v4415 = vsub.s32 0, %v4414
        %v4416 = vrot.slane %v4411, %v4415
        %v4418 = vmul.f32 %v4403, %v4416
        %v4419 = vmul.f32 %v4404, %v4416
        %v4420 = vmul.f32 %v4405, %v4416
        %v4421 = vmul.f32 %v4406, %v4416
        %v4422 = vmul.f32 %v4407, %v4416
        %v4423 = vmul.f32 %v4408, %v4416
        %v4424 = vmul.f32 %v4409, %v4416
        %v4425 = vmul.f32 %v4410, %v4416
        %v4426 = vld [vmem:[%s6] sm:$0x1]
        %v4428 = vlaneseq
        %v4429 = vshrl.u32 %v4428, 7
        %v4430 = vsub.s32 0, %v4429
        %v4431 = vrot.slane %v4426, %v4430
        %v4433 = vadd.f32 %v4418, %v4431
        %v4434 = vadd.f32 %v4419, %v4431
        %v4435 = vadd.f32 %v4420, %v4431
        %v4436 = vadd.f32 %v4421, %v4431
        %v4437 = vadd.f32 %v4422, %v4431
        %v4438 = vadd.f32 %v4423, %v4431
        %v4439 = vadd.f32 %v4424, %v4431
        %v4440 = vadd.f32 %v4425, %v4431
        %v4441 = vld [vmem:[%s1144] sm:$0xf]
        %v4442 = vld [vmem:[%s1144 + $0x8] sm:$0xf]
        %v4443 = vld [vmem:[%s1144 + $0x10] sm:$0xf]
        %v4444 = vld [vmem:[%s1144 + $0x18] sm:$0xf]
        %v4445 = vld [vmem:[%s1144 + $0x20] sm:$0xf]
        %v4446 = vld [vmem:[%s1144 + $0x28] sm:$0xf]
        %v4447 = vld [vmem:[%s1144 + $0x30] sm:$0xf]
        %v4448 = vld [vmem:[%s1144 + $0x38] sm:$0xf]
        %v4449 = vld [vmem:[%s7] sm:$0xf]
        %v4450 = vld [vmem:[%s7 + $0x4] sm:$0xf]
        %v4451 = vld [vmem:[%s7 + $0x8] sm:$0xf]
        %v4452 = vld [vmem:[%s7 + $0xc] sm:$0xf]
        %v4453 = vld [vmem:[%s7 + $0x10] sm:$0xf]
        %v4454 = vld [vmem:[%s7 + $0x14] sm:$0xf]
        %v4455 = vld [vmem:[%s7 + $0x18] sm:$0xf]
        %v4456 = vld [vmem:[%s7 + $0x1c] sm:$0xf]
        %v4457 = vld [vmem:[%s7 + $0x20] sm:$0xf]
        %v4458 = vld [vmem:[%s7 + $0x24] sm:$0xf]
        %v4459 = vld [vmem:[%s7 + $0x28] sm:$0xf]
        %v4460 = vld [vmem:[%s7 + $0x2c] sm:$0xf]
        %v4461 = vld [vmem:[%s7 + $0x30] sm:$0xf]
        %v4462 = vld [vmem:[%s7 + $0x34] sm:$0xf]
        %v4463 = vld [vmem:[%s7 + $0x38] sm:$0xf]
        %v4464 = vld [vmem:[%s7 + $0x3c] sm:$0xf]
        %v4473 = vunpack.c.l.b16 %v4441
        %v4474 = vunpack.c.l.b16 %v4442
        %v4475 = vunpack.c.l.b16 %v4443
        %v4476 = vunpack.c.l.b16 %v4444
        %v4477 = vunpack.c.l.b16 %v4445
        %v4478 = vunpack.c.l.b16 %v4446
        %v4479 = vunpack.c.l.b16 %v4447
        %v4480 = vunpack.c.l.b16 %v4448
        %v4481 = vpack.c.b16 %v4474, %v4473
        %v4482 = vpack.c.b16 %v4476, %v4475
        %v4483 = vpack.c.b16 %v4478, %v4477
        %v4484 = vpack.c.b16 %v4480, %v4479
        %v4505 = vunpack.c.l.b16 %v4449
        %v4506 = vunpack.c.l.b16 %v4450
        %v4507 = vunpack.c.l.b16 %v4451
        %v4508 = vunpack.c.l.b16 %v4452
        %v4509 = vunpack.c.l.b16 %v4453
        %v4510 = vunpack.c.l.b16 %v4454
        %v4511 = vunpack.c.l.b16 %v4455
        %v4512 = vunpack.c.l.b16 %v4456
        %v4513 = vunpack.c.l.b16 %v4457
        %v4514 = vunpack.c.l.b16 %v4458
        %v4515 = vunpack.c.l.b16 %v4459
        %v4516 = vunpack.c.l.b16 %v4460
        %v4517 = vunpack.c.l.b16 %v4461
        %v4518 = vunpack.c.l.b16 %v4462
        %v4519 = vunpack.c.l.b16 %v4463
        %v4520 = vunpack.c.l.b16 %v4464
        %v4521 = vpack.c.b16 %v4506, %v4505
        %v4522 = vpack.c.b16 %v4508, %v4507
        %v4523 = vpack.c.b16 %v4510, %v4509
        %v4524 = vpack.c.b16 %v4512, %v4511
        %v4525 = vpack.c.b16 %v4514, %v4513
        %v4526 = vpack.c.b16 %v4516, %v4515
        %v4527 = vpack.c.b16 %v4518, %v4517
        %v4528 = vpack.c.b16 %v4520, %v4519
        %4537 = vmatprep.subr.bf16.mxu0 0
        %4538 = vmatpush1.bf16.msra.mxu0 %v4528
        %4539 = vmatprep.subr.bf16.mxu0 0
        %4540 = vmatpush1.bf16.msra.mxu0 %v4527
        %4541 = vmatprep.subr.bf16.mxu0 0
        %4542 = vmatpush1.bf16.msra.mxu0 %v4526
        %4543 = vmatprep.subr.bf16.mxu0 0
        %4544 = vmatpush1.bf16.msra.mxu0 %v4525
        %4545 = vmatprep.subr.bf16.mxu0 0
        %4546 = vmatpush1.bf16.msra.mxu0 %v4524
        %4547 = vmatprep.subr.bf16.mxu0 0
        %4548 = vmatpush1.bf16.msra.mxu0 %v4523
        %4549 = vmatprep.subr.bf16.mxu0 0
        %4550 = vmatpush1.bf16.msra.mxu0 %v4522
        %4551 = vmatprep.subr.bf16.mxu0 0
        %4552 = vmatpush1.bf16.msra.mxu0 %v4521
        %4553 = vmatprep.subr.bf16.mxu0 0
        %4554 = vmatpush2.bf16.msra.mxu0 0
        %4555 = vmatprep.subr.bf16.mxu0 0
        %4556 = vmatpush2.bf16.msra.mxu0 0
        %4557 = vmatprep.subr.bf16.mxu0 0
        %4558 = vmatpush2.bf16.msra.mxu0 0
        %4559 = vmatprep.subr.bf16.mxu0 0
        %4560 = vmatpush2.bf16.msra.mxu0 0
        %4561 = vmatprep.subr.bf16.mxu0 0
        %4562 = vmatpush2.bf16.msra.mxu0 0
        %4563 = vmatprep.subr.bf16.mxu0 0
        %4564 = vmatpush2.bf16.msra.mxu0 0
        %4565 = vmatprep.subr.bf16.mxu0 0
        %4566 = vmatpush2.bf16.msra.mxu0 0
        %4567 = vmatprep.subr.bf16.mxu0 0
        %4568 = vmatpush2.bf16.msra.mxu0 0
        %4569 = vmatprep.mubr.bf16.mxu0 0
        %4570 = vmatmul.mubr.bf16.gmra.mxu0 %v4481
        %v4571 = vpop.f32.mrf.mxu0
        %v4572 = vadd.f32 0.0, %v4571
        %v4573 = vpop.f32.mrf.mxu0
        %v4574 = vpop.f32.mrf.mxu0
        %v4575 = vadd.f32 0.0, %v4574
        %v4576 = vpop.f32.mrf.mxu0
        %4577 = vmatprep.mubr.bf16.mxu0 0
        %4578 = vmatmul.mubr.bf16.gmra.mxu0 %v4482
        %v4579 = vpop.f32.mrf.mxu0
        %v4580 = vadd.f32 0.0, %v4579
        %v4581 = vpop.f32.mrf.mxu0
        %v4582 = vpop.f32.mrf.mxu0
        %v4583 = vadd.f32 0.0, %v4582
        %v4584 = vpop.f32.mrf.mxu0
        %4585 = vmatprep.mubr.bf16.mxu0 0
        %4586 = vmatmul.mubr.bf16.gmra.mxu0 %v4483
        %v4587 = vpop.f32.mrf.mxu0
        %v4588 = vadd.f32 0.0, %v4587
        %v4589 = vpop.f32.mrf.mxu0
        %v4590 = vpop.f32.mrf.mxu0
        %v4591 = vadd.f32 0.0, %v4590
        %v4592 = vpop.f32.mrf.mxu0
        %4593 = vmatprep.mubr.bf16.mxu0 0
        %4594 = vmatmul.mubr.bf16.gmra.mxu0 %v4484
        %v4595 = vpop.f32.mrf.mxu0
        %v4596 = vadd.f32 0.0, %v4595
        %v4597 = vpop.f32.mrf.mxu0
        %v4598 = vpop.f32.mrf.mxu0
        %v4599 = vadd.f32 0.0, %v4598
        %v4600 = vpop.f32.mrf.mxu0
        %4601 = vdwg.mxu0
        %v4602 = vld [vmem:[%s8] sm:$0x1]
        %v4604 = vlaneseq
        %v4605 = vshrl.u32 %v4604, 7
        %v4606 = vsub.s32 0, %v4605
        %v4607 = vrot.slane %v4602, %v4606
        %v4609 = vmul.f32 %v4572, %v4607
        %v4610 = vmul.f32 %v4575, %v4607
        %v4611 = vmul.f32 %v4580, %v4607
        %v4612 = vmul.f32 %v4583, %v4607
        %v4613 = vmul.f32 %v4588, %v4607
        %v4614 = vmul.f32 %v4591, %v4607
        %v4615 = vmul.f32 %v4596, %v4607
        %v4616 = vmul.f32 %v4599, %v4607
        %v4617 = vld [vmem:[%s9] sm:$0x1]
        %v4619 = vlaneseq
        %v4620 = vshrl.u32 %v4619, 7
        %v4621 = vsub.s32 0, %v4620
        %v4622 = vrot.slane %v4617, %v4621
        %v4624 = vadd.f32 %v4609, %v4622
        %v4625 = vadd.f32 %v4610, %v4622
        %v4626 = vadd.f32 %v4611, %v4622
        %v4627 = vadd.f32 %v4612, %v4622
        %v4628 = vadd.f32 %v4613, %v4622
        %v4629 = vadd.f32 %v4614, %v4622
        %v4630 = vadd.f32 %v4615, %v4622
        %v4631 = vadd.f32 %v4616, %v4622
        %v4632 = vadd.f32 %v4433, %v4624
        %v4633 = vadd.f32 %v4434, %v4625
        %v4634 = vadd.f32 %v4435, %v4626
        %v4635 = vadd.f32 %v4436, %v4627
        %v4636 = vadd.f32 %v4437, %v4628
        %v4637 = vadd.f32 %v4438, %v4629
        %v4638 = vadd.f32 %v4439, %v4630
        %v4639 = vadd.f32 %v4440, %v4631
        %v4640 = vmax.f32 %v4632, 0.0
        %v4641 = vmax.f32 %v4633, 0.0
        %v4642 = vmax.f32 %v4634, 0.0
        %v4643 = vmax.f32 %v4635, 0.0
        %v4644 = vmax.f32 %v4636, 0.0
        %v4645 = vmax.f32 %v4637, 0.0
        %v4646 = vmax.f32 %v4638, 0.0
        %v4647 = vmax.f32 %v4639, 0.0
        %4648 = vst [vmem:[%s355] sm:$0xff] %v4640
        %4649 = vst [vmem:[%s355 + $0x8] sm:$0xff] %v4641
        %4650 = vst [vmem:[%s355 + $0x10] sm:$0xff] %v4642
        %4651 = vst [vmem:[%s355 + $0x18] sm:$0xff] %v4643
        %4652 = vst [vmem:[%s355 + $0x20] sm:$0xff] %v4644
        %4653 = vst [vmem:[%s355 + $0x28] sm:$0xff] %v4645
        %4654 = vst [vmem:[%s355 + $0x30] sm:$0xff] %v4646
        %4655 = vst [vmem:[%s355 + $0x38] sm:$0xff] %v4647
        %s4656 = sand.u32 %s247, 1
        %s4657 = scalar_lea.sflag [#allocation4], %s4656
        %s4658 = sand.u32 %s247, 1
        %s4659 = smul.addr %s4658, 64
        %s4660 = scalar_lea.vmem [#allocation3], %s4659
        // Predicated region
        $region61: #{basic_block.1} parent=59 // pred_check
          %p4661 = pneg %p257
        $region62: #{basic_block.1} parent=59 // pred_check_branch
          %4663 = sbr.rel (%p4661) target = $region64
        $region63: #{basic_block.1} parent=59 // pred_region
          %s4665 = ssub.s32 1024, 1024
          %4666 = vsyncadd %s4657, %s4665
          %s4667 = smul.addr %s24, 8
          %s4668 = smul.addr %s4667, 128
          %s4669 = scalar_lea.hbm %s10, %s4668
          %s4670 = sshll.u32 %s4660, 4
          %s4671 = int_to_ptr.vmem [resolvable:$true] %s4670
          %4676 = dma.vmem_to_hbm [thread:$0]  %s4671, 1024, %s4669, %s4657, 128, 128, 8
        $region64: #{basic_block.1} parent=59 // pred_fallthru
          _
      $region60: #{basic_block.1} parent=5 // pred_fallthru
        _
      %p4677 = scmp.le.s32.totalorder 2, %s19
      // Predicated region
      $region65: #{basic_block.1} parent=5 // pred_check
        %p4678 = pneg %p4677
      $region66: #{basic_block.1} parent=5 // pred_check_branch
        %4680 = sbr.rel (%p4678) target = $region68
      $region67: #{basic_block.1} parent=5 // pred_region
        %s4681 = ssub.s32 %s19, 2
        // Predicated region
        $region69: #{basic_block.1} parent=67 // pred_check
          %p4682 = pneg %p263
        $region70: #{basic_block.1} parent=67 // pred_check_branch
          %4684 = sbr.rel (%p4682) target = $region72
        $region71: #{basic_block.1} parent=67 // pred_region
          %s4685 = sand.u32 %s248, 1
          %s4686 = scalar_lea.sflag [#allocation4], %s4685
          %s4687 = sand.u32 %s248, 1
          %s4688 = smul.addr %s4687, 64
          %s4689 = scalar_lea.vmem [#allocation3], %s4688
          %4690 = dma.done %s4686, 1024
        $region72: #{basic_block.1} parent=67 // pred_fallthru
          _
      $region68: #{basic_block.1} parent=5 // pred_fallthru
        _
    $region6: #{basic_block.1} parent=1 // loop_footer
      %s23 = sadd.s32 1, %s19
    $region7: #{basic_block.1} parent=1 // loop_footer_branch
      %18 = sbr.rel target = $region3
    $region8: #{basic_block.1} parent=1 // loop_exit
      _
    %4691 = vsyncpa [#allocation4], 1
    %s4692 = scalar_lea.sflag [#allocation4], 1
    %4693 = vsyncpa %s4692, 1

</llo_original>
